<compile_context>
chip_gen: v7x
topology: tpu7x:2x2x1
jax: 0.10.0
libtpu: 0.0.40
codegen_flags: <defaults>
</compile_context>

<pallas_src>
import functools
import math

import jax
import jax.numpy as jnp
from jax.experimental import pallas as pl
from jax.experimental.pallas import tpu as pltpu

LN_EPS = 1e-5  # torch nn.LayerNorm default


def _layernorm(x, w, b):
    mu = jnp.mean(x, axis=-1, keepdims=True)
    var = jnp.mean(jnp.square(x - mu), axis=-1, keepdims=True)
    return (x - mu) * jax.lax.rsqrt(var + LN_EPS) * w + b


def _vmem_limit_bytes():
    cap = 64 * 1024 * 1024  # conservative fallback (v7x physical VMEM per TC)
    try:
        info = pltpu.get_tpu_info()
        cap = int(getattr(info, "vmem_capacity_bytes", cap))
    except Exception:
        pass
    # leave headroom; never ask for more than ~80% of physical VMEM
    return max(32 * 1024 * 1024, min(int(cap * 0.8), 112 * 1024 * 1024))


def _pick_bt(batch, s_pad, target_rows=512):
    """Largest divisor of `batch` keeping Bt * S_pad <= target_rows."""
    bt = 1
    for c in range(1, batch + 1):
        if batch % c == 0 and c * s_pad <= target_rows:
            bt = c
    return bt


# ---------------------------------------------------------------------------
# Fused kernel: grid = (batch_tiles, n_layers).  The layer axis is a carried
# reduction: the running activation lives in a VMEM scratch and only the final
# LayerNorm-ed result is written to HBM on the last layer.
# ---------------------------------------------------------------------------
def clip_stack_kernel(x_ref,
                      ln1_w_ref, ln1_b_ref,
                      wqkv_ref, bqkv_ref, wo_ref, bo_ref,
                      ln2_w_ref, ln2_b_ref,
                      w1_ref, b1_ref, w2_ref, b2_ref,
                      lnf_w_ref, lnf_b_ref,
                      o_ref, acc_ref, *, n_head, s_real):
    layer = pl.program_id(1)
    n_layers = pl.num_programs(1)

    @pl.when(layer == 0)
    def _():
        acc_ref[...] = x_ref[...].astype(jnp.float32)

    bt, S, D = acc_ref.shape
    dh = D // n_head
    M = bt * S

    x = acc_ref[...].reshape(M, D)                      # (Bt*S, D), S % 8 == 0

    # ----- LayerNorm 1 + causal multi-head self-attention -----
    h = _layernorm(x, ln1_w_ref[0], ln1_b_ref[0])
    qkv = jnp.dot(h.astype(jnp.bfloat16), wqkv_ref[0],
                  preferred_element_type=jnp.float32) + bqkv_ref[0]
    q_all, k_all, v_all = qkv[:, :D], qkv[:, D:2 * D], qkv[:, 2 * D:]

    scale = 1.0 / math.sqrt(dh)
    qi = jax.lax.broadcasted_iota(jnp.int32, (S, S), 0)
    ki = jax.lax.broadcasted_iota(jnp.int32, (S, S), 1)
    masked = (ki > qi) | (ki >= s_real)                 # causal + key padding

    attn_rows = []
    for b in range(bt):                                 # static, small unroll
        rows = slice(b * S, (b + 1) * S)
        qb = q_all[rows].reshape(S, n_head, dh).transpose(1, 0, 2)   # (H,S,dh)
        kb = k_all[rows].reshape(S, n_head, dh).transpose(1, 0, 2)
        vb = v_all[rows].reshape(S, n_head, dh).transpose(1, 0, 2)

        s = jnp.einsum('hqd,hkd->hqk', qb, kb,
                       preferred_element_type=jnp.float32) * scale
        s = jnp.where(masked[None, :, :], -1e30, s)
        s = s - jnp.max(s, axis=-1, keepdims=True)
        p = jnp.exp(s)
        p = p * pl.reciprocal(jnp.sum(p, axis=-1, keepdims=True), approx=True)

        ab = jnp.einsum('hqk,hkd->hqd', p, vb, preferred_element_type=jnp.float32)
        attn_rows.append(ab.transpose(1, 0, 2).reshape(S, D))
    attn = attn_rows[0] if bt == 1 else jnp.concatenate(attn_rows, axis=0)

    attn = jnp.dot(attn.astype(jnp.bfloat16), wo_ref[0],
                   preferred_element_type=jnp.float32) + bo_ref[0]
    x = x + attn                                        # residual 1

    # ----- LayerNorm 2 + MLP with quick-GELU -----
    h = _layernorm(x, ln2_w_ref[0], ln2_b_ref[0])
    h = jnp.dot(h.astype(jnp.bfloat16), w1_ref[0],
                preferred_element_type=jnp.float32) + b1_ref[0]
    h = h * jax.nn.sigmoid(1.702 * h)
    h = jnp.dot(h.astype(jnp.bfloat16), w2_ref[0],
                preferred_element_type=jnp.float32) + b2_ref[0]
    x = x + h                                           # residual 2

    acc_ref[...] = x.reshape(bt, S, D)

    @pl.when(layer == n_layers - 1)
    def _():
        y = _layernorm(x, lnf_w_ref[...], lnf_b_ref[...])
        o_ref[...] = y.reshape(bt, S, D).astype(o_ref.dtype)


def clip_stack(x, prep, n_head, s_real):
    B, S, D = x.shape                       # S already padded to a multiple of 8
    L = prep['wqkv'].shape[0]
    bt = _pick_bt(B, S)

    weight_names = ['ln1_w', 'ln1_b', 'wqkv', 'bqkv', 'wo', 'bo',
                    'ln2_w', 'ln2_b', 'w1', 'b1', 'w2', 'b2']
    weight_args = [prep[n] for n in weight_names]

    def layer_spec(arr):
        nd = arr.ndim
        return pl.BlockSpec((1,) + arr.shape[1:],
                            lambda b, l, nd=nd: (l,) + (0,) * (nd - 1))

    in_specs = ([pl.BlockSpec((bt, S, D), lambda b, l: (b, 0, 0))]
                + [layer_spec(w) for w in weight_args]
                + [pl.BlockSpec((1, D), lambda b, l: (0, 0)),
                   pl.BlockSpec((1, D), lambda b, l: (0, 0))])

    return pl.pallas_call(
        functools.partial(clip_stack_kernel, n_head=n_head, s_real=s_real),
        out_shape=jax.ShapeDtypeStruct((B, S, D), x.dtype),
        grid=(B // bt, L),
        in_specs=in_specs,
        out_specs=pl.BlockSpec((bt, S, D), lambda b, l: (b, 0, 0)),
        scratch_shapes=[pltpu.VMEM((bt, S, D), jnp.float32)],
        compiler_params=pltpu.CompilerParams(
            dimension_semantics=("parallel", "arbitrary"),
            vmem_limit_bytes=_vmem_limit_bytes()),
    )(x, *weight_args, prep['ln_f_w'], prep['ln_f_b'])


# ---------------------------------------------------------------------------
# Full model forward (embedding gather is glue, done in plain JAX)
# ---------------------------------------------------------------------------
def clip_forward(tokens, prep, n_head):
    tokens = tokens.astype(jnp.int32)
    x = jnp.take(prep['token_emb'], tokens, axis=0) + prep['pos_emb']
    B, S, D = x.shape
    s_pad = -(-S // 8) * 8                               # pad seq to sublane multiple
    if s_pad != S:
        x = jnp.pad(x, ((0, 0), (0, s_pad - S), (0, 0)))
    out = clip_stack(x, prep, n_head, s_real=S)
    return out[:, :S, :] if s_pad != S else out


# ---------------------------------------------------------------------------
# Pure-JAX reference (uses the same bf16-rounded weights as the kernel)
# ---------------------------------------------------------------------------
def clip_forward_ref(tokens, prep, n_head):
    def ln(x, w, b):
        mu = x.mean(-1, keepdims=True)
        var = ((x - mu) ** 2).mean(-1, keepdims=True)
        return (x - mu) / jnp.sqrt(var + LN_EPS) * w + b

    f32 = lambda a: a.astype(jnp.float32)
    tokens = tokens.astype(jnp.int32)
    x = jnp.take(prep['token_emb'], tokens, axis=0) + prep['pos_emb']
    B, S, D = x.shape
    dh = D // n_head
    L = prep['wqkv'].shape[0]
    for i in range(L):
        h = ln(x, prep['ln1_w'][i, 0], prep['ln1_b'][i, 0])
        qkv = h @ f32(prep['wqkv'][i]) + prep['bqkv'][i, 0]
        q, k, v = jnp.split(qkv, 3, axis=-1)
        q = q.reshape(B, S, n_head, dh).transpose(0, 2, 1, 3)
        k = k.reshape(B, S, n_head, dh).transpose(0, 2, 1, 3)
        v = v.reshape(B, S, n_head, dh).transpose(0, 2, 1, 3)
        s = jnp.einsum('bhqd,bhkd->bhqk', q, k) / math.sqrt(dh)
        mask = jnp.triu(jnp.ones((S, S), bool), 1)
        s = jnp.where(mask, -1e30, s)
        p = jax.nn.softmax(s, axis=-1)
        a = jnp.einsum('bhqk,bhkd->bhqd', p, v).transpose(0, 2, 1, 3).reshape(B, S, D)
        x = x + a @ f32(prep['wo'][i]) + prep['bo'][i, 0]
        h = ln(x, prep['ln2_w'][i, 0], prep['ln2_b'][i, 0])
        h = h @ f32(prep['w1'][i]) + prep['b1'][i, 0]
        h = h * jax.nn.sigmoid(1.702 * h)
        x = x + h @ f32(prep['w2'][i]) + prep['b2'][i, 0]
    return ln(x, prep['ln_f_w'][0], prep['ln_f_b'][0])


# ---------------------------------------------------------------------------
# Parameter construction
# ---------------------------------------------------------------------------
def init_params(key, vocab, d, n_tok, n_layers):
    keys = jax.random.split(key, 1 + n_layers)
    params = {
        'token_emb': 0.02 * jax.random.normal(keys[0], (vocab, d), jnp.float32),
        'pos_emb': jnp.zeros((n_tok, d), jnp.float32),   # torch.zeros in __init__
        'ln_f_w': jnp.ones((1, d), jnp.float32),
        'ln_f_b': jnp.zeros((1, d), jnp.float32),
        'layers': [],
    }
    for i in range(n_layers):
        ks = jax.random.split(keys[1 + i], 6)
        params['layers'].append({
            'ln1_w': jnp.ones((1, d), jnp.float32),
            'ln1_b': jnp.zeros((1, d), jnp.float32),
            'wqkv': 0.02 * jax.random.normal(ks[0], (d, 3 * d), jnp.float32),
            'bqkv': 0.02 * jax.random.normal(ks[1], (1, 3 * d), jnp.float32),
            'wo': 0.02 * jax.random.normal(ks[2], (d, d), jnp.float32),
            'bo': jnp.zeros((1, d), jnp.float32),
            'ln2_w': jnp.ones((1, d), jnp.float32),
            'ln2_b': jnp.zeros((1, d), jnp.float32),
            'w1': 0.02 * jax.random.normal(ks[3], (d, 4 * d), jnp.float32),
            'b1': 0.02 * jax.random.normal(ks[4], (1, 4 * d), jnp.float32),
            'w2': 0.02 * jax.random.normal(ks[5], (4 * d, d), jnp.float32),
            'b2': jnp.zeros((1, d), jnp.float32),
        })
    return params


def prepare_params(params):
    """Stack per-layer params along a leading layer axis; matmul weights -> bf16."""
    layers = params['layers']
    stack = lambda name: jnp.stack([lp[name] for lp in layers], axis=0)
    prep = {
        'token_emb': params['token_emb'],
        'pos_emb': params['pos_emb'],
        'ln_f_w': params['ln_f_w'],
        'ln_f_b': params['ln_f_b'],
    }
    for name in ('ln1_w', 'ln1_b', 'bqkv', 'bo', 'ln2_w', 'ln2_b', 'b1', 'b2'):
        prep[name] = stack(name)                              # stays f32
    for name in ('wqkv', 'wo', 'w1', 'w2'):
        prep[name] = stack(name).astype(jnp.bfloat16)         # streamed as bf16
    return prep


if __name__ == "__main__":
    # Full CLIP config is vocab=49408, D=768, S=77, 12 heads, 12 layers.
    # Demo uses a scaled-down but structurally identical configuration.
    VOCAB, EMBED, NTOK, NHEAD, NLAYERS = 1000, 128, 16, 4, 2
    BATCH = 2

    key = jax.random.PRNGKey(0)
    kp, kt = jax.random.split(key)
    params = init_params(kp, VOCAB, EMBED, NTOK, NLAYERS)
    prep = prepare_params(params)
    # position embedding broadcast in torch requires seq_len == n_tokens
    tokens = jax.random.randint(kt, (BATCH, NTOK), 0, VOCAB, dtype=jnp.int32)

    out = clip_forward(tokens, prep, NHEAD)
    out = jax.block_until_ready(out)

    ref = clip_forward_ref(tokens, prep, NHEAD)
    assert out.shape == (BATCH, NTOK, EMBED)
    err = jnp.max(jnp.abs(out - ref))
    assert jnp.allclose(out, ref, atol=2e-2, rtol=2e-2), f"max abs err {err}"

    print("KERNEL_OK")
</pallas_src>

<mosaic_0001>
module attributes {stable_mosaic.version = 11 : i64} {
  func.func @clip_stack_kernel(%arg0: i32, %arg1: i32, %arg2: memref<2x16x128xf32, #tpu.memory_space<vmem>>, %arg3: memref<1x1x128xf32, #tpu.memory_space<vmem>>, %arg4: memref<1x1x128xf32, #tpu.memory_space<vmem>>, %arg5: memref<1x128x384xbf16, #tpu.memory_space<vmem>>, %arg6: memref<1x1x384xf32, #tpu.memory_space<vmem>>, %arg7: memref<1x128x128xbf16, #tpu.memory_space<vmem>>, %arg8: memref<1x1x128xf32, #tpu.memory_space<vmem>>, %arg9: memref<1x1x128xf32, #tpu.memory_space<vmem>>, %arg10: memref<1x1x128xf32, #tpu.memory_space<vmem>>, %arg11: memref<1x128x512xbf16, #tpu.memory_space<vmem>>, %arg12: memref<1x1x512xf32, #tpu.memory_space<vmem>>, %arg13: memref<1x512x128xbf16, #tpu.memory_space<vmem>>, %arg14: memref<1x1x128xf32, #tpu.memory_space<vmem>>, %arg15: memref<1x128xf32, #tpu.memory_space<vmem>>, %arg16: memref<1x128xf32, #tpu.memory_space<vmem>>, %arg17: memref<2x16x128xf32, #tpu.memory_space<vmem>>, %arg18: memref<2x16x128xf32, #tpu.memory_space<vmem>>) attributes {dimension_semantics = [#tpu.dimension_semantics<parallel>, #tpu.dimension_semantics<arbitrary>], iteration_bounds = array<i64: 1, 2>, scalar_prefetch = 0 : i64, scratch_operands = 1 : i64, tpu.core_type = #tpu.core_type<tc>, window_params = [{transform_indices = @transform_0, window_bounds = array<i64: 2, 16, 128>}, {transform_indices = @transform_1, window_bounds = array<i64: 1, 1, 128>}, {transform_indices = @transform_2, window_bounds = array<i64: 1, 1, 128>}, {transform_indices = @transform_3, window_bounds = array<i64: 1, 128, 384>}, {transform_indices = @transform_4, window_bounds = array<i64: 1, 1, 384>}, {transform_indices = @transform_5, window_bounds = array<i64: 1, 128, 128>}, {transform_indices = @transform_6, window_bounds = array<i64: 1, 1, 128>}, {transform_indices = @transform_7, window_bounds = array<i64: 1, 1, 128>}, {transform_indices = @transform_8, window_bounds = array<i64: 1, 1, 128>}, {transform_indices = @transform_9, window_bounds = array<i64: 1, 128, 512>}, {transform_indices = @transform_10, window_bounds = array<i64: 1, 1, 512>}, {transform_indices = @transform_11, window_bounds = array<i64: 1, 512, 128>}, {transform_indices = @transform_12, window_bounds = array<i64: 1, 1, 128>}, {pipeline_mode = #tpu.pipeline_mode<synchronous>, transform_indices = @transform_13, window_bounds = array<i64: 1, 128>}, {pipeline_mode = #tpu.pipeline_mode<synchronous>, transform_indices = @transform_14, window_bounds = array<i64: 1, 128>}, {transform_indices = @transform_15, window_bounds = array<i64: 2, 16, 128>}]} {
    %c0_i32 = arith.constant 0 : i32
    %0 = arith.cmpi eq, %arg1, %c0_i32 : i32
    %1 = arith.extui %0 : i1 to i32
    %c0_i32_0 = arith.constant 0 : i32
    %2 = arith.cmpi ne, %1, %c0_i32_0 : i32
    scf.if %2 {
      %c0_70 = arith.constant 0 : index
      %c0_71 = arith.constant 0 : index
      %c0_72 = arith.constant 0 : index
      %174 = vector.load %arg2[%c0_70, %c0_71, %c0_72] : memref<2x16x128xf32, #tpu.memory_space<vmem>>, vector<2x16x128xf32>
      %c0_73 = arith.constant 0 : index
      %c0_74 = arith.constant 0 : index
      %c0_75 = arith.constant 0 : index
      %175 = vector.load %arg18[%c0_73, %c0_74, %c0_75] : memref<2x16x128xf32, #tpu.memory_space<vmem>>, vector<2x16x128xf32>
      tpu.vector_store %arg18[%c0_73, %c0_74, %c0_75], %174 {strides = array<i32>} : memref<2x16x128xf32, #tpu.memory_space<vmem>>, vector<2x16x128xf32>,
    } else {
    }
    %c0 = arith.constant 0 : index
    %c0_1 = arith.constant 0 : index
    %c0_2 = arith.constant 0 : index
    %3 = vector.load %arg18[%c0, %c0_1, %c0_2] : memref<2x16x128xf32, #tpu.memory_space<vmem>>, vector<2x16x128xf32>
    %4 = vector.shape_cast %3 : vector<2x16x128xf32> to vector<32x128xf32>
    %c0_3 = arith.constant 0 : index
    %c0_4 = arith.constant 0 : index
    %c0_5 = arith.constant 0 : index
    %5 = vector.load %arg3[%c0_3, %c0_4, %c0_5] : memref<1x1x128xf32, #tpu.memory_space<vmem>>, vector<1x1x128xf32>
    %6 = vector.shape_cast %5 : vector<1x1x128xf32> to vector<1x128xf32>
    %c0_6 = arith.constant 0 : index
    %c0_7 = arith.constant 0 : index
    %c0_8 = arith.constant 0 : index
    %7 = vector.load %arg4[%c0_6, %c0_7, %c0_8] : memref<1x1x128xf32, #tpu.memory_space<vmem>>, vector<1x1x128xf32>
    %8 = vector.shape_cast %7 : vector<1x1x128xf32> to vector<1x128xf32>
    %cst = arith.constant dense<0.000000e+00> : vector<32xf32>
    %9 = vector.multi_reduction <add>, %4, %cst [1] : vector<32x128xf32> to vector<32xf32>
    %10 = vector.shape_cast %9 : vector<32xf32> to vector<32x1xf32>
    %cst_9 = arith.constant 1.280000e+02 : f32
    %11 = vector.broadcast %cst_9 : f32 to vector<32x1xf32>
    %12 = arith.divf %10, %11 : vector<32x1xf32>
    %13 = vector.broadcast %12 : vector<32x1xf32> to vector<32x128xf32>
    %14 = arith.subf %4, %13 : vector<32x128xf32>
    %15 = arith.mulf %14, %14 : vector<32x128xf32>
    %cst_10 = arith.constant dense<0.000000e+00> : vector<32xf32>
    %16 = vector.multi_reduction <add>, %15, %cst_10 [1] : vector<32x128xf32> to vector<32xf32>
    %17 = vector.shape_cast %16 : vector<32xf32> to vector<32x1xf32>
    %cst_11 = arith.constant 1.280000e+02 : f32
    %18 = vector.broadcast %cst_11 : f32 to vector<32x1xf32>
    %19 = arith.divf %17, %18 : vector<32x1xf32>
    %20 = vector.broadcast %12 : vector<32x1xf32> to vector<32x128xf32>
    %21 = arith.subf %4, %20 : vector<32x128xf32>
    %cst_12 = arith.constant 9.99999974E-6 : f32
    %22 = vector.broadcast %cst_12 : f32 to vector<32x1xf32>
    %23 = arith.addf %19, %22 : vector<32x1xf32>
    %24 = math.rsqrt %23 : vector<32x1xf32>
    %25 = vector.broadcast %24 : vector<32x1xf32> to vector<32x128xf32>
    %26 = arith.mulf %21, %25 : vector<32x128xf32>
    %27 = vector.broadcast %6 : vector<1x128xf32> to vector<32x128xf32>
    %28 = arith.mulf %26, %27 : vector<32x128xf32>
    %29 = vector.broadcast %8 : vector<1x128xf32> to vector<32x128xf32>
    %30 = arith.addf %28, %29 : vector<32x128xf32>
    %31 = arith.truncf %30 : vector<32x128xf32> to vector<32x128xbf16>
    %c0_13 = arith.constant 0 : index
    %c0_14 = arith.constant 0 : index
    %c0_15 = arith.constant 0 : index
    %32 = vector.load %arg5[%c0_13, %c0_14, %c0_15] : memref<1x128x384xbf16, #tpu.memory_space<vmem>>, vector<1x128x384xbf16>
    %33 = vector.shape_cast %32 : vector<1x128x384xbf16> to vector<128x384xbf16>
    %cst_16 = arith.constant dense<0.000000e+00> : vector<32x384xf32>
    %34 = tpu.matmul %31, %33, %cst_16 {dimension_numbers = #tpu.dot_dimension_numbers<[1], [0], [0], [1], [0, 0, 1, 1], [], []>} : vector<32x128xbf16>, vector<128x384xbf16>, vector<32x384xf32> -> vector<32x384xf32>
    %c0_17 = arith.constant 0 : index
    %c0_18 = arith.constant 0 : index
    %c0_19 = arith.constant 0 : index
    %35 = vector.load %arg6[%c0_17, %c0_18, %c0_19] : memref<1x1x384xf32, #tpu.memory_space<vmem>>, vector<1x1x384xf32>
    %36 = vector.shape_cast %35 : vector<1x1x384xf32> to vector<1x384xf32>
    %37 = vector.broadcast %36 : vector<1x384xf32> to vector<32x384xf32>
    %38 = arith.addf %34, %37 : vector<32x384xf32>
    %39 = vector.extract_strided_slice %38 {offsets = [0, 0], sizes = [32, 128], strides = [1, 1]} : vector<32x384xf32> to vector<32x128xf32>
    %40 = vector.extract_strided_slice %38 {offsets = [0, 128], sizes = [32, 128], strides = [1, 1]} : vector<32x384xf32> to vector<32x128xf32>
    %41 = vector.extract_strided_slice %38 {offsets = [0, 256], sizes = [32, 128], strides = [1, 1]} : vector<32x384xf32> to vector<32x128xf32>
    %42 = tpu.iota {dimensions = array<i32: 0>} : vector<16x16xi32>
    %43 = tpu.iota {dimensions = array<i32: 1>} : vector<16x16xi32>
    %44 = arith.cmpi sgt, %43, %42 : vector<16x16xi32>
    %c16_i32 = arith.constant 16 : i32
    %45 = vector.broadcast %c16_i32 : i32 to vector<16x16xi32>
    %46 = arith.cmpi sge, %43, %45 : vector<16x16xi32>
    %47 = arith.ori %44, %46 : vector<16x16xi1>
    %48 = vector.extract_strided_slice %39 {offsets = [0, 0], sizes = [16, 128], strides = [1, 1]} : vector<32x128xf32> to vector<16x128xf32>
    %49 = vector.shape_cast %48 : vector<16x128xf32> to vector<16x4x32xf32>
    %50 = tpu.transpose %49, [1, 0, 2] : vector<16x4x32xf32> -> vector<4x16x32xf32>
    %51 = vector.extract_strided_slice %40 {offsets = [0, 0], sizes = [16, 128], strides = [1, 1]} : vector<32x128xf32> to vector<16x128xf32>
    %52 = vector.shape_cast %51 : vector<16x128xf32> to vector<16x4x32xf32>
    %53 = tpu.transpose %52, [1, 0, 2] : vector<16x4x32xf32> -> vector<4x16x32xf32>
    %54 = vector.extract_strided_slice %41 {offsets = [0, 0], sizes = [16, 128], strides = [1, 1]} : vector<32x128xf32> to vector<16x128xf32>
    %55 = vector.shape_cast %54 : vector<16x128xf32> to vector<16x4x32xf32>
    %56 = tpu.transpose %55, [1, 0, 2] : vector<16x4x32xf32> -> vector<4x16x32xf32>
    "tpu.trace_start"() <{level = 10 : i32, message = "hqd,hkd->hqk"}> : () -> ()
    %cst_20 = arith.constant dense<0.000000e+00> : vector<4x16x16xf32>
    %57 = tpu.matmul %50, %53, %cst_20 {dimension_numbers = #tpu.dot_dimension_numbers<[2], [2], [1], [1], [0, 0, 0, 1, 1, 1], [0], [0]>} : vector<4x16x32xf32>, vector<4x16x32xf32>, vector<4x16x16xf32> -> vector<4x16x16xf32>
    "tpu.trace_stop"() : () -> ()
    %cst_21 = arith.constant 0.176776692 : f32
    %58 = vector.broadcast %cst_21 : f32 to vector<4x16x16xf32>
    %59 = arith.mulf %57, %58 : vector<4x16x16xf32>
    %60 = vector.shape_cast %47 : vector<16x16xi1> to vector<1x16x16xi1>
    %cst_22 = arith.constant -1.000000e+30 : f32
    %61 = vector.shape_cast %60 : vector<1x16x16xi1> to vector<1x16x16xi1>
    %62 = vector.broadcast %61 : vector<1x16x16xi1> to vector<4x16x16xi1>
    %63 = vector.broadcast %cst_22 : f32 to vector<4x16x16xf32>
    %64 = arith.select %62, %63, %59 : vector<4x16x16xi1>, vector<4x16x16xf32>
    %cst_23 = arith.constant dense<0xFF800000> : vector<4x16xf32>
    %65 = vector.multi_reduction <maximumf>, %64, %cst_23 [2] : vector<4x16x16xf32> to vector<4x16xf32>
    %66 = vector.shape_cast %65 : vector<4x16xf32> to vector<4x16x1xf32>
    %67 = vector.broadcast %66 : vector<4x16x1xf32> to vector<4x16x16xf32>
    %68 = arith.subf %64, %67 : vector<4x16x16xf32>
    %69 = math.exp %68 : vector<4x16x16xf32>
    %cst_24 = arith.constant dense<0.000000e+00> : vector<4x16xf32>
    %70 = vector.multi_reduction <add>, %69, %cst_24 [2] : vector<4x16x16xf32> to vector<4x16xf32>
    %71 = vector.shape_cast %70 : vector<4x16xf32> to vector<4x16x1xf32>
    %72 = tpu.reciprocal %71 {approx = true} : vector<4x16x1xf32> -> vector<4x16x1xf32>
    %73 = vector.broadcast %72 : vector<4x16x1xf32> to vector<4x16x16xf32>
    %74 = arith.mulf %69, %73 : vector<4x16x16xf32>
    "tpu.trace_start"() <{level = 10 : i32, message = "hqk,hkd->hqd"}> : () -> ()
    %cst_25 = arith.constant dense<0.000000e+00> : vector<4x16x32xf32>
    %75 = tpu.matmul %74, %56, %cst_25 {dimension_numbers = #tpu.dot_dimension_numbers<[2], [1], [1], [2], [0, 0, 0, 1, 1, 2], [0], [0]>} : vector<4x16x16xf32>, vector<4x16x32xf32>, vector<4x16x32xf32> -> vector<4x16x32xf32>
    "tpu.trace_stop"() : () -> ()
    %76 = tpu.transpose %75, [1, 0, 2] : vector<4x16x32xf32> -> vector<16x4x32xf32>
    %77 = vector.shape_cast %76 : vector<16x4x32xf32> to vector<16x128xf32>
    %78 = vector.extract_strided_slice %39 {offsets = [16, 0], sizes = [16, 128], strides = [1, 1]} : vector<32x128xf32> to vector<16x128xf32>
    %79 = vector.shape_cast %78 : vector<16x128xf32> to vector<16x4x32xf32>
    %80 = tpu.transpose %79, [1, 0, 2] : vector<16x4x32xf32> -> vector<4x16x32xf32>
    %81 = vector.extract_strided_slice %40 {offsets = [16, 0], sizes = [16, 128], strides = [1, 1]} : vector<32x128xf32> to vector<16x128xf32>
    %82 = vector.shape_cast %81 : vector<16x128xf32> to vector<16x4x32xf32>
    %83 = tpu.transpose %82, [1, 0, 2] : vector<16x4x32xf32> -> vector<4x16x32xf32>
    %84 = vector.extract_strided_slice %41 {offsets = [16, 0], sizes = [16, 128], strides = [1, 1]} : vector<32x128xf32> to vector<16x128xf32>
    %85 = vector.shape_cast %84 : vector<16x128xf32> to vector<16x4x32xf32>
    %86 = tpu.transpose %85, [1, 0, 2] : vector<16x4x32xf32> -> vector<4x16x32xf32>
    "tpu.trace_start"() <{level = 10 : i32, message = "hqd,hkd->hqk"}> : () -> ()
    %cst_26 = arith.constant dense<0.000000e+00> : vector<4x16x16xf32>
    %87 = tpu.matmul %80, %83, %cst_26 {dimension_numbers = #tpu.dot_dimension_numbers<[2], [2], [1], [1], [0, 0, 0, 1, 1, 1], [0], [0]>} : vector<4x16x32xf32>, vector<4x16x32xf32>, vector<4x16x16xf32> -> vector<4x16x16xf32>
    "tpu.trace_stop"() : () -> ()
    %cst_27 = arith.constant 0.176776692 : f32
    %88 = vector.broadcast %cst_27 : f32 to vector<4x16x16xf32>
    %89 = arith.mulf %87, %88 : vector<4x16x16xf32>
    %90 = vector.shape_cast %47 : vector<16x16xi1> to vector<1x16x16xi1>
    %cst_28 = arith.constant -1.000000e+30 : f32
    %91 = vector.shape_cast %90 : vector<1x16x16xi1> to vector<1x16x16xi1>
    %92 = vector.broadcast %91 : vector<1x16x16xi1> to vector<4x16x16xi1>
    %93 = vector.broadcast %cst_28 : f32 to vector<4x16x16xf32>
    %94 = arith.select %92, %93, %89 : vector<4x16x16xi1>, vector<4x16x16xf32>
    %cst_29 = arith.constant dense<0xFF800000> : vector<4x16xf32>
    %95 = vector.multi_reduction <maximumf>, %94, %cst_29 [2] : vector<4x16x16xf32> to vector<4x16xf32>
    %96 = vector.shape_cast %95 : vector<4x16xf32> to vector<4x16x1xf32>
    %97 = vector.broadcast %96 : vector<4x16x1xf32> to vector<4x16x16xf32>
    %98 = arith.subf %94, %97 : vector<4x16x16xf32>
    %99 = math.exp %98 : vector<4x16x16xf32>
    %cst_30 = arith.constant dense<0.000000e+00> : vector<4x16xf32>
    %100 = vector.multi_reduction <add>, %99, %cst_30 [2] : vector<4x16x16xf32> to vector<4x16xf32>
    %101 = vector.shape_cast %100 : vector<4x16xf32> to vector<4x16x1xf32>
    %102 = tpu.reciprocal %101 {approx = true} : vector<4x16x1xf32> -> vector<4x16x1xf32>
    %103 = vector.broadcast %102 : vector<4x16x1xf32> to vector<4x16x16xf32>
    %104 = arith.mulf %99, %103 : vector<4x16x16xf32>
    "tpu.trace_start"() <{level = 10 : i32, message = "hqk,hkd->hqd"}> : () -> ()
    %cst_31 = arith.constant dense<0.000000e+00> : vector<4x16x32xf32>
    %105 = tpu.matmul %104, %86, %cst_31 {dimension_numbers = #tpu.dot_dimension_numbers<[2], [1], [1], [2], [0, 0, 0, 1, 1, 2], [0], [0]>} : vector<4x16x16xf32>, vector<4x16x32xf32>, vector<4x16x32xf32> -> vector<4x16x32xf32>
    "tpu.trace_stop"() : () -> ()
    %106 = tpu.transpose %105, [1, 0, 2] : vector<4x16x32xf32> -> vector<16x4x32xf32>
    %107 = vector.shape_cast %106 : vector<16x4x32xf32> to vector<16x128xf32>
    %108 = tpu.concatenate %77, %107 in 0 : vector<16x128xf32>, vector<16x128xf32> -> vector<32x128xf32>
    %109 = arith.truncf %108 : vector<32x128xf32> to vector<32x128xbf16>
    %c0_32 = arith.constant 0 : index
    %c0_33 = arith.constant 0 : index
    %c0_34 = arith.constant 0 : index
    %110 = vector.load %arg7[%c0_32, %c0_33, %c0_34] : memref<1x128x128xbf16, #tpu.memory_space<vmem>>, vector<1x128x128xbf16>
    %111 = vector.shape_cast %110 : vector<1x128x128xbf16> to vector<128x128xbf16>
    %cst_35 = arith.constant dense<0.000000e+00> : vector<32x128xf32>
    %112 = tpu.matmul %109, %111, %cst_35 {dimension_numbers = #tpu.dot_dimension_numbers<[1], [0], [0], [1], [0, 0, 1, 1], [], []>} : vector<32x128xbf16>, vector<128x128xbf16>, vector<32x128xf32> -> vector<32x128xf32>
    %c0_36 = arith.constant 0 : index
    %c0_37 = arith.constant 0 : index
    %c0_38 = arith.constant 0 : index
    %113 = vector.load %arg8[%c0_36, %c0_37, %c0_38] : memref<1x1x128xf32, #tpu.memory_space<vmem>>, vector<1x1x128xf32>
    %114 = vector.shape_cast %113 : vector<1x1x128xf32> to vector<1x128xf32>
    %115 = vector.broadcast %114 : vector<1x128xf32> to vector<32x128xf32>
    %116 = arith.addf %112, %115 : vector<32x128xf32>
    %117 = arith.addf %4, %116 : vector<32x128xf32>
    %c0_39 = arith.constant 0 : index
    %c0_40 = arith.constant 0 : index
    %c0_41 = arith.constant 0 : index
    %118 = vector.load %arg9[%c0_39, %c0_40, %c0_41] : memref<1x1x128xf32, #tpu.memory_space<vmem>>, vector<1x1x128xf32>
    %119 = vector.shape_cast %118 : vector<1x1x128xf32> to vector<1x128xf32>
    %c0_42 = arith.constant 0 : index
    %c0_43 = arith.constant 0 : index
    %c0_44 = arith.constant 0 : index
    %120 = vector.load %arg10[%c0_42, %c0_43, %c0_44] : memref<1x1x128xf32, #tpu.memory_space<vmem>>, vector<1x1x128xf32>
    %121 = vector.shape_cast %120 : vector<1x1x128xf32> to vector<1x128xf32>
    %cst_45 = arith.constant dense<0.000000e+00> : vector<32xf32>
    %122 = vector.multi_reduction <add>, %117, %cst_45 [1] : vector<32x128xf32> to vector<32xf32>
    %123 = vector.shape_cast %122 : vector<32xf32> to vector<32x1xf32>
    %cst_46 = arith.constant 1.280000e+02 : f32
    %124 = vector.broadcast %cst_46 : f32 to vector<32x1xf32>
    %125 = arith.divf %123, %124 : vector<32x1xf32>
    %126 = vector.broadcast %125 : vector<32x1xf32> to vector<32x128xf32>
    %127 = arith.subf %117, %126 : vector<32x128xf32>
    %128 = arith.mulf %127, %127 : vector<32x128xf32>
    %cst_47 = arith.constant dense<0.000000e+00> : vector<32xf32>
    %129 = vector.multi_reduction <add>, %128, %cst_47 [1] : vector<32x128xf32> to vector<32xf32>
    %130 = vector.shape_cast %129 : vector<32xf32> to vector<32x1xf32>
    %cst_48 = arith.constant 1.280000e+02 : f32
    %131 = vector.broadcast %cst_48 : f32 to vector<32x1xf32>
    %132 = arith.divf %130, %131 : vector<32x1xf32>
    %133 = vector.broadcast %125 : vector<32x1xf32> to vector<32x128xf32>
    %134 = arith.subf %117, %133 : vector<32x128xf32>
    %cst_49 = arith.constant 9.99999974E-6 : f32
    %135 = vector.broadcast %cst_49 : f32 to vector<32x1xf32>
    %136 = arith.addf %132, %135 : vector<32x1xf32>
    %137 = math.rsqrt %136 : vector<32x1xf32>
    %138 = vector.broadcast %137 : vector<32x1xf32> to vector<32x128xf32>
    %139 = arith.mulf %134, %138 : vector<32x128xf32>
    %140 = vector.broadcast %119 : vector<1x128xf32> to vector<32x128xf32>
    %141 = arith.mulf %139, %140 : vector<32x128xf32>
    %142 = vector.broadcast %121 : vector<1x128xf32> to vector<32x128xf32>
    %143 = arith.addf %141, %142 : vector<32x128xf32>
    %144 = arith.truncf %143 : vector<32x128xf32> to vector<32x128xbf16>
    %c0_50 = arith.constant 0 : index
    %c0_51 = arith.constant 0 : index
    %c0_52 = arith.constant 0 : index
    %145 = vector.load %arg11[%c0_50, %c0_51, %c0_52] : memref<1x128x512xbf16, #tpu.memory_space<vmem>>, vector<1x128x512xbf16>
    %146 = vector.shape_cast %145 : vector<1x128x512xbf16> to vector<128x512xbf16>
    %cst_53 = arith.constant dense<0.000000e+00> : vector<32x512xf32>
    %147 = tpu.matmul %144, %146, %cst_53 {dimension_numbers = #tpu.dot_dimension_numbers<[1], [0], [0], [1], [0, 0, 1, 1], [], []>} : vector<32x128xbf16>, vector<128x512xbf16>, vector<32x512xf32> -> vector<32x512xf32>
    %c0_54 = arith.constant 0 : index
    %c0_55 = arith.constant 0 : index
    %c0_56 = arith.constant 0 : index
    %148 = vector.load %arg12[%c0_54, %c0_55, %c0_56] : memref<1x1x512xf32, #tpu.memory_space<vmem>>, vector<1x1x512xf32>
    %149 = vector.shape_cast %148 : vector<1x1x512xf32> to vector<1x512xf32>
    %150 = vector.broadcast %149 : vector<1x512xf32> to vector<32x512xf32>
    %151 = arith.addf %147, %150 : vector<32x512xf32>
    %cst_57 = arith.constant 1.702000e+00 : f32
    %152 = vector.broadcast %cst_57 : f32 to vector<32x512xf32>
    %153 = arith.mulf %152, %151 : vector<32x512xf32>
    %154 = arith.negf %153 : vector<32x512xf32>
    %155 = math.exp %154 : vector<32x512xf32>
    %cst_58 = arith.constant 1.000000e+00 : f32
    %156 = vector.broadcast %cst_58 : f32 to vector<32x512xf32>
    %157 = arith.addf %156, %155 : vector<32x512xf32>
    %158 = arith.divf %156, %157 : vector<32x512xf32>
    %159 = arith.mulf %151, %158 : vector<32x512xf32>
    %160 = arith.truncf %159 : vector<32x512xf32> to vector<32x512xbf16>
    %c0_59 = arith.constant 0 : index
    %c0_60 = arith.constant 0 : index
    %c0_61 = arith.constant 0 : index
    %161 = vector.load %arg13[%c0_59, %c0_60, %c0_61] : memref<1x512x128xbf16, #tpu.memory_space<vmem>>, vector<1x512x128xbf16>
    %162 = vector.shape_cast %161 : vector<1x512x128xbf16> to vector<512x128xbf16>
    %cst_62 = arith.constant dense<0.000000e+00> : vector<32x128xf32>
    %163 = tpu.matmul %160, %162, %cst_62 {dimension_numbers = #tpu.dot_dimension_numbers<[1], [0], [0], [1], [0, 0, 1, 1], [], []>} : vector<32x512xbf16>, vector<512x128xbf16>, vector<32x128xf32> -> vector<32x128xf32>
    %c0_63 = arith.constant 0 : index
    %c0_64 = arith.constant 0 : index
    %c0_65 = arith.constant 0 : index
    %164 = vector.load %arg14[%c0_63, %c0_64, %c0_65] : memref<1x1x128xf32, #tpu.memory_space<vmem>>, vector<1x1x128xf32>
    %165 = vector.shape_cast %164 : vector<1x1x128xf32> to vector<1x128xf32>
    %166 = vector.broadcast %165 : vector<1x128xf32> to vector<32x128xf32>
    %167 = arith.addf %163, %166 : vector<32x128xf32>
    %168 = arith.addf %117, %167 : vector<32x128xf32>
    %169 = vector.shape_cast %168 : vector<32x128xf32> to vector<2x16x128xf32>
    %c0_66 = arith.constant 0 : index
    %c0_67 = arith.constant 0 : index
    %c0_68 = arith.constant 0 : index
    %170 = vector.load %arg18[%c0_66, %c0_67, %c0_68] : memref<2x16x128xf32, #tpu.memory_space<vmem>>, vector<2x16x128xf32>
    tpu.vector_store %arg18[%c0_66, %c0_67, %c0_68], %169 {strides = array<i32>} : memref<2x16x128xf32, #tpu.memory_space<vmem>>, vector<2x16x128xf32>,
    %c1_i32 = arith.constant 1 : i32
    %171 = arith.cmpi eq, %arg1, %c1_i32 : i32
    %172 = arith.extui %171 : i1 to i32
    %c0_i32_69 = arith.constant 0 : i32
    %173 = arith.cmpi ne, %172, %c0_i32_69 : i32
    scf.if %173 {
      %c0_70 = arith.constant 0 : index
      %c0_71 = arith.constant 0 : index
      %174 = vector.load %arg15[%c0_70, %c0_71] : memref<1x128xf32, #tpu.memory_space<vmem>>, vector<1x128xf32>
      %c0_72 = arith.constant 0 : index
      %c0_73 = arith.constant 0 : index
      %175 = vector.load %arg16[%c0_72, %c0_73] : memref<1x128xf32, #tpu.memory_space<vmem>>, vector<1x128xf32>
      %cst_74 = arith.constant dense<0.000000e+00> : vector<32xf32>
      %176 = vector.multi_reduction <add>, %168, %cst_74 [1] : vector<32x128xf32> to vector<32xf32>
      %177 = vector.shape_cast %176 : vector<32xf32> to vector<32x1xf32>
      %cst_75 = arith.constant 1.280000e+02 : f32
      %178 = vector.broadcast %cst_75 : f32 to vector<32x1xf32>
      %179 = arith.divf %177, %178 : vector<32x1xf32>
      %180 = vector.broadcast %179 : vector<32x1xf32> to vector<32x128xf32>
      %181 = arith.subf %168, %180 : vector<32x128xf32>
      %182 = arith.mulf %181, %181 : vector<32x128xf32>
      %cst_76 = arith.constant dense<0.000000e+00> : vector<32xf32>
      %183 = vector.multi_reduction <add>, %182, %cst_76 [1] : vector<32x128xf32> to vector<32xf32>
      %184 = vector.shape_cast %183 : vector<32xf32> to vector<32x1xf32>
      %cst_77 = arith.constant 1.280000e+02 : f32
      %185 = vector.broadcast %cst_77 : f32 to vector<32x1xf32>
      %186 = arith.divf %184, %185 : vector<32x1xf32>
      %187 = vector.broadcast %179 : vector<32x1xf32> to vector<32x128xf32>
      %188 = arith.subf %168, %187 : vector<32x128xf32>
      %cst_78 = arith.constant 9.99999974E-6 : f32
      %189 = vector.broadcast %cst_78 : f32 to vector<32x1xf32>
      %190 = arith.addf %186, %189 : vector<32x1xf32>
      %191 = math.rsqrt %190 : vector<32x1xf32>
      %192 = vector.broadcast %191 : vector<32x1xf32> to vector<32x128xf32>
      %193 = arith.mulf %188, %192 : vector<32x128xf32>
      %194 = vector.broadcast %174 : vector<1x128xf32> to vector<32x128xf32>
      %195 = arith.mulf %193, %194 : vector<32x128xf32>
      %196 = vector.broadcast %175 : vector<1x128xf32> to vector<32x128xf32>
      %197 = arith.addf %195, %196 : vector<32x128xf32>
      %198 = vector.shape_cast %197 : vector<32x128xf32> to vector<2x16x128xf32>
      %c0_79 = arith.constant 0 : index
      %c0_80 = arith.constant 0 : index
      %c0_81 = arith.constant 0 : index
      %199 = vector.load %arg17[%c0_79, %c0_80, %c0_81] : memref<2x16x128xf32, #tpu.memory_space<vmem>>, vector<2x16x128xf32>
      tpu.vector_store %arg17[%c0_79, %c0_80, %c0_81], %198 {strides = array<i32>} : memref<2x16x128xf32, #tpu.memory_space<vmem>>, vector<2x16x128xf32>,
    } else {
    }
    return
  }
  func.func @transform_0(%arg0: i32, %arg1: i32) -> (i32, i32, i32) {
    %c0_i32 = arith.constant 0 : i32
    %c0_i32_0 = arith.constant 0 : i32
    %c0_i32_1 = arith.constant 0 : i32
    return %arg0, %c0_i32, %c0_i32_0 : i32, i32, i32
  }
  func.func @transform_1(%arg0: i32, %arg1: i32) -> (i32, i32, i32) {
    %c0_i32 = arith.constant 0 : i32
    %c0_i32_0 = arith.constant 0 : i32
    %c0_i32_1 = arith.constant 0 : i32
    return %arg1, %c0_i32, %c0_i32_0 : i32, i32, i32
  }
  func.func @transform_2(%arg0: i32, %arg1: i32) -> (i32, i32, i32) {
    %c0_i32 = arith.constant 0 : i32
    %c0_i32_0 = arith.constant 0 : i32
    %c0_i32_1 = arith.constant 0 : i32
    return %arg1, %c0_i32, %c0_i32_0 : i32, i32, i32
  }
  func.func @transform_3(%arg0: i32, %arg1: i32) -> (i32, i32, i32) {
    %c0_i32 = arith.constant 0 : i32
    %c0_i32_0 = arith.constant 0 : i32
    %c0_i32_1 = arith.constant 0 : i32
    return %arg1, %c0_i32, %c0_i32_0 : i32, i32, i32
  }
  func.func @transform_4(%arg0: i32, %arg1: i32) -> (i32, i32, i32) {
    %c0_i32 = arith.constant 0 : i32
    %c0_i32_0 = arith.constant 0 : i32
    %c0_i32_1 = arith.constant 0 : i32
    return %arg1, %c0_i32, %c0_i32_0 : i32, i32, i32
  }
  func.func @transform_5(%arg0: i32, %arg1: i32) -> (i32, i32, i32) {
    %c0_i32 = arith.constant 0 : i32
    %c0_i32_0 = arith.constant 0 : i32
    %c0_i32_1 = arith.constant 0 : i32
    return %arg1, %c0_i32, %c0_i32_0 : i32, i32, i32
  }
  func.func @transform_6(%arg0: i32, %arg1: i32) -> (i32, i32, i32) {
    %c0_i32 = arith.constant 0 : i32
    %c0_i32_0 = arith.constant 0 : i32
    %c0_i32_1 = arith.constant 0 : i32
    return %arg1, %c0_i32, %c0_i32_0 : i32, i32, i32
  }
  func.func @transform_7(%arg0: i32, %arg1: i32) -> (i32, i32, i32) {
    %c0_i32 = arith.constant 0 : i32
    %c0_i32_0 = arith.constant 0 : i32
    %c0_i32_1 = arith.constant 0 : i32
    return %arg1, %c0_i32, %c0_i32_0 : i32, i32, i32
  }
  func.func @transform_8(%arg0: i32, %arg1: i32) -> (i32, i32, i32) {
    %c0_i32 = arith.constant 0 : i32
    %c0_i32_0 = arith.constant 0 : i32
    %c0_i32_1 = arith.constant 0 : i32
    return %arg1, %c0_i32, %c0_i32_0 : i32, i32, i32
  }
  func.func @transform_9(%arg0: i32, %arg1: i32) -> (i32, i32, i32) {
    %c0_i32 = arith.constant 0 : i32
    %c0_i32_0 = arith.constant 0 : i32
    %c0_i32_1 = arith.constant 0 : i32
    return %arg1, %c0_i32, %c0_i32_0 : i32, i32, i32
  }
  func.func @transform_10(%arg0: i32, %arg1: i32) -> (i32, i32, i32) {
    %c0_i32 = arith.constant 0 : i32
    %c0_i32_0 = arith.constant 0 : i32
    %c0_i32_1 = arith.constant 0 : i32
    return %arg1, %c0_i32, %c0_i32_0 : i32, i32, i32
  }
  func.func @transform_11(%arg0: i32, %arg1: i32) -> (i32, i32, i32) {
    %c0_i32 = arith.constant 0 : i32
    %c0_i32_0 = arith.constant 0 : i32
    %c0_i32_1 = arith.constant 0 : i32
    return %arg1, %c0_i32, %c0_i32_0 : i32, i32, i32
  }
  func.func @transform_12(%arg0: i32, %arg1: i32) -> (i32, i32, i32) {
    %c0_i32 = arith.constant 0 : i32
    %c0_i32_0 = arith.constant 0 : i32
    %c0_i32_1 = arith.constant 0 : i32
    return %arg1, %c0_i32, %c0_i32_0 : i32, i32, i32
  }
  func.func @transform_13(%arg0: i32, %arg1: i32) -> (i32, i32) {
    %c0_i32 = arith.constant 0 : i32
    %c0_i32_0 = arith.constant 0 : i32
    %c0_i32_1 = arith.constant 0 : i32
    return %c0_i32, %c0_i32_0 : i32, i32
  }
  func.func @transform_14(%arg0: i32, %arg1: i32) -> (i32, i32) {
    %c0_i32 = arith.constant 0 : i32
    %c0_i32_0 = arith.constant 0 : i32
    %c0_i32_1 = arith.constant 0 : i32
    return %c0_i32, %c0_i32_0 : i32, i32
  }
  func.func @transform_15(%arg0: i32, %arg1: i32) -> (i32, i32, i32) {
    %c0_i32 = arith.constant 0 : i32
    %c0_i32_0 = arith.constant 0 : i32
    %c0_i32_1 = arith.constant 0 : i32
    return %arg0, %c0_i32, %c0_i32_0 : i32, i32, i32
  }
}

</mosaic_0001>

<llo_original>
// kernel: tpu_custom_call.1
$region0: #{tpu_custom_call.1}
  #allocation0 [shape = 'u32[]', space=smem, size = 0x4, offset = 0x4, fixed_abs, tag = 'smem constant byte address 0x4 - core index']
  #allocation1 [shape = 'u32[144,128]{1,0:T(1,128)}', space=vmem, size = 0x12000, scoped, tag = 'internal scratch']
  #allocation2 [shape = 'f32[2,16,128]{2,1,0:T(8,128)}', space=vmem, size = 0x4000, scoped, tag = 'scratch operand']
  %s0 = inlined_call_operand.hbm [shape: f32[2,16,128], index: 0, kind: input, shape index: {}]
  %s1 = inlined_call_operand.hbm [shape: f32[2,1,128], index: 1, kind: input, shape index: {}]
  %s2 = inlined_call_operand.hbm [shape: f32[2,1,128], index: 2, kind: input, shape index: {}]
  %s3 = inlined_call_operand.hbm [shape: bf16[2,128,384], index: 3, kind: input, shape index: {}]
  %s4 = inlined_call_operand.vmem [shape: f32[2,1,384], index: 4, kind: input, shape index: {}]
  %s5 = inlined_call_operand.hbm [shape: bf16[2,128,128], index: 5, kind: input, shape index: {}]
  %s6 = inlined_call_operand.vmem [shape: f32[2,1,128], index: 6, kind: input, shape index: {}]
  %s7 = inlined_call_operand.vmem [shape: f32[2,1,128], index: 7, kind: input, shape index: {}]
  %s8 = inlined_call_operand.vmem [shape: f32[2,1,128], index: 8, kind: input, shape index: {}]
  %s9 = inlined_call_operand.hbm [shape: bf16[2,128,512], index: 9, kind: input, shape index: {}]
  %s10 = inlined_call_operand.vmem [shape: f32[2,1,512], index: 10, kind: input, shape index: {}]
  %s11 = inlined_call_operand.hbm [shape: bf16[2,512,128], index: 11, kind: input, shape index: {}]
  %s12 = inlined_call_operand.vmem [shape: f32[2,1,128], index: 12, kind: input, shape index: {}]
  %s13 = inlined_call_operand.vmem [shape: f32[1,128], index: 13, kind: input, shape index: {}]
  %s14 = inlined_call_operand.vmem [shape: f32[1,128], index: 14, kind: input, shape index: {}]
  %s15 = inlined_call_operand.hbm [shape: f32[2,16,128], index: 15, kind: output, shape index: {}]
  %s16 = sld [smem:[#allocation0]]
  $region129: #{tpu_custom_call.1} parent=0
    _
  %s18 = ssub.s32 1, %s16
  %s19 = scalar_select 0, %s18, %s16
  $region1: #{tpu_custom_call.1} parent=0
    #allocation3 [shape = 'u8[16384]{0}', space=vmem, size = 0x4000, scoped, tag = 'input window, operand 0, single buffered']
    #allocation4 [shape = 's32[2]{0}', space=sflag, size = 0x8, scoped, tag = 'scoped memory for tpu_custom_call.1']
    #allocation5 [shape = 's32[2]{0}', space=sflag, size = 0x8, scoped, tag = 'scoped memory for tpu_custom_call.1']
    #allocation6 [shape = 'u8[1024]{0}', space=vmem, size = 0x400, scoped, tag = 'input window, operand 1']
    #allocation7 [shape = 's32[2]{0}', space=sflag, size = 0x8, scoped, tag = 'scoped memory for tpu_custom_call.1']
    #allocation8 [shape = 'u8[1024]{0}', space=vmem, size = 0x400, scoped, tag = 'input window, operand 2']
    #allocation9 [shape = 'u8[196608]{0}', space=vmem, size = 0x30000, scoped, tag = 'input window, operand 3']
    #allocation10 [shape = 's32[2]{0}', space=sflag, size = 0x8, scoped, tag = 'scoped memory for tpu_custom_call.1']
    #allocation11 [shape = 'u8[65536]{0}', space=vmem, size = 0x10000, scoped, tag = 'input window, operand 5']
    #allocation12 [shape = 'u8[262144]{0}', space=vmem, size = 0x40000, scoped, tag = 'input window, operand 9']
    #allocation13 [shape = 's32[2]{0}', space=sflag, size = 0x8, scoped, tag = 'scoped memory for tpu_custom_call.1']
    #allocation14 [shape = 'u8[262144]{0}', space=vmem, size = 0x40000, scoped, tag = 'input window, operand 11']
    #allocation15 [shape = 'u8[16384]{0}', space=vmem, size = 0x4000, scoped, tag = 'output window, operand 0, single buffered']
    %20 = vsyncpa [#allocation4], 0
    %21 = vsyncpa [#allocation7], 0
    %s22 = scalar_lea.sflag [#allocation7], 1
    %23 = vsyncpa %s22, 0
    %24 = vsyncpa [#allocation10], 0
    %s25 = scalar_lea.sflag [#allocation10], 1
    %26 = vsyncpa %s25, 0
    %27 = vsyncpa [#allocation13], 0
    %s28 = scalar_lea.sflag [#allocation13], 1
    %29 = vsyncpa %s28, 0
    %30 = vsyncpa [#allocation5], 0
    loop: start=0, step=1, limit=4
    $region2: #{tpu_custom_call.1} parent=1 // loop_pre_header
      _
    $region3: #{tpu_custom_call.1} parent=1 // loop_header
      %s32 = sphi 0, %s36
      %p33 = scmp.ge.s32.totalorder %s32, 4
      %s39 = sphi 0, %s51
      %s40 = sphi 0, %s47
      %s41 = sphi 0, %s39
      %s42 = sphi 0, %s40
      %s43 = sphi 0, %s41
      %s44 = sphi 0, %s42
      %s54 = sphi 0, %s56
      %s57 = sphi 0, %s54
      %s58 = sphi 0, %s57
      %s74 = sphi 0, %s58
      %s80 = sphi 0, %s82
      %s83 = sphi 0, %s80
      %s84 = sphi 0, %s83
      %s100 = sphi 0, %s84
      %s106 = sphi 0, %s108
      %s109 = sphi 0, %s106
      %s110 = sphi 0, %s109
      %s126 = sphi 0, %s110
      %s132 = sphi 0, %s134
      %s135 = sphi 0, %s132
      %s136 = sphi 0, %s135
      %s152 = sphi 0, %s136
      %s158 = sphi 0, %s160
      %s161 = sphi 0, %s158
      %s162 = sphi 0, %s161
      %s178 = sphi 0, %s162
      %s184 = sphi 0, %s186
      %s187 = sphi 0, %s184
      %s188 = sphi 0, %s187
      %s204 = sphi 0, %s188
      %s210 = sphi 0, %s212
      %s213 = sphi 0, %s210
      %s214 = sphi 0, %s213
      %s230 = sphi 0, %s214
      %s236 = sphi 0, %s238
      %s239 = sphi 0, %s236
      %s240 = sphi 0, %s239
      %s256 = sphi 0, %s240
      %s262 = sphi 0, %s264
      %s265 = sphi 0, %s262
      %s266 = sphi 0, %s265
      %s282 = sphi 0, %s266
      %s288 = sphi 0, %s290
      %s291 = sphi 0, %s288
      %s292 = sphi 0, %s291
      %s308 = sphi 0, %s292
      %s314 = sphi 0, %s316
      %s317 = sphi 0, %s314
      %s318 = sphi 0, %s317
      %s334 = sphi 0, %s318
      %s340 = sphi 0, %s342
      %s343 = sphi 0, %s340
      %s344 = sphi 0, %s343
      %s360 = sphi 0, %s344
      %s366 = sphi 0, %s368
      %s369 = sphi 0, %s366
      %s370 = sphi 0, %s369
      %s386 = sphi 0, %s370
      %s390 = sphi 0, %s390
      %s392 = sphi 0, %s390
      %s393 = sphi 0, %s392
      %s407 = sphi 0, %s393
      %s411 = sphi 0, %s411
      %s413 = sphi 0, %s411
      %s414 = sphi 0, %s413
      %s428 = sphi 0, %s414
      %s434 = sphi 0, %s436
      %s437 = sphi 0, %s434
      %s438 = sphi 0, %s437
      %s454 = sphi 0, %s438
    $region4: #{tpu_custom_call.1} parent=1 // loop_header_branch
      %35 = sbr.rel (%p33) target = $region8
    $region5: #{tpu_custom_call.1} parent=1 // loop_body
      %s37 = ssub.s32 %s32, 1
      %s38 = ssub.s32 %s32, 2
      %s45 = sadd.s32 1, %s40
      %p46 = scmp.ge.s32.totalorder %s45, 2
      %s47 = scalar_select %p46, 0, %s45
      %s48 = sadd.s32 1, %s39
      %s49 = scalar_select %p46, %s48, %s39
      %p50 = scmp.ge.s32.totalorder %s49, 1
      %s51 = scalar_select %p50, 0, %s49
      %s52 = ssub.s32 %s39, %s51
      %p53 = scmp.eq.s32.totalorder %s52, 0
      %s55 = sadd.s32 %s54, 1
      %s56 = scalar_select %p53, %s54, %s55
      %p59 = pneg %p53
      %p60 = scmp.eq.s32.totalorder %s32, 1
      %p61 = por %p59, %p60
      %p62 = scmp.ne.s32.totalorder %s54, %s57
      %p63 = scmp.eq.s32.totalorder %s32, 0
      %p64 = por %p62, %p63
      %p65 = scmp.ne.s32.totalorder %s54, %s57
      %p66 = scmp.eq.s32.totalorder %s37, 1
      %p67 = por %p65, %p66
      %p68 = scmp.ne.s32.totalorder %s57, %s58
      %p69 = scmp.eq.s32.totalorder %s37, 0
      %p70 = por %p68, %p69
      %p71 = scmp.ne.s32.totalorder %s57, %s58
      %p72 = scmp.eq.s32.totalorder %s38, 1
      %p73 = por %p71, %p72
      %p75 = scmp.ne.s32.totalorder %s58, %s74
      %p76 = scmp.eq.s32.totalorder %s38, 0
      %p77 = por %p75, %p76
      %s78 = ssub.s32 %s40, %s47
      %p79 = scmp.eq.s32.totalorder %s78, 0
      %s81 = sadd.s32 %s80, 1
      %s82 = scalar_select %p79, %s80, %s81
      %p85 = pneg %p79
      %p86 = scmp.eq.s32.totalorder %s32, 1
      %p87 = por %p85, %p86
      %p88 = scmp.ne.s32.totalorder %s80, %s83
      %p89 = scmp.eq.s32.totalorder %s32, 0
      %p90 = por %p88, %p89
      %p91 = scmp.ne.s32.totalorder %s80, %s83
      %p92 = scmp.eq.s32.totalorder %s37, 1
      %p93 = por %p91, %p92
      %p94 = scmp.ne.s32.totalorder %s83, %s84
      %p95 = scmp.eq.s32.totalorder %s37, 0
      %p96 = por %p94, %p95
      %p97 = scmp.ne.s32.totalorder %s83, %s84
      %p98 = scmp.eq.s32.totalorder %s38, 1
      %p99 = por %p97, %p98
      %p101 = scmp.ne.s32.totalorder %s84, %s100
      %p102 = scmp.eq.s32.totalorder %s38, 0
      %p103 = por %p101, %p102
      %s104 = ssub.s32 %s40, %s47
      %p105 = scmp.eq.s32.totalorder %s104, 0
      %s107 = sadd.s32 %s106, 1
      %s108 = scalar_select %p105, %s106, %s107
      %p111 = pneg %p105
      %p112 = scmp.eq.s32.totalorder %s32, 1
      %p113 = por %p111, %p112
      %p114 = scmp.ne.s32.totalorder %s106, %s109
      %p115 = scmp.eq.s32.totalorder %s32, 0
      %p116 = por %p114, %p115
      %p117 = scmp.ne.s32.totalorder %s106, %s109
      %p118 = scmp.eq.s32.totalorder %s37, 1
      %p119 = por %p117, %p118
      %p120 = scmp.ne.s32.totalorder %s109, %s110
      %p121 = scmp.eq.s32.totalorder %s37, 0
      %p122 = por %p120, %p121
      %p123 = scmp.ne.s32.totalorder %s109, %s110
      %p124 = scmp.eq.s32.totalorder %s38, 1
      %p125 = por %p123, %p124
      %p127 = scmp.ne.s32.totalorder %s110, %s126
      %p128 = scmp.eq.s32.totalorder %s38, 0
      %p129 = por %p127, %p128
      %s130 = ssub.s32 %s40, %s47
      %p131 = scmp.eq.s32.totalorder %s130, 0
      %s133 = sadd.s32 %s132, 1
      %s134 = scalar_select %p131, %s132, %s133
      %p137 = pneg %p131
      %p138 = scmp.eq.s32.totalorder %s32, 1
      %p139 = por %p137, %p138
      %p140 = scmp.ne.s32.totalorder %s132, %s135
      %p141 = scmp.eq.s32.totalorder %s32, 0
      %p142 = por %p140, %p141
      %p143 = scmp.ne.s32.totalorder %s132, %s135
      %p144 = scmp.eq.s32.totalorder %s37, 1
      %p145 = por %p143, %p144
      %p146 = scmp.ne.s32.totalorder %s135, %s136
      %p147 = scmp.eq.s32.totalorder %s37, 0
      %p148 = por %p146, %p147
      %p149 = scmp.ne.s32.totalorder %s135, %s136
      %p150 = scmp.eq.s32.totalorder %s38, 1
      %p151 = por %p149, %p150
      %p153 = scmp.ne.s32.totalorder %s136, %s152
      %p154 = scmp.eq.s32.totalorder %s38, 0
      %p155 = por %p153, %p154
      %s156 = ssub.s32 %s40, %s47
      %p157 = scmp.eq.s32.totalorder %s156, 0
      %s159 = sadd.s32 %s158, 1
      %s160 = scalar_select %p157, %s158, %s159
      %p163 = pneg %p157
      %p164 = scmp.eq.s32.totalorder %s32, 1
      %p165 = por %p163, %p164
      %p166 = scmp.ne.s32.totalorder %s158, %s161
      %p167 = scmp.eq.s32.totalorder %s32, 0
      %p168 = por %p166, %p167
      %p169 = scmp.ne.s32.totalorder %s158, %s161
      %p170 = scmp.eq.s32.totalorder %s37, 1
      %p171 = por %p169, %p170
      %p172 = scmp.ne.s32.totalorder %s161, %s162
      %p173 = scmp.eq.s32.totalorder %s37, 0
      %p174 = por %p172, %p173
      %p175 = scmp.ne.s32.totalorder %s161, %s162
      %p176 = scmp.eq.s32.totalorder %s38, 1
      %p177 = por %p175, %p176
      %p179 = scmp.ne.s32.totalorder %s162, %s178
      %p180 = scmp.eq.s32.totalorder %s38, 0
      %p181 = por %p179, %p180
      %s182 = ssub.s32 %s40, %s47
      %p183 = scmp.eq.s32.totalorder %s182, 0
      %s185 = sadd.s32 %s184, 1
      %s186 = scalar_select %p183, %s184, %s185
      %p189 = pneg %p183
      %p190 = scmp.eq.s32.totalorder %s32, 1
      %p191 = por %p189, %p190
      %p192 = scmp.ne.s32.totalorder %s184, %s187
      %p193 = scmp.eq.s32.totalorder %s32, 0
      %p194 = por %p192, %p193
      %p195 = scmp.ne.s32.totalorder %s184, %s187
      %p196 = scmp.eq.s32.totalorder %s37, 1
      %p197 = por %p195, %p196
      %p198 = scmp.ne.s32.totalorder %s187, %s188
      %p199 = scmp.eq.s32.totalorder %s37, 0
      %p200 = por %p198, %p199
      %p201 = scmp.ne.s32.totalorder %s187, %s188
      %p202 = scmp.eq.s32.totalorder %s38, 1
      %p203 = por %p201, %p202
      %p205 = scmp.ne.s32.totalorder %s188, %s204
      %p206 = scmp.eq.s32.totalorder %s38, 0
      %p207 = por %p205, %p206
      %s208 = ssub.s32 %s40, %s47
      %p209 = scmp.eq.s32.totalorder %s208, 0
      %s211 = sadd.s32 %s210, 1
      %s212 = scalar_select %p209, %s210, %s211
      %p215 = pneg %p209
      %p216 = scmp.eq.s32.totalorder %s32, 1
      %p217 = por %p215, %p216
      %p218 = scmp.ne.s32.totalorder %s210, %s213
      %p219 = scmp.eq.s32.totalorder %s32, 0
      %p220 = por %p218, %p219
      %p221 = scmp.ne.s32.totalorder %s210, %s213
      %p222 = scmp.eq.s32.totalorder %s37, 1
      %p223 = por %p221, %p222
      %p224 = scmp.ne.s32.totalorder %s213, %s214
      %p225 = scmp.eq.s32.totalorder %s37, 0
      %p226 = por %p224, %p225
      %p227 = scmp.ne.s32.totalorder %s213, %s214
      %p228 = scmp.eq.s32.totalorder %s38, 1
      %p229 = por %p227, %p228
      %p231 = scmp.ne.s32.totalorder %s214, %s230
      %p232 = scmp.eq.s32.totalorder %s38, 0
      %p233 = por %p231, %p232
      %s234 = ssub.s32 %s40, %s47
      %p235 = scmp.eq.s32.totalorder %s234, 0
      %s237 = sadd.s32 %s236, 1
      %s238 = scalar_select %p235, %s236, %s237
      %p241 = pneg %p235
      %p242 = scmp.eq.s32.totalorder %s32, 1
      %p243 = por %p241, %p242
      %p244 = scmp.ne.s32.totalorder %s236, %s239
      %p245 = scmp.eq.s32.totalorder %s32, 0
      %p246 = por %p244, %p245
      %p247 = scmp.ne.s32.totalorder %s236, %s239
      %p248 = scmp.eq.s32.totalorder %s37, 1
      %p249 = por %p247, %p248
      %p250 = scmp.ne.s32.totalorder %s239, %s240
      %p251 = scmp.eq.s32.totalorder %s37, 0
      %p252 = por %p250, %p251
      %p253 = scmp.ne.s32.totalorder %s239, %s240
      %p254 = scmp.eq.s32.totalorder %s38, 1
      %p255 = por %p253, %p254
      %p257 = scmp.ne.s32.totalorder %s240, %s256
      %p258 = scmp.eq.s32.totalorder %s38, 0
      %p259 = por %p257, %p258
      %s260 = ssub.s32 %s40, %s47
      %p261 = scmp.eq.s32.totalorder %s260, 0
      %s263 = sadd.s32 %s262, 1
      %s264 = scalar_select %p261, %s262, %s263
      %p267 = pneg %p261
      %p268 = scmp.eq.s32.totalorder %s32, 1
      %p269 = por %p267, %p268
      %p270 = scmp.ne.s32.totalorder %s262, %s265
      %p271 = scmp.eq.s32.totalorder %s32, 0
      %p272 = por %p270, %p271
      %p273 = scmp.ne.s32.totalorder %s262, %s265
      %p274 = scmp.eq.s32.totalorder %s37, 1
      %p275 = por %p273, %p274
      %p276 = scmp.ne.s32.totalorder %s265, %s266
      %p277 = scmp.eq.s32.totalorder %s37, 0
      %p278 = por %p276, %p277
      %p279 = scmp.ne.s32.totalorder %s265, %s266
      %p280 = scmp.eq.s32.totalorder %s38, 1
      %p281 = por %p279, %p280
      %p283 = scmp.ne.s32.totalorder %s266, %s282
      %p284 = scmp.eq.s32.totalorder %s38, 0
      %p285 = por %p283, %p284
      %s286 = ssub.s32 %s40, %s47
      %p287 = scmp.eq.s32.totalorder %s286, 0
      %s289 = sadd.s32 %s288, 1
      %s290 = scalar_select %p287, %s288, %s289
      %p293 = pneg %p287
      %p294 = scmp.eq.s32.totalorder %s32, 1
      %p295 = por %p293, %p294
      %p296 = scmp.ne.s32.totalorder %s288, %s291
      %p297 = scmp.eq.s32.totalorder %s32, 0
      %p298 = por %p296, %p297
      %p299 = scmp.ne.s32.totalorder %s288, %s291
      %p300 = scmp.eq.s32.totalorder %s37, 1
      %p301 = por %p299, %p300
      %p302 = scmp.ne.s32.totalorder %s291, %s292
      %p303 = scmp.eq.s32.totalorder %s37, 0
      %p304 = por %p302, %p303
      %p305 = scmp.ne.s32.totalorder %s291, %s292
      %p306 = scmp.eq.s32.totalorder %s38, 1
      %p307 = por %p305, %p306
      %p309 = scmp.ne.s32.totalorder %s292, %s308
      %p310 = scmp.eq.s32.totalorder %s38, 0
      %p311 = por %p309, %p310
      %s312 = ssub.s32 %s40, %s47
      %p313 = scmp.eq.s32.totalorder %s312, 0
      %s315 = sadd.s32 %s314, 1
      %s316 = scalar_select %p313, %s314, %s315
      %p319 = pneg %p313
      %p320 = scmp.eq.s32.totalorder %s32, 1
      %p321 = por %p319, %p320
      %p322 = scmp.ne.s32.totalorder %s314, %s317
      %p323 = scmp.eq.s32.totalorder %s32, 0
      %p324 = por %p322, %p323
      %p325 = scmp.ne.s32.totalorder %s314, %s317
      %p326 = scmp.eq.s32.totalorder %s37, 1
      %p327 = por %p325, %p326
      %p328 = scmp.ne.s32.totalorder %s317, %s318
      %p329 = scmp.eq.s32.totalorder %s37, 0
      %p330 = por %p328, %p329
      %p331 = scmp.ne.s32.totalorder %s317, %s318
      %p332 = scmp.eq.s32.totalorder %s38, 1
      %p333 = por %p331, %p332
      %p335 = scmp.ne.s32.totalorder %s318, %s334
      %p336 = scmp.eq.s32.totalorder %s38, 0
      %p337 = por %p335, %p336
      %s338 = ssub.s32 %s40, %s47
      %p339 = scmp.eq.s32.totalorder %s338, 0
      %s341 = sadd.s32 %s340, 1
      %s342 = scalar_select %p339, %s340, %s341
      %p345 = pneg %p339
      %p346 = scmp.eq.s32.totalorder %s32, 1
      %p347 = por %p345, %p346
      %p348 = scmp.ne.s32.totalorder %s340, %s343
      %p349 = scmp.eq.s32.totalorder %s32, 0
      %p350 = por %p348, %p349
      %p351 = scmp.ne.s32.totalorder %s340, %s343
      %p352 = scmp.eq.s32.totalorder %s37, 1
      %p353 = por %p351, %p352
      %p354 = scmp.ne.s32.totalorder %s343, %s344
      %p355 = scmp.eq.s32.totalorder %s37, 0
      %p356 = por %p354, %p355
      %p357 = scmp.ne.s32.totalorder %s343, %s344
      %p358 = scmp.eq.s32.totalorder %s38, 1
      %p359 = por %p357, %p358
      %p361 = scmp.ne.s32.totalorder %s344, %s360
      %p362 = scmp.eq.s32.totalorder %s38, 0
      %p363 = por %p361, %p362
      %s364 = ssub.s32 %s40, %s47
      %p365 = scmp.eq.s32.totalorder %s364, 0
      %s367 = sadd.s32 %s366, 1
      %s368 = scalar_select %p365, %s366, %s367
      %p371 = pneg %p365
      %p372 = scmp.eq.s32.totalorder %s32, 1
      %p373 = por %p371, %p372
      %p374 = scmp.ne.s32.totalorder %s366, %s369
      %p375 = scmp.eq.s32.totalorder %s32, 0
      %p376 = por %p374, %p375
      %p377 = scmp.ne.s32.totalorder %s366, %s369
      %p378 = scmp.eq.s32.totalorder %s37, 1
      %p379 = por %p377, %p378
      %p380 = scmp.ne.s32.totalorder %s369, %s370
      %p381 = scmp.eq.s32.totalorder %s37, 0
      %p382 = por %p380, %p381
      %p383 = scmp.ne.s32.totalorder %s369, %s370
      %p384 = scmp.eq.s32.totalorder %s38, 1
      %p385 = por %p383, %p384
      %p387 = scmp.ne.s32.totalorder %s370, %s386
      %p388 = scmp.eq.s32.totalorder %s38, 0
      %p389 = por %p387, %p388
      %s391 = sadd.s32 %s390, 1
      %p394 = scmp.eq.s32.totalorder %s32, 1
      %p395 = scmp.ne.s32.totalorder %s390, %s392
      %p396 = scmp.eq.s32.totalorder %s32, 0
      %p397 = por %p395, %p396
      %p398 = scmp.ne.s32.totalorder %s390, %s392
      %p399 = scmp.eq.s32.totalorder %s37, 1
      %p400 = por %p398, %p399
      %p401 = scmp.ne.s32.totalorder %s392, %s393
      %p402 = scmp.eq.s32.totalorder %s37, 0
      %p403 = por %p401, %p402
      %p404 = scmp.ne.s32.totalorder %s392, %s393
      %p405 = scmp.eq.s32.totalorder %s38, 1
      %p406 = por %p404, %p405
      %p408 = scmp.ne.s32.totalorder %s393, %s407
      %p409 = scmp.eq.s32.totalorder %s38, 0
      %p410 = por %p408, %p409
      %s412 = sadd.s32 %s411, 1
      %p415 = scmp.eq.s32.totalorder %s32, 1
      %p416 = scmp.ne.s32.totalorder %s411, %s413
      %p417 = scmp.eq.s32.totalorder %s32, 0
      %p418 = por %p416, %p417
      %p419 = scmp.ne.s32.totalorder %s411, %s413
      %p420 = scmp.eq.s32.totalorder %s37, 1
      %p421 = por %p419, %p420
      %p422 = scmp.ne.s32.totalorder %s413, %s414
      %p423 = scmp.eq.s32.totalorder %s37, 0
      %p424 = por %p422, %p423
      %p425 = scmp.ne.s32.totalorder %s413, %s414
      %p426 = scmp.eq.s32.totalorder %s38, 1
      %p427 = por %p425, %p426
      %p429 = scmp.ne.s32.totalorder %s414, %s428
      %p430 = scmp.eq.s32.totalorder %s38, 0
      %p431 = por %p429, %p430
      %s432 = ssub.s32 %s39, %s51
      %p433 = scmp.eq.s32.totalorder %s432, 0
      %s435 = sadd.s32 %s434, 1
      %s436 = scalar_select %p433, %s434, %s435
      %p439 = pneg %p433
      %p440 = scmp.eq.s32.totalorder %s32, 1
      %p441 = por %p439, %p440
      %p442 = scmp.ne.s32.totalorder %s434, %s437
      %p443 = scmp.eq.s32.totalorder %s32, 0
      %p444 = por %p442, %p443
      %p445 = scmp.ne.s32.totalorder %s434, %s437
      %p446 = scmp.eq.s32.totalorder %s37, 1
      %p447 = por %p445, %p446
      %p448 = scmp.ne.s32.totalorder %s437, %s438
      %p449 = scmp.eq.s32.totalorder %s37, 0
      %p450 = por %p448, %p449
      %p451 = scmp.ne.s32.totalorder %s437, %s438
      %p452 = scmp.eq.s32.totalorder %s38, 1
      %p453 = por %p451, %p452
      %p455 = scmp.ne.s32.totalorder %s438, %s454
      %p456 = scmp.eq.s32.totalorder %s38, 0
      %p457 = por %p455, %p456
      %p458 = scmp.le.s32.totalorder 1, %s32
      %p459 = scmp.lt.s32.totalorder %s32, 3
      %p460 = pnand %p458, %p459
      %p461 = pneg %p460
      // Predicated region
      $region9: #{tpu_custom_call.1} parent=5 // pred_check
        _
      $region10: #{tpu_custom_call.1} parent=5 // pred_check_branch
        %463 = sbr.rel (%p460) target = $region12
      $region11: #{tpu_custom_call.1} parent=5 // pred_region
        %s464 = ssub.s32 %s32, 1
        // Predicated region
        $region13: #{tpu_custom_call.1} parent=11 // pred_check
          %p465 = pneg %p70
        $region14: #{tpu_custom_call.1} parent=11 // pred_check_branch
          %467 = sbr.rel (%p465) target = $region16
        $region15: #{tpu_custom_call.1} parent=11 // pred_region
          %s468 = smul.u32 2, %s41
          %s470 = ssub.s32 512, 512
          %471 = vsyncadd [#allocation4], %s470
          %s472 = smul.addr %s468, 2
          %s473 = smul.addr %s472, 128
          %s474 = scalar_lea.hbm %s0, %s473
          %s475 = sshll.u32 [#allocation3], 4
          %s476 = int_to_ptr.vmem [resolvable:$true] %s475
          %481 = dma.hbm_to_vmem [thread:$0]  %s474, 512, %s476, [#allocation4], 128, 128, 8
        $region16: #{tpu_custom_call.1} parent=11 // pred_fallthru
          _
        // Predicated region
        $region17: #{tpu_custom_call.1} parent=11 // pred_check
          %p482 = pneg %p403
        $region18: #{tpu_custom_call.1} parent=11 // pred_check_branch
          %484 = sbr.rel (%p482) target = $region20
        $region19: #{tpu_custom_call.1} parent=11 // pred_region
          _
        $region20: #{tpu_custom_call.1} parent=11 // pred_fallthru
          _
        // Predicated region
        $region21: #{tpu_custom_call.1} parent=11 // pred_check
          %p485 = pneg %p424
        $region22: #{tpu_custom_call.1} parent=11 // pred_check_branch
          %487 = sbr.rel (%p485) target = $region24
        $region23: #{tpu_custom_call.1} parent=11 // pred_region
          _
        $region24: #{tpu_custom_call.1} parent=11 // pred_fallthru
          _
      $region12: #{tpu_custom_call.1} parent=5 // pred_fallthru
        _
      %p488 = scmp.lt.s32.totalorder %s32, 2
      // Predicated region
      $region25: #{tpu_custom_call.1} parent=5 // pred_check
        %p489 = pneg %p488
      $region26: #{tpu_custom_call.1} parent=5 // pred_check_branch
        %491 = sbr.rel (%p489) target = $region28
      $region27: #{tpu_custom_call.1} parent=5 // pred_region
        // Predicated region
        $region29: #{tpu_custom_call.1} parent=27 // pred_check
          %p492 = pneg %p90
        $region30: #{tpu_custom_call.1} parent=27 // pred_check_branch
          %494 = sbr.rel (%p492) target = $region32
        $region31: #{tpu_custom_call.1} parent=27 // pred_region
          %s495 = sand.u32 %s32, 1
          %s496 = scalar_lea.sflag [#allocation7], %s495
          %s497 = sand.u32 %s80, 1
          %s498 = scalar_lea.vmem [#allocation6], %s497
          %s500 = ssub.s32 16, 16
          %501 = vsyncadd %s496, %s500
          %s502 = smul.addr %s40, 16
          %s503 = scalar_lea.hbm %s1, %s502
          %s505 = sshll.u32 %s498, 4
          %s506 = int_to_ptr.vmem [resolvable:$true] %s505
          %508 = dma.hbm_to_vmem [thread:$0]  %s503, 16, %s506, %s496
        $region32: #{tpu_custom_call.1} parent=27 // pred_fallthru
          _
        // Predicated region
        $region33: #{tpu_custom_call.1} parent=27 // pred_check
          %p509 = pneg %p116
        $region34: #{tpu_custom_call.1} parent=27 // pred_check_branch
          %511 = sbr.rel (%p509) target = $region36
        $region35: #{tpu_custom_call.1} parent=27 // pred_region
          %s512 = sand.u32 %s32, 1
          %s513 = scalar_lea.sflag [#allocation7], %s512
          %s514 = sand.u32 %s106, 1
          %s515 = scalar_lea.vmem [#allocation8], %s514
          %s517 = ssub.s32 16, 16
          %518 = vsyncadd %s513, %s517
          %s519 = smul.addr %s40, 16
          %s520 = scalar_lea.hbm %s2, %s519
          %s522 = sshll.u32 %s515, 4
          %s523 = int_to_ptr.vmem [resolvable:$true] %s522
          %525 = dma.hbm_to_vmem [thread:$0]  %s520, 16, %s523, %s513
        $region36: #{tpu_custom_call.1} parent=27 // pred_fallthru
          _
        // Predicated region
        $region37: #{tpu_custom_call.1} parent=27 // pred_check
          %p526 = pneg %p142
        $region38: #{tpu_custom_call.1} parent=27 // pred_check_branch
          %528 = sbr.rel (%p526) target = $region40
        $region39: #{tpu_custom_call.1} parent=27 // pred_region
          %s529 = sand.u32 %s32, 1
          %s530 = scalar_lea.sflag [#allocation10], %s529
          %s531 = sand.u32 %s132, 1
          %s532 = smul.addr %s531, 192
          %s533 = scalar_lea.vmem [#allocation9], %s532
          %s535 = ssub.s32 3072, 3072
          %536 = vsyncadd %s530, %s535
          %s537 = smul.addr %s40, 48
          %s538 = smul.addr %s537, 64
          %s539 = scalar_lea.hbm %s3, %s538
          %s540 = sshll.u32 %s533, 4
          %s541 = int_to_ptr.vmem [resolvable:$true] %s540
          %546 = dma.hbm_to_vmem [thread:$0]  %s539, 3072, %s541, %s530, 192, 192, 12
        $region40: #{tpu_custom_call.1} parent=27 // pred_fallthru
          _
        // Predicated region
        $region41: #{tpu_custom_call.1} parent=27 // pred_check
          %p547 = pneg %p168
        $region42: #{tpu_custom_call.1} parent=27 // pred_check_branch
          %549 = sbr.rel (%p547) target = $region44
        $region43: #{tpu_custom_call.1} parent=27 // pred_region
          %p550 = scmp.lt.s32.totalorder %s40, 1
          %s551 = scalar_select %p550, %s40, 1
          %s552 = smul.addr %s551, 3
          %s553 = scalar_lea.vmem %s4, %s552
        $region44: #{tpu_custom_call.1} parent=27 // pred_fallthru
          _
        // Predicated region
        $region45: #{tpu_custom_call.1} parent=27 // pred_check
          %p554 = pneg %p194
        $region46: #{tpu_custom_call.1} parent=27 // pred_check_branch
          %556 = sbr.rel (%p554) target = $region48
        $region47: #{tpu_custom_call.1} parent=27 // pred_region
          %s557 = sand.u32 %s32, 1
          %s558 = scalar_lea.sflag [#allocation10], %s557
          %s559 = sand.u32 %s184, 1
          %s560 = smul.addr %s559, 64
          %s561 = scalar_lea.vmem [#allocation11], %s560
          %s563 = ssub.s32 1024, 1024
          %564 = vsyncadd %s558, %s563
          %s565 = smul.addr %s40, 16
          %s566 = smul.addr %s565, 64
          %s567 = scalar_lea.hbm %s5, %s566
          %s568 = sshll.u32 %s561, 4
          %s569 = int_to_ptr.vmem [resolvable:$true] %s568
          %574 = dma.hbm_to_vmem [thread:$0]  %s567, 1024, %s569, %s558, 64, 64, 4
        $region48: #{tpu_custom_call.1} parent=27 // pred_fallthru
          _
        // Predicated region
        $region49: #{tpu_custom_call.1} parent=27 // pred_check
          %p575 = pneg %p220
        $region50: #{tpu_custom_call.1} parent=27 // pred_check_branch
          %577 = sbr.rel (%p575) target = $region52
        $region51: #{tpu_custom_call.1} parent=27 // pred_region
          %p578 = scmp.lt.s32.totalorder %s40, 1
          %s579 = scalar_select %p578, %s40, 1
          %s580 = scalar_lea.vmem %s6, %s579
        $region52: #{tpu_custom_call.1} parent=27 // pred_fallthru
          _
        // Predicated region
        $region53: #{tpu_custom_call.1} parent=27 // pred_check
          %p581 = pneg %p246
        $region54: #{tpu_custom_call.1} parent=27 // pred_check_branch
          %583 = sbr.rel (%p581) target = $region56
        $region55: #{tpu_custom_call.1} parent=27 // pred_region
          %p584 = scmp.lt.s32.totalorder %s40, 1
          %s585 = scalar_select %p584, %s40, 1
          %s586 = scalar_lea.vmem %s7, %s585
        $region56: #{tpu_custom_call.1} parent=27 // pred_fallthru
          _
        // Predicated region
        $region57: #{tpu_custom_call.1} parent=27 // pred_check
          %p587 = pneg %p272
        $region58: #{tpu_custom_call.1} parent=27 // pred_check_branch
          %589 = sbr.rel (%p587) target = $region60
        $region59: #{tpu_custom_call.1} parent=27 // pred_region
          %p590 = scmp.lt.s32.totalorder %s40, 1
          %s591 = scalar_select %p590, %s40, 1
          %s592 = scalar_lea.vmem %s8, %s591
        $region60: #{tpu_custom_call.1} parent=27 // pred_fallthru
          _
        // Predicated region
        $region61: #{tpu_custom_call.1} parent=27 // pred_check
          %p593 = pneg %p298
        $region62: #{tpu_custom_call.1} parent=27 // pred_check_branch
          %595 = sbr.rel (%p593) target = $region64
        $region63: #{tpu_custom_call.1} parent=27 // pred_region
          %s596 = sand.u32 %s32, 1
          %s597 = scalar_lea.sflag [#allocation13], %s596
          %s598 = sand.u32 %s288, 1
          %s599 = smul.addr %s598, 256
          %s600 = scalar_lea.vmem [#allocation12], %s599
          %s602 = ssub.s32 4096, 4096
          %603 = vsyncadd %s597, %s602
          %s604 = smul.addr %s40, 64
          %s605 = smul.addr %s604, 64
          %s606 = scalar_lea.hbm %s9, %s605
          %s607 = sshll.u32 %s600, 4
          %s608 = int_to_ptr.vmem [resolvable:$true] %s607
          %613 = dma.hbm_to_vmem [thread:$0]  %s606, 4096, %s608, %s597, 256, 256, 16
        $region64: #{tpu_custom_call.1} parent=27 // pred_fallthru
          _
        // Predicated region
        $region65: #{tpu_custom_call.1} parent=27 // pred_check
          %p614 = pneg %p324
        $region66: #{tpu_custom_call.1} parent=27 // pred_check_branch
          %616 = sbr.rel (%p614) target = $region68
        $region67: #{tpu_custom_call.1} parent=27 // pred_region
          %p617 = scmp.lt.s32.totalorder %s40, 1
          %s618 = scalar_select %p617, %s40, 1
          %s619 = smul.addr %s618, 4
          %s620 = scalar_lea.vmem %s10, %s619
        $region68: #{tpu_custom_call.1} parent=27 // pred_fallthru
          _
        // Predicated region
        $region69: #{tpu_custom_call.1} parent=27 // pred_check
          %p621 = pneg %p350
        $region70: #{tpu_custom_call.1} parent=27 // pred_check_branch
          %623 = sbr.rel (%p621) target = $region72
        $region71: #{tpu_custom_call.1} parent=27 // pred_region
          %s624 = sand.u32 %s32, 1
          %s625 = scalar_lea.sflag [#allocation13], %s624
          %s626 = sand.u32 %s340, 1
          %s627 = smul.addr %s626, 256
          %s628 = scalar_lea.vmem [#allocation14], %s627
          %s630 = ssub.s32 4096, 4096
          %631 = vsyncadd %s625, %s630
          %s632 = smul.addr %s40, 64
          %s633 = smul.addr %s632, 64
          %s634 = scalar_lea.hbm %s11, %s633
          %s635 = sshll.u32 %s628, 4
          %s636 = int_to_ptr.vmem [resolvable:$true] %s635
          %641 = dma.hbm_to_vmem [thread:$0]  %s634, 4096, %s636, %s625, 64, 64, 4
        $region72: #{tpu_custom_call.1} parent=27 // pred_fallthru
          _
        // Predicated region
        $region73: #{tpu_custom_call.1} parent=27 // pred_check
          %p642 = pneg %p376
        $region74: #{tpu_custom_call.1} parent=27 // pred_check_branch
          %644 = sbr.rel (%p642) target = $region76
        $region75: #{tpu_custom_call.1} parent=27 // pred_region
          %p645 = scmp.lt.s32.totalorder %s40, 1
          %s646 = scalar_select %p645, %s40, 1
          %s647 = scalar_lea.vmem %s12, %s646
        $region76: #{tpu_custom_call.1} parent=27 // pred_fallthru
          _
      $region28: #{tpu_custom_call.1} parent=5 // pred_fallthru
        _
      %p648 = scmp.le.s32.totalorder 1, %s32
      %p649 = scmp.lt.s32.totalorder %s32, 3
      %p650 = pnand %p648, %p649
      %p651 = pneg %p650
      // Predicated region
      $region77: #{tpu_custom_call.1} parent=5 // pred_check
        _
      $region78: #{tpu_custom_call.1} parent=5 // pred_check_branch
        %653 = sbr.rel (%p650) target = $region80
      $region79: #{tpu_custom_call.1} parent=5 // pred_region
        %s654 = ssub.s32 %s32, 1
        // Predicated region
        $region81: #{tpu_custom_call.1} parent=79 // pred_check
          %p655 = pneg %p70
        $region82: #{tpu_custom_call.1} parent=79 // pred_check_branch
          %657 = sbr.rel (%p655) target = $region84
        $region83: #{tpu_custom_call.1} parent=79 // pred_region
          %658 = dma.done [#allocation4], 512
        $region84: #{tpu_custom_call.1} parent=79 // pred_fallthru
          _
        %s659 = sand.u32 %s37, 1
        %s660 = scalar_lea.sflag [#allocation7], %s659
        %s661 = sand.u32 %s83, 1
        %s662 = scalar_lea.vmem [#allocation6], %s661
        // Predicated region
        $region85: #{tpu_custom_call.1} parent=79 // pred_check
          %p663 = pneg %p96
        $region86: #{tpu_custom_call.1} parent=79 // pred_check_branch
          %665 = sbr.rel (%p663) target = $region88
        $region87: #{tpu_custom_call.1} parent=79 // pred_region
          %666 = dma.done %s660, 16
        $region88: #{tpu_custom_call.1} parent=79 // pred_fallthru
          _
        %s667 = sand.u32 %s37, 1
        %s668 = scalar_lea.sflag [#allocation7], %s667
        %s669 = sand.u32 %s109, 1
        %s670 = scalar_lea.vmem [#allocation8], %s669
        // Predicated region
        $region89: #{tpu_custom_call.1} parent=79 // pred_check
          %p671 = pneg %p122
        $region90: #{tpu_custom_call.1} parent=79 // pred_check_branch
          %673 = sbr.rel (%p671) target = $region92
        $region91: #{tpu_custom_call.1} parent=79 // pred_region
          %674 = dma.done %s668, 16
        $region92: #{tpu_custom_call.1} parent=79 // pred_fallthru
          _
        %s675 = sand.u32 %s37, 1
        %s676 = scalar_lea.sflag [#allocation10], %s675
        %s677 = sand.u32 %s135, 1
        %s678 = smul.addr %s677, 192
        %s679 = scalar_lea.vmem [#allocation9], %s678
        // Predicated region
        $region93: #{tpu_custom_call.1} parent=79 // pred_check
          %p680 = pneg %p148
        $region94: #{tpu_custom_call.1} parent=79 // pred_check_branch
          %682 = sbr.rel (%p680) target = $region96
        $region95: #{tpu_custom_call.1} parent=79 // pred_region
          %683 = dma.done %s676, 3072
        $region96: #{tpu_custom_call.1} parent=79 // pred_fallthru
          _
        %s684 = sand.u32 %s37, 1
        %s685 = scalar_lea.sflag [#allocation10], %s684
        %s686 = sand.u32 %s187, 1
        %s687 = smul.addr %s686, 64
        %s688 = scalar_lea.vmem [#allocation11], %s687
        // Predicated region
        $region97: #{tpu_custom_call.1} parent=79 // pred_check
          %p689 = pneg %p200
        $region98: #{tpu_custom_call.1} parent=79 // pred_check_branch
          %691 = sbr.rel (%p689) target = $region100
        $region99: #{tpu_custom_call.1} parent=79 // pred_region
          %692 = dma.done %s685, 1024
        $region100: #{tpu_custom_call.1} parent=79 // pred_fallthru
          _
        %s693 = sand.u32 %s37, 1
        %s694 = scalar_lea.sflag [#allocation13], %s693
        %s695 = sand.u32 %s291, 1
        %s696 = smul.addr %s695, 256
        %s697 = scalar_lea.vmem [#allocation12], %s696
        // Predicated region
        $region101: #{tpu_custom_call.1} parent=79 // pred_check
          %p698 = pneg %p304
        $region102: #{tpu_custom_call.1} parent=79 // pred_check_branch
          %700 = sbr.rel (%p698) target = $region104
        $region103: #{tpu_custom_call.1} parent=79 // pred_region
          %701 = dma.done %s694, 4096
        $region104: #{tpu_custom_call.1} parent=79 // pred_fallthru
          _
        %s702 = sand.u32 %s37, 1
        %s703 = scalar_lea.sflag [#allocation13], %s702
        %s704 = sand.u32 %s343, 1
        %s705 = smul.addr %s704, 256
        %s706 = scalar_lea.vmem [#allocation14], %s705
        // Predicated region
        $region105: #{tpu_custom_call.1} parent=79 // pred_check
          %p707 = pneg %p356
        $region106: #{tpu_custom_call.1} parent=79 // pred_check_branch
          %709 = sbr.rel (%p707) target = $region108
        $region107: #{tpu_custom_call.1} parent=79 // pred_region
          %710 = dma.done %s703, 4096
        $region108: #{tpu_custom_call.1} parent=79 // pred_fallthru
          _
        %p711 = pneg %p70
        %p712 = pneg %p67
        %s713 = sand.u32 %s37, 1
        %s714 = scalar_lea.sflag [#allocation7], %s713
        %s715 = sand.u32 %s83, 1
        %s716 = scalar_lea.vmem [#allocation6], %s715
        %p717 = pneg %p96
        %p718 = pneg %p93
        %s719 = sand.u32 %s37, 1
        %s720 = scalar_lea.sflag [#allocation7], %s719
        %s721 = sand.u32 %s109, 1
        %s722 = scalar_lea.vmem [#allocation8], %s721
        %p723 = pneg %p122
        %p724 = pneg %p119
        %s725 = sand.u32 %s37, 1
        %s726 = scalar_lea.sflag [#allocation10], %s725
        %s727 = sand.u32 %s135, 1
        %s728 = smul.addr %s727, 192
        %s729 = scalar_lea.vmem [#allocation9], %s728
        %p730 = pneg %p148
        %p731 = pneg %p145
        %p732 = scmp.lt.s32.totalorder %s42, 1
        %s733 = scalar_select %p732, %s42, 1
        %s734 = smul.addr %s733, 3
        %s735 = scalar_lea.vmem %s4, %s734
        %p736 = pneg %p174
        %p737 = pneg %p171
        %s738 = sand.u32 %s37, 1
        %s739 = scalar_lea.sflag [#allocation10], %s738
        %s740 = sand.u32 %s187, 1
        %s741 = smul.addr %s740, 64
        %s742 = scalar_lea.vmem [#allocation11], %s741
        %p743 = pneg %p200
        %p744 = pneg %p197
        %p745 = scmp.lt.s32.totalorder %s42, 1
        %s746 = scalar_select %p745, %s42, 1
        %s747 = scalar_lea.vmem %s6, %s746
        %p748 = pneg %p226
        %p749 = pneg %p223
        %p750 = scmp.lt.s32.totalorder %s42, 1
        %s751 = scalar_select %p750, %s42, 1
        %s752 = scalar_lea.vmem %s7, %s751
        %p753 = pneg %p252
        %p754 = pneg %p249
        %p755 = scmp.lt.s32.totalorder %s42, 1
        %s756 = scalar_select %p755, %s42, 1
        %s757 = scalar_lea.vmem %s8, %s756
        %p758 = pneg %p278
        %p759 = pneg %p275
        %s760 = sand.u32 %s37, 1
        %s761 = scalar_lea.sflag [#allocation13], %s760
        %s762 = sand.u32 %s291, 1
        %s763 = smul.addr %s762, 256
        %s764 = scalar_lea.vmem [#allocation12], %s763
        %p765 = pneg %p304
        %p766 = pneg %p301
        %p767 = scmp.lt.s32.totalorder %s42, 1
        %s768 = scalar_select %p767, %s42, 1
        %s769 = smul.addr %s768, 4
        %s770 = scalar_lea.vmem %s10, %s769
        %p771 = pneg %p330
        %p772 = pneg %p327
        %s773 = sand.u32 %s37, 1
        %s774 = scalar_lea.sflag [#allocation13], %s773
        %s775 = sand.u32 %s343, 1
        %s776 = smul.addr %s775, 256
        %s777 = scalar_lea.vmem [#allocation14], %s776
        %p778 = pneg %p356
        %p779 = pneg %p353
        %p780 = scmp.lt.s32.totalorder %s42, 1
        %s781 = scalar_select %p780, %s42, 1
        %s782 = scalar_lea.vmem %s12, %s781
        %p783 = pneg %p382
        %p784 = pneg %p379
        %p785 = pneg %p403
        %p786 = pneg %p400
        %p787 = pneg %p424
        %p788 = pneg %p421
        %p789 = pneg %p450
        %p790 = pneg %p447
        %s791 = smul.u32 2, %s41
        %p792 = scmp.lt.s32.totalorder %s42, 1
        %s793 = scalar_select %p792, %s42, 1
        %s794 = smul.addr %s793, 3
        %s795 = scalar_lea.vmem %s4, %s794
        %p796 = scmp.lt.s32.totalorder %s42, 1
        %s797 = scalar_select %p796, %s42, 1
        %s798 = scalar_lea.vmem %s6, %s797
        %p799 = scmp.lt.s32.totalorder %s42, 1
        %s800 = scalar_select %p799, %s42, 1
        %s801 = scalar_lea.vmem %s7, %s800
        %p802 = scmp.lt.s32.totalorder %s42, 1
        %s803 = scalar_select %p802, %s42, 1
        %s804 = scalar_lea.vmem %s8, %s803
        %p805 = scmp.lt.s32.totalorder %s42, 1
        %s806 = scalar_select %p805, %s42, 1
        %s807 = smul.addr %s806, 4
        %s808 = scalar_lea.vmem %s10, %s807
        %p809 = scmp.lt.s32.totalorder %s42, 1
        %s810 = scalar_select %p809, %s42, 1
        %s811 = scalar_lea.vmem %s12, %s810
        %s812 = smul.u32 2, %s41
        %p814 = scmp.eq.s32.totalorder %s42, 0
        // Predicated region
        $region109: #{tpu_custom_call.1} parent=79 // pred_check
          %p815 = pneg %p814
        $region110: #{tpu_custom_call.1} parent=79 // pred_check_branch
          %817 = sbr.rel (%p815) target = $region112
        $region111: #{tpu_custom_call.1} parent=79 // pred_region
          %v818 = vld [vmem:[#allocation3] sm:$0xff]
          %v819 = vld [vmem:[#allocation3 + $0x8] sm:$0xff]
          %v820 = vld [vmem:[#allocation3 + $0x10] sm:$0xff]
          %v821 = vld [vmem:[#allocation3 + $0x18] sm:$0xff]
          %822 = vst [vmem:[#allocation2] sm:$0xff] %v818
          %823 = vst [vmem:[#allocation2 + $0x8] sm:$0xff] %v819
          %824 = vst [vmem:[#allocation2 + $0x10] sm:$0xff] %v820
          %825 = vst [vmem:[#allocation2 + $0x18] sm:$0xff] %v821
        $region112: #{tpu_custom_call.1} parent=79 // pred_fallthru
          _
        %v826 = vld [vmem:[#allocation2] sm:$0xff]
        %v827 = vld [vmem:[#allocation2 + $0x8] sm:$0xff]
        %v828 = vld [vmem:[#allocation2 + $0x10] sm:$0xff]
        %v829 = vld [vmem:[#allocation2 + $0x18] sm:$0xff]
        %v830 = vld [vmem:[%s662] sm:$0x1]
        %v831 = vld [vmem:[%s670] sm:$0x1]
        %832 = vadd.xlane.f32.xlu0 %v826
        %v833 = vpop.xlane.xlu0 %832
        %834 = vadd.xlane.f32.xlu0 %v827
        %v835 = vpop.xlane.xlu0 %834
        %836 = vadd.xlane.f32.xlu0 %v828
        %v837 = vpop.xlane.xlu0 %836
        %838 = vadd.xlane.f32.xlu0 %v829
        %v839 = vpop.xlane.xlu0 %838
        %v840 = vrcp.pop 128.0
        %v841 = vmul.f32 %v833, %v840
        %v842 = vmul.f32 %v835, %v840
        %v843 = vmul.f32 %v837, %v840
        %v844 = vmul.f32 %v839, %v840
        %v845 = vsub.f32 %v826, %v841
        %v846 = vsub.f32 %v827, %v842
        %v847 = vsub.f32 %v828, %v843
        %v848 = vsub.f32 %v829, %v844
        %v849 = vmul.f32 %v845, %v845
        %v850 = vmul.f32 %v846, %v846
        %v851 = vmul.f32 %v847, %v847
        %v852 = vmul.f32 %v848, %v848
        %853 = vadd.xlane.f32.xlu0 %v849
        %v854 = vpop.xlane.xlu0 %853
        %855 = vadd.xlane.f32.xlu0 %v850
        %v856 = vpop.xlane.xlu0 %855
        %857 = vadd.xlane.f32.xlu0 %v851
        %v858 = vpop.xlane.xlu0 %857
        %859 = vadd.xlane.f32.xlu0 %v852
        %v860 = vpop.xlane.xlu0 %859
        %v861 = vmul.f32 %v854, %v840
        %v862 = vmul.f32 %v856, %v840
        %v863 = vmul.f32 %v858, %v840
        %v864 = vmul.f32 %v860, %v840
        %v865 = vadd.f32 %v861, 1e-05
        %v866 = vadd.f32 %v862, 1e-05
        %v867 = vadd.f32 %v863, 1e-05
        %v868 = vadd.f32 %v864, 1e-05
        %v869 = vrsqrt.pop %v865
        %v870 = vrsqrt.pop %v866
        %v871 = vrsqrt.pop %v867
        %v872 = vrsqrt.pop %v868
        %v873 = vmul.f32 %v845, %v869
        %v874 = vmul.f32 %v846, %v870
        %v875 = vmul.f32 %v847, %v871
        %v876 = vmul.f32 %v848, %v872
        %v878 = vlaneseq
        %v879 = vshrl.u32 %v878, 7
        %v880 = vsub.s32 0, %v879
        %v881 = vrot.slane %v830, %v880
        %v883 = vmul.f32 %v873, %v881
        %v884 = vmul.f32 %v874, %v881
        %v885 = vmul.f32 %v875, %v881
        %v886 = vmul.f32 %v876, %v881
        %v888 = vlaneseq
        %v889 = vshrl.u32 %v888, 7
        %v890 = vsub.s32 0, %v889
        %v891 = vrot.slane %v831, %v890
        %v893 = vadd.f32 %v883, %v891
        %v894 = vadd.f32 %v884, %v891
        %v895 = vadd.f32 %v885, %v891
        %v896 = vadd.f32 %v886, %v891
        %v897 = vpack.c.bf16 %v894, %v893
        %v898 = vpack.c.bf16 %v896, %v895
        %v899 = vld [vmem:[%s679] sm:$0xff]
        %v900 = vld [vmem:[%s679 + $0x8] sm:$0xf]
        %v901 = vld [vmem:[%s679 + $0xc] sm:$0xff]
        %v902 = vld [vmem:[%s679 + $0x14] sm:$0xf]
        %v903 = vld [vmem:[%s679 + $0x18] sm:$0xff]
        %v904 = vld [vmem:[%s679 + $0x20] sm:$0xf]
        %v905 = vld [vmem:[%s679 + $0x24] sm:$0xff]
        %v906 = vld [vmem:[%s679 + $0x2c] sm:$0xf]
        %v907 = vld [vmem:[%s679 + $0x30] sm:$0xff]
        %v908 = vld [vmem:[%s679 + $0x38] sm:$0xf]
        %v909 = vld [vmem:[%s679 + $0x3c] sm:$0xff]
        %v910 = vld [vmem:[%s679 + $0x44] sm:$0xf]
        %v911 = vld [vmem:[%s679 + $0x48] sm:$0xff]
        %v912 = vld [vmem:[%s679 + $0x50] sm:$0xf]
        %v913 = vld [vmem:[%s679 + $0x54] sm:$0xff]
        %v914 = vld [vmem:[%s679 + $0x5c] sm:$0xf]
        %v915 = vld [vmem:[%s679 + $0x60] sm:$0xff]
        %v916 = vld [vmem:[%s679 + $0x68] sm:$0xf]
        %v917 = vld [vmem:[%s679 + $0x6c] sm:$0xff]
        %v918 = vld [vmem:[%s679 + $0x74] sm:$0xf]
        %v919 = vld [vmem:[%s679 + $0x78] sm:$0xff]
        %v920 = vld [vmem:[%s679 + $0x80] sm:$0xf]
        %v921 = vld [vmem:[%s679 + $0x84] sm:$0xff]
        %v922 = vld [vmem:[%s679 + $0x8c] sm:$0xf]
        %v923 = vld [vmem:[%s679 + $0x90] sm:$0xff]
        %v924 = vld [vmem:[%s679 + $0x98] sm:$0xf]
        %v925 = vld [vmem:[%s679 + $0x9c] sm:$0xff]
        %v926 = vld [vmem:[%s679 + $0xa4] sm:$0xf]
        %v927 = vld [vmem:[%s679 + $0xa8] sm:$0xff]
        %v928 = vld [vmem:[%s679 + $0xb0] sm:$0xf]
        %v929 = vld [vmem:[%s679 + $0xb4] sm:$0xff]
        %v930 = vld [vmem:[%s679 + $0xbc] sm:$0xf]
        %v931 = vld [vmem:[%s795] sm:$0x7]
        %v933 = vlaneseq
        %v934 = vshrl.u32 %v933, 7
        %v935 = vsub.s32 0, %v934
        %v936 = vrot.slane %v931, %v935
        %v937 = vlaneseq
        %v938 = vshrl.u32 %v937, 7
        %v939 = vsub.s32 1, %v938
        %v940 = vrot.slane %v931, %v939
        %v941 = vlaneseq
        %v942 = vshrl.u32 %v941, 7
        %v943 = vsub.s32 2, %v942
        %v944 = vrot.slane %v931, %v943
        %v980 = vunpack.c.l.b16 %v899
        %v981 = vunpack.c.h.b16 %v899
        %v982 = vunpack.c.l.b16 %v900
        %v983 = vunpack.c.l.b16 %v901
        %v984 = vunpack.c.h.b16 %v901
        %v985 = vunpack.c.l.b16 %v902
        %v986 = vunpack.c.l.b16 %v903
        %v987 = vunpack.c.h.b16 %v903
        %v988 = vunpack.c.l.b16 %v904
        %v989 = vunpack.c.l.b16 %v905
        %v990 = vunpack.c.h.b16 %v905
        %v991 = vunpack.c.l.b16 %v906
        %v992 = vunpack.c.l.b16 %v907
        %v993 = vunpack.c.h.b16 %v907
        %v994 = vunpack.c.l.b16 %v908
        %v995 = vunpack.c.l.b16 %v909
        %v996 = vunpack.c.h.b16 %v909
        %v997 = vunpack.c.l.b16 %v910
        %v998 = vunpack.c.l.b16 %v911
        %v999 = vunpack.c.h.b16 %v911
        %v1000 = vunpack.c.l.b16 %v912
        %v1001 = vunpack.c.l.b16 %v913
        %v1002 = vunpack.c.h.b16 %v913
        %v1003 = vunpack.c.l.b16 %v914
        %v1004 = vunpack.c.l.b16 %v915
        %v1005 = vunpack.c.h.b16 %v915
        %v1006 = vunpack.c.l.b16 %v916
        %v1007 = vunpack.c.l.b16 %v917
        %v1008 = vunpack.c.h.b16 %v917
        %v1009 = vunpack.c.l.b16 %v918
        %v1010 = vunpack.c.l.b16 %v919
        %v1011 = vunpack.c.h.b16 %v919
        %v1012 = vunpack.c.l.b16 %v920
        %v1013 = vunpack.c.l.b16 %v921
        %v1014 = vunpack.c.h.b16 %v921
        %v1015 = vunpack.c.l.b16 %v922
        %v1016 = vunpack.c.l.b16 %v923
        %v1017 = vunpack.c.h.b16 %v923
        %v1018 = vunpack.c.l.b16 %v924
        %v1019 = vunpack.c.l.b16 %v925
        %v1020 = vunpack.c.h.b16 %v925
        %v1021 = vunpack.c.l.b16 %v926
        %v1022 = vunpack.c.l.b16 %v927
        %v1023 = vunpack.c.h.b16 %v927
        %v1024 = vunpack.c.l.b16 %v928
        %v1025 = vunpack.c.l.b16 %v929
        %v1026 = vunpack.c.h.b16 %v929
        %v1027 = vunpack.c.l.b16 %v930
        %v1028 = vpack.c.b16 %v983, %v980
        %v1029 = vpack.c.b16 %v984, %v981
        %v1030 = vpack.c.b16 %v985, %v982
        %v1031 = vpack.c.b16 %v989, %v986
        %v1032 = vpack.c.b16 %v990, %v987
        %v1033 = vpack.c.b16 %v991, %v988
        %v1034 = vpack.c.b16 %v995, %v992
        %v1035 = vpack.c.b16 %v996, %v993
        %v1036 = vpack.c.b16 %v997, %v994
        %v1037 = vpack.c.b16 %v1001, %v998
        %v1038 = vpack.c.b16 %v1002, %v999
        %v1039 = vpack.c.b16 %v1003, %v1000
        %v1040 = vpack.c.b16 %v1007, %v1004
        %v1041 = vpack.c.b16 %v1008, %v1005
        %v1042 = vpack.c.b16 %v1009, %v1006
        %v1043 = vpack.c.b16 %v1013, %v1010
        %v1044 = vpack.c.b16 %v1014, %v1011
        %v1045 = vpack.c.b16 %v1015, %v1012
        %v1046 = vpack.c.b16 %v1019, %v1016
        %v1047 = vpack.c.b16 %v1020, %v1017
        %v1048 = vpack.c.b16 %v1021, %v1018
        %v1049 = vpack.c.b16 %v1025, %v1022
        %v1050 = vpack.c.b16 %v1026, %v1023
        %v1051 = vpack.c.b16 %v1027, %v1024
        %1076 = vmatprep.subr.bf16.mxu0 %v1029
        %1077 = vmatpush1.bf16.msra.mxu0 %v1028
        %1078 = vmatprep.subr.bf16.mxu0 %v1032
        %1079 = vmatpush1.bf16.msra.mxu0 %v1031
        %1080 = vmatprep.subr.bf16.mxu0 %v1035
        %1081 = vmatpush1.bf16.msra.mxu0 %v1034
        %1082 = vmatprep.subr.bf16.mxu0 %v1038
        %1083 = vmatpush1.bf16.msra.mxu0 %v1037
        %1084 = vmatprep.subr.bf16.mxu0 %v1041
        %1085 = vmatpush1.bf16.msra.mxu0 %v1040
        %1086 = vmatprep.subr.bf16.mxu0 %v1044
        %1087 = vmatpush1.bf16.msra.mxu0 %v1043
        %1088 = vmatprep.subr.bf16.mxu0 %v1047
        %1089 = vmatpush1.bf16.msra.mxu0 %v1046
        %1090 = vmatprep.subr.bf16.mxu0 %v1050
        %1091 = vmatpush1.bf16.msra.mxu0 %v1049
        %1092 = vmatprep.subr.bf16.mxu0 0
        %1093 = vmatpush1.bf16.msra.mxu0 0
        %1094 = vmatprep.subr.bf16.mxu0 0
        %1095 = vmatpush1.bf16.msra.mxu0 0
        %1096 = vmatprep.subr.bf16.mxu0 0
        %1097 = vmatpush1.bf16.msra.mxu0 0
        %1098 = vmatprep.subr.bf16.mxu0 0
        %1099 = vmatpush1.bf16.msra.mxu0 0
        %1100 = vmatprep.subr.bf16.mxu0 0
        %1101 = vmatpush1.bf16.msra.mxu0 0
        %1102 = vmatprep.subr.bf16.mxu0 0
        %1103 = vmatpush1.bf16.msra.mxu0 0
        %1104 = vmatprep.subr.bf16.mxu0 0
        %1105 = vmatpush1.bf16.msra.mxu0 0
        %1106 = vmatprep.subr.bf16.mxu0 0
        %1107 = vmatpush1.bf16.msra.mxu0 0
        %1108 = vmatprep.mubr.bf16.mxu0 0
        %1109 = vmatmul.mubr.bf16.gmra.mrb[0].mxu0 %v897
        %v1110 = vpop.f32.mrb[0].mxu0
        %v1111 = vadd.f32 %v936, %v1110
        %v1112 = vpop.f32.mrb[0].mxu0
        %v1113 = vadd.f32 %v940, %v1112
        %v1114 = vpop.f32.mrb[0].mxu0
        %v1115 = vadd.f32 %v936, %v1114
        %v1116 = vpop.f32.mrb[0].mxu0
        %v1117 = vadd.f32 %v940, %v1116
        %1118 = vmatprep.mubr.bf16.mxu0 0
        %1119 = vmatmul.mubr.bf16.gmra.mrb[0].mxu0 %v898
        %v1120 = vpop.f32.mrb[0].mxu0
        %v1121 = vadd.f32 %v936, %v1120
        %v1122 = vpop.f32.mrb[0].mxu0
        %v1123 = vadd.f32 %v940, %v1122
        %v1124 = vpop.f32.mrb[0].mxu0
        %v1125 = vadd.f32 %v936, %v1124
        %v1126 = vpop.f32.mrb[0].mxu0
        %v1127 = vadd.f32 %v940, %v1126
        %1128 = vdwg.mxu0
        %1129 = vmatprep.subr.bf16.mxu0 0
        %1130 = vmatpush1.bf16.msra.mxu0 %v1030
        %1131 = vmatprep.subr.bf16.mxu0 0
        %1132 = vmatpush1.bf16.msra.mxu0 %v1033
        %1133 = vmatprep.subr.bf16.mxu0 0
        %1134 = vmatpush1.bf16.msra.mxu0 %v1036
        %1135 = vmatprep.subr.bf16.mxu0 0
        %1136 = vmatpush1.bf16.msra.mxu0 %v1039
        %1137 = vmatprep.subr.bf16.mxu0 0
        %1138 = vmatpush1.bf16.msra.mxu0 %v1042
        %1139 = vmatprep.subr.bf16.mxu0 0
        %1140 = vmatpush1.bf16.msra.mxu0 %v1045
        %1141 = vmatprep.subr.bf16.mxu0 0
        %1142 = vmatpush1.bf16.msra.mxu0 %v1048
        %1143 = vmatprep.subr.bf16.mxu0 0
        %1144 = vmatpush1.bf16.msra.mxu0 %v1051
        %1145 = vmatprep.subr.bf16.mxu0 0
        %1146 = vmatpush1.bf16.msra.mxu0 0
        %1147 = vmatprep.subr.bf16.mxu0 0
        %1148 = vmatpush1.bf16.msra.mxu0 0
        %1149 = vmatprep.subr.bf16.mxu0 0
        %1150 = vmatpush1.bf16.msra.mxu0 0
        %1151 = vmatprep.subr.bf16.mxu0 0
        %1152 = vmatpush1.bf16.msra.mxu0 0
        %1153 = vmatprep.subr.bf16.mxu0 0
        %1154 = vmatpush1.bf16.msra.mxu0 0
        %1155 = vmatprep.subr.bf16.mxu0 0
        %1156 = vmatpush1.bf16.msra.mxu0 0
        %1157 = vmatprep.subr.bf16.mxu0 0
        %1158 = vmatpush1.bf16.msra.mxu0 0
        %1159 = vmatprep.subr.bf16.mxu0 0
        %1160 = vmatpush1.bf16.msra.mxu0 0
        %1161 = vmatprep.mubr.bf16.mxu0 0
        %1162 = vmatmul.mubr.bf16.gmra.mrb[0].mxu0 %v897
        %v1163 = vpop.f32.mrb[0].mxu0
        %v1164 = vadd.f32 %v944, %v1163
        %v1165 = vpop.f32.mrb[0].mxu0
        %v1166 = vpop.f32.mrb[0].mxu0
        %v1167 = vadd.f32 %v944, %v1166
        %v1168 = vpop.f32.mrb[0].mxu0
        %1169 = vmatprep.mubr.bf16.mxu0 0
        %1170 = vmatmul.mubr.bf16.gmra.mrb[0].mxu0 %v898
        %v1171 = vpop.f32.mrb[0].mxu0
        %v1172 = vadd.f32 %v944, %v1171
        %v1173 = vpop.f32.mrb[0].mxu0
        %v1174 = vpop.f32.mrb[0].mxu0
        %v1175 = vadd.f32 %v944, %v1174
        %v1176 = vpop.f32.mrb[0].mxu0
        %1177 = vdwg.mxu0
        %v1178 = vlaneseq
        %v1179 = vshrl.u32 %v1178, 7
        %v1180 = vadd.s32 %v1179, 8
        %v1181 = vlaneseq
        %v1182 = vand.u32 %v1181, 127
        %vm1183 = vcmp.gt.s32.totalorder %v1182, %v1179
        %vm1184 = vcmp.gt.s32.totalorder %v1182, %v1180
        %vm1185 = vcmp.ge.s32.totalorder %v1182, 16
        %vm1186 = vmor %vm1183, %vm1185
        %vm1187 = vmor %vm1184, %vm1185
        %1190 = vrot.lane.b32.xlu0 %v1111, 96
        %v1191 = vpop.permute.xlu0 %1190
        %1192 = vrot.lane.b32.xlu0 %v1115, 96
        %v1193 = vpop.permute.xlu0 %1192
        %1196 = vrot.lane.b32.xlu0 %v1111, 64
        %v1197 = vpop.permute.xlu0 %1196
        %1198 = vrot.lane.b32.xlu0 %v1115, 64
        %v1199 = vpop.permute.xlu0 %1198
        %1202 = vrot.lane.b32.xlu0 %v1111, 32
        %v1203 = vpop.permute.xlu0 %1202
        %1204 = vrot.lane.b32.xlu0 %v1115, 32
        %v1205 = vpop.permute.xlu0 %1204
        %v1208 = vcombine.low %v1111, %v1197
        %v1209 = vcombine.high %v1111, %v1197
        %v1211 = vunpack.c.l.s4 1983009808
        %v1212 = vunpack.c.0.s8 %v1211
        %v1213 = vlaneseq
        %v1214 = vshrl.u32 %v1213, 7
        %v1215 = vsub.s32 %v1212, %v1214
        %v1216 = vrot.slane %v1208, %v1215
        %v1218 = vunpack.c.l.s4 1983009808
        %v1219 = vunpack.c.0.s8 %v1218
        %v1220 = vlaneseq
        %v1221 = vshrl.u32 %v1220, 7
        %v1222 = vsub.s32 %v1219, %v1221
        %v1223 = vrot.slane %v1209, %v1222
        %v1224 = vcombine.low %v1191, %v1203
        %v1225 = vcombine.high %v1191, %v1203
        %v1227 = vunpack.c.l.s4 1983009808
        %v1228 = vunpack.c.0.s8 %v1227
        %v1229 = vlaneseq
        %v1230 = vshrl.u32 %v1229, 7
        %v1231 = vsub.s32 %v1228, %v1230
        %v1232 = vrot.slane %v1224, %v1231
        %v1234 = vunpack.c.l.s4 1983009808
        %v1235 = vunpack.c.0.s8 %v1234
        %v1236 = vlaneseq
        %v1237 = vshrl.u32 %v1236, 7
        %v1238 = vsub.s32 %v1235, %v1237
        %v1239 = vrot.slane %v1225, %v1238
        %v1240 = vcombine.low %v1216, %v1232
        %v1241 = vcombine.high %v1216, %v1232
        %v1243 = vunpack.c.l.s4 1934713408
        %v1244 = vunpack.c.0.s8 %v1243
        %v1245 = vlaneseq
        %v1246 = vshrl.u32 %v1245, 7
        %v1247 = vsub.s32 %v1244, %v1246
        %v1248 = vrot.slane %v1240, %v1247
        %v1250 = vunpack.c.l.s4 1934713408
        %v1251 = vunpack.c.0.s8 %v1250
        %v1252 = vlaneseq
        %v1253 = vshrl.u32 %v1252, 7
        %v1254 = vsub.s32 %v1251, %v1253
        %v1255 = vrot.slane %v1241, %v1254
        %v1256 = vcombine.low %v1223, %v1239
        %v1257 = vcombine.high %v1223, %v1239
        %v1259 = vunpack.c.l.s4 1934713408
        %v1260 = vunpack.c.0.s8 %v1259
        %v1261 = vlaneseq
        %v1262 = vshrl.u32 %v1261, 7
        %v1263 = vsub.s32 %v1260, %v1262
        %v1264 = vrot.slane %v1256, %v1263
        %v1266 = vunpack.c.l.s4 1934713408
        %v1267 = vunpack.c.0.s8 %v1266
        %v1268 = vlaneseq
        %v1269 = vshrl.u32 %v1268, 7
        %v1270 = vsub.s32 %v1267, %v1269
        %v1271 = vrot.slane %v1257, %v1270
        %v1272 = vcombine.high %v1248, 0.0
        %v1273 = vcombine.high %v1255, 0.0
        %v1274 = vcombine.high %v1264, 0.0
        %v1275 = vcombine.high %v1271, 0.0
        %v1276 = vcombine.low %v1115, %v1199
        %v1277 = vcombine.high %v1115, %v1199
        %v1279 = vunpack.c.l.s4 1983009808
        %v1280 = vunpack.c.0.s8 %v1279
        %v1281 = vlaneseq
        %v1282 = vshrl.u32 %v1281, 7
        %v1283 = vsub.s32 %v1280, %v1282
        %v1284 = vrot.slane %v1276, %v1283
        %v1286 = vunpack.c.l.s4 1983009808
        %v1287 = vunpack.c.0.s8 %v1286
        %v1288 = vlaneseq
        %v1289 = vshrl.u32 %v1288, 7
        %v1290 = vsub.s32 %v1287, %v1289
        %v1291 = vrot.slane %v1277, %v1290
        %v1292 = vcombine.low %v1193, %v1205
        %v1293 = vcombine.high %v1193, %v1205
        %v1295 = vunpack.c.l.s4 1983009808
        %v1296 = vunpack.c.0.s8 %v1295
        %v1297 = vlaneseq
        %v1298 = vshrl.u32 %v1297, 7
        %v1299 = vsub.s32 %v1296, %v1298
        %v1300 = vrot.slane %v1292, %v1299
        %v1302 = vunpack.c.l.s4 1983009808
        %v1303 = vunpack.c.0.s8 %v1302
        %v1304 = vlaneseq
        %v1305 = vshrl.u32 %v1304, 7
        %v1306 = vsub.s32 %v1303, %v1305
        %v1307 = vrot.slane %v1293, %v1306
        %v1308 = vcombine.low %v1284, %v1300
        %v1309 = vcombine.high %v1284, %v1300
        %v1311 = vunpack.c.l.s4 1934713408
        %v1312 = vunpack.c.0.s8 %v1311
        %v1313 = vlaneseq
        %v1314 = vshrl.u32 %v1313, 7
        %v1315 = vsub.s32 %v1312, %v1314
        %v1316 = vrot.slane %v1308, %v1315
        %v1318 = vunpack.c.l.s4 1934713408
        %v1319 = vunpack.c.0.s8 %v1318
        %v1320 = vlaneseq
        %v1321 = vshrl.u32 %v1320, 7
        %v1322 = vsub.s32 %v1319, %v1321
        %v1323 = vrot.slane %v1309, %v1322
        %v1324 = vcombine.low %v1291, %v1307
        %v1325 = vcombine.high %v1291, %v1307
        %v1327 = vunpack.c.l.s4 1934713408
        %v1328 = vunpack.c.0.s8 %v1327
        %v1329 = vlaneseq
        %v1330 = vshrl.u32 %v1329, 7
        %v1331 = vsub.s32 %v1328, %v1330
        %v1332 = vrot.slane %v1324, %v1331
        %v1334 = vunpack.c.l.s4 1934713408
        %v1335 = vunpack.c.0.s8 %v1334
        %v1336 = vlaneseq
        %v1337 = vshrl.u32 %v1336, 7
        %v1338 = vsub.s32 %v1335, %v1337
        %v1339 = vrot.slane %v1325, %v1338
        %v1340 = vcombine.high %v1316, 0.0
        %v1341 = vcombine.high %v1323, 0.0
        %v1342 = vcombine.high %v1332, 0.0
        %v1343 = vcombine.high %v1339, 0.0
        %v1344 = vcombine.low %v1248, %v1255
        %v1346 = vunpack.c.l.s4 1983009808
        %v1347 = vunpack.c.0.s8 %v1346
        %v1348 = vlaneseq
        %v1349 = vshrl.u32 %v1348, 7
        %v1350 = vsub.s32 %v1347, %v1349
        %v1351 = vrot.slane %v1344, %v1350
        %v1352 = vcombine.low %v1272, %v1273
        %v1354 = vunpack.c.l.s4 1983009808
        %v1355 = vunpack.c.0.s8 %v1354
        %v1356 = vlaneseq
        %v1357 = vshrl.u32 %v1356, 7
        %v1358 = vsub.s32 %v1355, %v1357
        %v1359 = vrot.slane %v1352, %v1358
        %v1360 = vcombine.low %v1264, %v1271
        %v1362 = vunpack.c.l.s4 1983009808
        %v1363 = vunpack.c.0.s8 %v1362
        %v1364 = vlaneseq
        %v1365 = vshrl.u32 %v1364, 7
        %v1366 = vsub.s32 %v1363, %v1365
        %v1367 = vrot.slane %v1360, %v1366
        %v1368 = vcombine.low %v1274, %v1275
        %v1370 = vunpack.c.l.s4 1983009808
        %v1371 = vunpack.c.0.s8 %v1370
        %v1372 = vlaneseq
        %v1373 = vshrl.u32 %v1372, 7
        %v1374 = vsub.s32 %v1371, %v1373
        %v1375 = vrot.slane %v1368, %v1374
        %v1376 = vcombine.low %v1351, %v1359
        %v1377 = vcombine.high %v1351, %v1359
        %v1379 = vunpack.c.l.s4 1934713408
        %v1380 = vunpack.c.0.s8 %v1379
        %v1381 = vlaneseq
        %v1382 = vshrl.u32 %v1381, 7
        %v1383 = vsub.s32 %v1380, %v1382
        %v1384 = vrot.slane %v1376, %v1383
        %v1386 = vunpack.c.l.s4 1934713408
        %v1387 = vunpack.c.0.s8 %v1386
        %v1388 = vlaneseq
        %v1389 = vshrl.u32 %v1388, 7
        %v1390 = vsub.s32 %v1387, %v1389
        %v1391 = vrot.slane %v1377, %v1390
        %v1392 = vcombine.low %v1367, %v1375
        %v1393 = vcombine.high %v1367, %v1375
        %v1395 = vunpack.c.l.s4 1934713408
        %v1396 = vunpack.c.0.s8 %v1395
        %v1397 = vlaneseq
        %v1398 = vshrl.u32 %v1397, 7
        %v1399 = vsub.s32 %v1396, %v1398
        %v1400 = vrot.slane %v1392, %v1399
        %v1402 = vunpack.c.l.s4 1934713408
        %v1403 = vunpack.c.0.s8 %v1402
        %v1404 = vlaneseq
        %v1405 = vshrl.u32 %v1404, 7
        %v1406 = vsub.s32 %v1403, %v1405
        %v1407 = vrot.slane %v1393, %v1406
        %v1408 = vcombine.low %v1384, %v1400
        %v1409 = vcombine.high %v1384, %v1400
        %v1410 = vcombine.low %v1391, %v1407
        %v1411 = vcombine.high %v1391, %v1407
        %v1412 = vcombine.low %v1316, %v1323
        %v1414 = vunpack.c.l.s4 1983009808
        %v1415 = vunpack.c.0.s8 %v1414
        %v1416 = vlaneseq
        %v1417 = vshrl.u32 %v1416, 7
        %v1418 = vsub.s32 %v1415, %v1417
        %v1419 = vrot.slane %v1412, %v1418
        %v1420 = vcombine.low %v1340, %v1341
        %v1422 = vunpack.c.l.s4 1983009808
        %v1423 = vunpack.c.0.s8 %v1422
        %v1424 = vlaneseq
        %v1425 = vshrl.u32 %v1424, 7
        %v1426 = vsub.s32 %v1423, %v1425
        %v1427 = vrot.slane %v1420, %v1426
        %v1428 = vcombine.low %v1332, %v1339
        %v1430 = vunpack.c.l.s4 1983009808
        %v1431 = vunpack.c.0.s8 %v1430
        %v1432 = vlaneseq
        %v1433 = vshrl.u32 %v1432, 7
        %v1434 = vsub.s32 %v1431, %v1433
        %v1435 = vrot.slane %v1428, %v1434
        %v1436 = vcombine.low %v1342, %v1343
        %v1438 = vunpack.c.l.s4 1983009808
        %v1439 = vunpack.c.0.s8 %v1438
        %v1440 = vlaneseq
        %v1441 = vshrl.u32 %v1440, 7
        %v1442 = vsub.s32 %v1439, %v1441
        %v1443 = vrot.slane %v1436, %v1442
        %v1444 = vcombine.low %v1419, %v1427
        %v1445 = vcombine.high %v1419, %v1427
        %v1447 = vunpack.c.l.s4 1934713408
        %v1448 = vunpack.c.0.s8 %v1447
        %v1449 = vlaneseq
        %v1450 = vshrl.u32 %v1449, 7
        %v1451 = vsub.s32 %v1448, %v1450
        %v1452 = vrot.slane %v1444, %v1451
        %v1454 = vunpack.c.l.s4 1934713408
        %v1455 = vunpack.c.0.s8 %v1454
        %v1456 = vlaneseq
        %v1457 = vshrl.u32 %v1456, 7
        %v1458 = vsub.s32 %v1455, %v1457
        %v1459 = vrot.slane %v1445, %v1458
        %v1460 = vcombine.low %v1435, %v1443
        %v1461 = vcombine.high %v1435, %v1443
        %v1463 = vunpack.c.l.s4 1934713408
        %v1464 = vunpack.c.0.s8 %v1463
        %v1465 = vlaneseq
        %v1466 = vshrl.u32 %v1465, 7
        %v1467 = vsub.s32 %v1464, %v1466
        %v1468 = vrot.slane %v1460, %v1467
        %v1470 = vunpack.c.l.s4 1934713408
        %v1471 = vunpack.c.0.s8 %v1470
        %v1472 = vlaneseq
        %v1473 = vshrl.u32 %v1472, 7
        %v1474 = vsub.s32 %v1471, %v1473
        %v1475 = vrot.slane %v1461, %v1474
        %v1476 = vcombine.low %v1452, %v1468
        %v1477 = vcombine.high %v1452, %v1468
        %v1478 = vcombine.low %v1459, %v1475
        %v1479 = vcombine.high %v1459, %v1475
        %1482 = vrot.lane.b32.xlu0 %v1113, 96
        %v1483 = vpop.permute.xlu0 %1482
        %1484 = vrot.lane.b32.xlu0 %v1117, 96
        %v1485 = vpop.permute.xlu0 %1484
        %1488 = vrot.lane.b32.xlu0 %v1113, 64
        %v1489 = vpop.permute.xlu0 %1488
        %1490 = vrot.lane.b32.xlu0 %v1117, 64
        %v1491 = vpop.permute.xlu0 %1490
        %1494 = vrot.lane.b32.xlu0 %v1113, 32
        %v1495 = vpop.permute.xlu0 %1494
        %1496 = vrot.lane.b32.xlu0 %v1117, 32
        %v1497 = vpop.permute.xlu0 %1496
        %v1500 = vcombine.low %v1113, %v1489
        %v1501 = vcombine.high %v1113, %v1489
        %v1503 = vunpack.c.l.s4 1983009808
        %v1504 = vunpack.c.0.s8 %v1503
        %v1505 = vlaneseq
        %v1506 = vshrl.u32 %v1505, 7
        %v1507 = vsub.s32 %v1504, %v1506
        %v1508 = vrot.slane %v1500, %v1507
        %v1510 = vunpack.c.l.s4 1983009808
        %v1511 = vunpack.c.0.s8 %v1510
        %v1512 = vlaneseq
        %v1513 = vshrl.u32 %v1512, 7
        %v1514 = vsub.s32 %v1511, %v1513
        %v1515 = vrot.slane %v1501, %v1514
        %v1516 = vcombine.low %v1483, %v1495
        %v1517 = vcombine.high %v1483, %v1495
        %v1519 = vunpack.c.l.s4 1983009808
        %v1520 = vunpack.c.0.s8 %v1519
        %v1521 = vlaneseq
        %v1522 = vshrl.u32 %v1521, 7
        %v1523 = vsub.s32 %v1520, %v1522
        %v1524 = vrot.slane %v1516, %v1523
        %v1526 = vunpack.c.l.s4 1983009808
        %v1527 = vunpack.c.0.s8 %v1526
        %v1528 = vlaneseq
        %v1529 = vshrl.u32 %v1528, 7
        %v1530 = vsub.s32 %v1527, %v1529
        %v1531 = vrot.slane %v1517, %v1530
        %v1532 = vcombine.low %v1508, %v1524
        %v1533 = vcombine.high %v1508, %v1524
        %v1535 = vunpack.c.l.s4 1934713408
        %v1536 = vunpack.c.0.s8 %v1535
        %v1537 = vlaneseq
        %v1538 = vshrl.u32 %v1537, 7
        %v1539 = vsub.s32 %v1536, %v1538
        %v1540 = vrot.slane %v1532, %v1539
        %v1542 = vunpack.c.l.s4 1934713408
        %v1543 = vunpack.c.0.s8 %v1542
        %v1544 = vlaneseq
        %v1545 = vshrl.u32 %v1544, 7
        %v1546 = vsub.s32 %v1543, %v1545
        %v1547 = vrot.slane %v1533, %v1546
        %v1548 = vcombine.low %v1515, %v1531
        %v1549 = vcombine.high %v1515, %v1531
        %v1551 = vunpack.c.l.s4 1934713408
        %v1552 = vunpack.c.0.s8 %v1551
        %v1553 = vlaneseq
        %v1554 = vshrl.u32 %v1553, 7
        %v1555 = vsub.s32 %v1552, %v1554
        %v1556 = vrot.slane %v1548, %v1555
        %v1558 = vunpack.c.l.s4 1934713408
        %v1559 = vunpack.c.0.s8 %v1558
        %v1560 = vlaneseq
        %v1561 = vshrl.u32 %v1560, 7
        %v1562 = vsub.s32 %v1559, %v1561
        %v1563 = vrot.slane %v1549, %v1562
        %v1564 = vcombine.high %v1540, 0.0
        %v1565 = vcombine.high %v1547, 0.0
        %v1566 = vcombine.high %v1556, 0.0
        %v1567 = vcombine.high %v1563, 0.0
        %v1568 = vcombine.low %v1117, %v1491
        %v1569 = vcombine.high %v1117, %v1491
        %v1571 = vunpack.c.l.s4 1983009808
        %v1572 = vunpack.c.0.s8 %v1571
        %v1573 = vlaneseq
        %v1574 = vshrl.u32 %v1573, 7
        %v1575 = vsub.s32 %v1572, %v1574
        %v1576 = vrot.slane %v1568, %v1575
        %v1578 = vunpack.c.l.s4 1983009808
        %v1579 = vunpack.c.0.s8 %v1578
        %v1580 = vlaneseq
        %v1581 = vshrl.u32 %v1580, 7
        %v1582 = vsub.s32 %v1579, %v1581
        %v1583 = vrot.slane %v1569, %v1582
        %v1584 = vcombine.low %v1485, %v1497
        %v1585 = vcombine.high %v1485, %v1497
        %v1587 = vunpack.c.l.s4 1983009808
        %v1588 = vunpack.c.0.s8 %v1587
        %v1589 = vlaneseq
        %v1590 = vshrl.u32 %v1589, 7
        %v1591 = vsub.s32 %v1588, %v1590
        %v1592 = vrot.slane %v1584, %v1591
        %v1594 = vunpack.c.l.s4 1983009808
        %v1595 = vunpack.c.0.s8 %v1594
        %v1596 = vlaneseq
        %v1597 = vshrl.u32 %v1596, 7
        %v1598 = vsub.s32 %v1595, %v1597
        %v1599 = vrot.slane %v1585, %v1598
        %v1600 = vcombine.low %v1576, %v1592
        %v1601 = vcombine.high %v1576, %v1592
        %v1603 = vunpack.c.l.s4 1934713408
        %v1604 = vunpack.c.0.s8 %v1603
        %v1605 = vlaneseq
        %v1606 = vshrl.u32 %v1605, 7
        %v1607 = vsub.s32 %v1604, %v1606
        %v1608 = vrot.slane %v1600, %v1607
        %v1610 = vunpack.c.l.s4 1934713408
        %v1611 = vunpack.c.0.s8 %v1610
        %v1612 = vlaneseq
        %v1613 = vshrl.u32 %v1612, 7
        %v1614 = vsub.s32 %v1611, %v1613
        %v1615 = vrot.slane %v1601, %v1614
        %v1616 = vcombine.low %v1583, %v1599
        %v1617 = vcombine.high %v1583, %v1599
        %v1619 = vunpack.c.l.s4 1934713408
        %v1620 = vunpack.c.0.s8 %v1619
        %v1621 = vlaneseq
        %v1622 = vshrl.u32 %v1621, 7
        %v1623 = vsub.s32 %v1620, %v1622
        %v1624 = vrot.slane %v1616, %v1623
        %v1626 = vunpack.c.l.s4 1934713408
        %v1627 = vunpack.c.0.s8 %v1626
        %v1628 = vlaneseq
        %v1629 = vshrl.u32 %v1628, 7
        %v1630 = vsub.s32 %v1627, %v1629
        %v1631 = vrot.slane %v1617, %v1630
        %v1632 = vcombine.high %v1608, 0.0
        %v1633 = vcombine.high %v1615, 0.0
        %v1634 = vcombine.high %v1624, 0.0
        %v1635 = vcombine.high %v1631, 0.0
        %v1636 = vcombine.low %v1540, %v1547
        %v1638 = vunpack.c.l.s4 1983009808
        %v1639 = vunpack.c.0.s8 %v1638
        %v1640 = vlaneseq
        %v1641 = vshrl.u32 %v1640, 7
        %v1642 = vsub.s32 %v1639, %v1641
        %v1643 = vrot.slane %v1636, %v1642
        %v1644 = vcombine.low %v1564, %v1565
        %v1646 = vunpack.c.l.s4 1983009808
        %v1647 = vunpack.c.0.s8 %v1646
        %v1648 = vlaneseq
        %v1649 = vshrl.u32 %v1648, 7
        %v1650 = vsub.s32 %v1647, %v1649
        %v1651 = vrot.slane %v1644, %v1650
        %v1652 = vcombine.low %v1556, %v1563
        %v1654 = vunpack.c.l.s4 1983009808
        %v1655 = vunpack.c.0.s8 %v1654
        %v1656 = vlaneseq
        %v1657 = vshrl.u32 %v1656, 7
        %v1658 = vsub.s32 %v1655, %v1657
        %v1659 = vrot.slane %v1652, %v1658
        %v1660 = vcombine.low %v1566, %v1567
        %v1662 = vunpack.c.l.s4 1983009808
        %v1663 = vunpack.c.0.s8 %v1662
        %v1664 = vlaneseq
        %v1665 = vshrl.u32 %v1664, 7
        %v1666 = vsub.s32 %v1663, %v1665
        %v1667 = vrot.slane %v1660, %v1666
        %v1668 = vcombine.low %v1643, %v1651
        %v1669 = vcombine.high %v1643, %v1651
        %v1671 = vunpack.c.l.s4 1934713408
        %v1672 = vunpack.c.0.s8 %v1671
        %v1673 = vlaneseq
        %v1674 = vshrl.u32 %v1673, 7
        %v1675 = vsub.s32 %v1672, %v1674
        %v1676 = vrot.slane %v1668, %v1675
        %v1678 = vunpack.c.l.s4 1934713408
        %v1679 = vunpack.c.0.s8 %v1678
        %v1680 = vlaneseq
        %v1681 = vshrl.u32 %v1680, 7
        %v1682 = vsub.s32 %v1679, %v1681
        %v1683 = vrot.slane %v1669, %v1682
        %v1684 = vcombine.low %v1659, %v1667
        %v1685 = vcombine.high %v1659, %v1667
        %v1687 = vunpack.c.l.s4 1934713408
        %v1688 = vunpack.c.0.s8 %v1687
        %v1689 = vlaneseq
        %v1690 = vshrl.u32 %v1689, 7
        %v1691 = vsub.s32 %v1688, %v1690
        %v1692 = vrot.slane %v1684, %v1691
        %v1694 = vunpack.c.l.s4 1934713408
        %v1695 = vunpack.c.0.s8 %v1694
        %v1696 = vlaneseq
        %v1697 = vshrl.u32 %v1696, 7
        %v1698 = vsub.s32 %v1695, %v1697
        %v1699 = vrot.slane %v1685, %v1698
        %v1700 = vcombine.low %v1676, %v1692
        %v1701 = vcombine.high %v1676, %v1692
        %v1702 = vcombine.low %v1683, %v1699
        %v1703 = vcombine.high %v1683, %v1699
        %v1704 = vcombine.low %v1608, %v1615
        %v1706 = vunpack.c.l.s4 1983009808
        %v1707 = vunpack.c.0.s8 %v1706
        %v1708 = vlaneseq
        %v1709 = vshrl.u32 %v1708, 7
        %v1710 = vsub.s32 %v1707, %v1709
        %v1711 = vrot.slane %v1704, %v1710
        %v1712 = vcombine.low %v1632, %v1633
        %v1714 = vunpack.c.l.s4 1983009808
        %v1715 = vunpack.c.0.s8 %v1714
        %v1716 = vlaneseq
        %v1717 = vshrl.u32 %v1716, 7
        %v1718 = vsub.s32 %v1715, %v1717
        %v1719 = vrot.slane %v1712, %v1718
        %v1720 = vcombine.low %v1624, %v1631
        %v1722 = vunpack.c.l.s4 1983009808
        %v1723 = vunpack.c.0.s8 %v1722
        %v1724 = vlaneseq
        %v1725 = vshrl.u32 %v1724, 7
        %v1726 = vsub.s32 %v1723, %v1725
        %v1727 = vrot.slane %v1720, %v1726
        %v1728 = vcombine.low %v1634, %v1635
        %v1730 = vunpack.c.l.s4 1983009808
        %v1731 = vunpack.c.0.s8 %v1730
        %v1732 = vlaneseq
        %v1733 = vshrl.u32 %v1732, 7
        %v1734 = vsub.s32 %v1731, %v1733
        %v1735 = vrot.slane %v1728, %v1734
        %v1736 = vcombine.low %v1711, %v1719
        %v1737 = vcombine.high %v1711, %v1719
        %v1739 = vunpack.c.l.s4 1934713408
        %v1740 = vunpack.c.0.s8 %v1739
        %v1741 = vlaneseq
        %v1742 = vshrl.u32 %v1741, 7
        %v1743 = vsub.s32 %v1740, %v1742
        %v1744 = vrot.slane %v1736, %v1743
        %v1746 = vunpack.c.l.s4 1934713408
        %v1747 = vunpack.c.0.s8 %v1746
        %v1748 = vlaneseq
        %v1749 = vshrl.u32 %v1748, 7
        %v1750 = vsub.s32 %v1747, %v1749
        %v1751 = vrot.slane %v1737, %v1750
        %v1752 = vcombine.low %v1727, %v1735
        %v1753 = vcombine.high %v1727, %v1735
        %v1755 = vunpack.c.l.s4 1934713408
        %v1756 = vunpack.c.0.s8 %v1755
        %v1757 = vlaneseq
        %v1758 = vshrl.u32 %v1757, 7
        %v1759 = vsub.s32 %v1756, %v1758
        %v1760 = vrot.slane %v1752, %v1759
        %v1762 = vunpack.c.l.s4 1934713408
        %v1763 = vunpack.c.0.s8 %v1762
        %v1764 = vlaneseq
        %v1765 = vshrl.u32 %v1764, 7
        %v1766 = vsub.s32 %v1763, %v1765
        %v1767 = vrot.slane %v1753, %v1766
        %v1768 = vcombine.low %v1744, %v1760
        %v1769 = vcombine.high %v1744, %v1760
        %v1770 = vcombine.low %v1751, %v1767
        %v1771 = vcombine.high %v1751, %v1767
        %1774 = vrot.lane.b32.xlu0 %v1164, 96
        %v1775 = vpop.permute.xlu0 %1774
        %1776 = vrot.lane.b32.xlu0 %v1167, 96
        %v1777 = vpop.permute.xlu0 %1776
        %1780 = vrot.lane.b32.xlu0 %v1164, 64
        %v1781 = vpop.permute.xlu0 %1780
        %1782 = vrot.lane.b32.xlu0 %v1167, 64
        %v1783 = vpop.permute.xlu0 %1782
        %1786 = vrot.lane.b32.xlu0 %v1164, 32
        %v1787 = vpop.permute.xlu0 %1786
        %1788 = vrot.lane.b32.xlu0 %v1167, 32
        %v1789 = vpop.permute.xlu0 %1788
        %v1792 = vcombine.low %v1164, %v1781
        %v1793 = vcombine.high %v1164, %v1781
        %v1795 = vunpack.c.l.s4 1983009808
        %v1796 = vunpack.c.0.s8 %v1795
        %v1797 = vlaneseq
        %v1798 = vshrl.u32 %v1797, 7
        %v1799 = vsub.s32 %v1796, %v1798
        %v1800 = vrot.slane %v1792, %v1799
        %v1802 = vunpack.c.l.s4 1983009808
        %v1803 = vunpack.c.0.s8 %v1802
        %v1804 = vlaneseq
        %v1805 = vshrl.u32 %v1804, 7
        %v1806 = vsub.s32 %v1803, %v1805
        %v1807 = vrot.slane %v1793, %v1806
        %v1808 = vcombine.low %v1775, %v1787
        %v1809 = vcombine.high %v1775, %v1787
        %v1811 = vunpack.c.l.s4 1983009808
        %v1812 = vunpack.c.0.s8 %v1811
        %v1813 = vlaneseq
        %v1814 = vshrl.u32 %v1813, 7
        %v1815 = vsub.s32 %v1812, %v1814
        %v1816 = vrot.slane %v1808, %v1815
        %v1818 = vunpack.c.l.s4 1983009808
        %v1819 = vunpack.c.0.s8 %v1818
        %v1820 = vlaneseq
        %v1821 = vshrl.u32 %v1820, 7
        %v1822 = vsub.s32 %v1819, %v1821
        %v1823 = vrot.slane %v1809, %v1822
        %v1824 = vcombine.low %v1800, %v1816
        %v1825 = vcombine.high %v1800, %v1816
        %v1827 = vunpack.c.l.s4 1934713408
        %v1828 = vunpack.c.0.s8 %v1827
        %v1829 = vlaneseq
        %v1830 = vshrl.u32 %v1829, 7
        %v1831 = vsub.s32 %v1828, %v1830
        %v1832 = vrot.slane %v1824, %v1831
        %v1834 = vunpack.c.l.s4 1934713408
        %v1835 = vunpack.c.0.s8 %v1834
        %v1836 = vlaneseq
        %v1837 = vshrl.u32 %v1836, 7
        %v1838 = vsub.s32 %v1835, %v1837
        %v1839 = vrot.slane %v1825, %v1838
        %v1840 = vcombine.low %v1807, %v1823
        %v1841 = vcombine.high %v1807, %v1823
        %v1843 = vunpack.c.l.s4 1934713408
        %v1844 = vunpack.c.0.s8 %v1843
        %v1845 = vlaneseq
        %v1846 = vshrl.u32 %v1845, 7
        %v1847 = vsub.s32 %v1844, %v1846
        %v1848 = vrot.slane %v1840, %v1847
        %v1850 = vunpack.c.l.s4 1934713408
        %v1851 = vunpack.c.0.s8 %v1850
        %v1852 = vlaneseq
        %v1853 = vshrl.u32 %v1852, 7
        %v1854 = vsub.s32 %v1851, %v1853
        %v1855 = vrot.slane %v1841, %v1854
        %v1856 = vcombine.high %v1832, 0.0
        %v1857 = vcombine.high %v1839, 0.0
        %v1858 = vcombine.high %v1848, 0.0
        %v1859 = vcombine.high %v1855, 0.0
        %v1860 = vcombine.low %v1167, %v1783
        %v1861 = vcombine.high %v1167, %v1783
        %v1863 = vunpack.c.l.s4 1983009808
        %v1864 = vunpack.c.0.s8 %v1863
        %v1865 = vlaneseq
        %v1866 = vshrl.u32 %v1865, 7
        %v1867 = vsub.s32 %v1864, %v1866
        %v1868 = vrot.slane %v1860, %v1867
        %v1870 = vunpack.c.l.s4 1983009808
        %v1871 = vunpack.c.0.s8 %v1870
        %v1872 = vlaneseq
        %v1873 = vshrl.u32 %v1872, 7
        %v1874 = vsub.s32 %v1871, %v1873
        %v1875 = vrot.slane %v1861, %v1874
        %v1876 = vcombine.low %v1777, %v1789
        %v1877 = vcombine.high %v1777, %v1789
        %v1879 = vunpack.c.l.s4 1983009808
        %v1880 = vunpack.c.0.s8 %v1879
        %v1881 = vlaneseq
        %v1882 = vshrl.u32 %v1881, 7
        %v1883 = vsub.s32 %v1880, %v1882
        %v1884 = vrot.slane %v1876, %v1883
        %v1886 = vunpack.c.l.s4 1983009808
        %v1887 = vunpack.c.0.s8 %v1886
        %v1888 = vlaneseq
        %v1889 = vshrl.u32 %v1888, 7
        %v1890 = vsub.s32 %v1887, %v1889
        %v1891 = vrot.slane %v1877, %v1890
        %v1892 = vcombine.low %v1868, %v1884
        %v1893 = vcombine.high %v1868, %v1884
        %v1895 = vunpack.c.l.s4 1934713408
        %v1896 = vunpack.c.0.s8 %v1895
        %v1897 = vlaneseq
        %v1898 = vshrl.u32 %v1897, 7
        %v1899 = vsub.s32 %v1896, %v1898
        %v1900 = vrot.slane %v1892, %v1899
        %v1902 = vunpack.c.l.s4 1934713408
        %v1903 = vunpack.c.0.s8 %v1902
        %v1904 = vlaneseq
        %v1905 = vshrl.u32 %v1904, 7
        %v1906 = vsub.s32 %v1903, %v1905
        %v1907 = vrot.slane %v1893, %v1906
        %v1908 = vcombine.low %v1875, %v1891
        %v1909 = vcombine.high %v1875, %v1891
        %v1911 = vunpack.c.l.s4 1934713408
        %v1912 = vunpack.c.0.s8 %v1911
        %v1913 = vlaneseq
        %v1914 = vshrl.u32 %v1913, 7
        %v1915 = vsub.s32 %v1912, %v1914
        %v1916 = vrot.slane %v1908, %v1915
        %v1918 = vunpack.c.l.s4 1934713408
        %v1919 = vunpack.c.0.s8 %v1918
        %v1920 = vlaneseq
        %v1921 = vshrl.u32 %v1920, 7
        %v1922 = vsub.s32 %v1919, %v1921
        %v1923 = vrot.slane %v1909, %v1922
        %v1924 = vcombine.high %v1900, 0.0
        %v1925 = vcombine.high %v1907, 0.0
        %v1926 = vcombine.high %v1916, 0.0
        %v1927 = vcombine.high %v1923, 0.0
        %v1928 = vcombine.low %v1832, %v1839
        %v1930 = vunpack.c.l.s4 1983009808
        %v1931 = vunpack.c.0.s8 %v1930
        %v1932 = vlaneseq
        %v1933 = vshrl.u32 %v1932, 7
        %v1934 = vsub.s32 %v1931, %v1933
        %v1935 = vrot.slane %v1928, %v1934
        %v1936 = vcombine.low %v1856, %v1857
        %v1938 = vunpack.c.l.s4 1983009808
        %v1939 = vunpack.c.0.s8 %v1938
        %v1940 = vlaneseq
        %v1941 = vshrl.u32 %v1940, 7
        %v1942 = vsub.s32 %v1939, %v1941
        %v1943 = vrot.slane %v1936, %v1942
        %v1944 = vcombine.low %v1848, %v1855
        %v1946 = vunpack.c.l.s4 1983009808
        %v1947 = vunpack.c.0.s8 %v1946
        %v1948 = vlaneseq
        %v1949 = vshrl.u32 %v1948, 7
        %v1950 = vsub.s32 %v1947, %v1949
        %v1951 = vrot.slane %v1944, %v1950
        %v1952 = vcombine.low %v1858, %v1859
        %v1954 = vunpack.c.l.s4 1983009808
        %v1955 = vunpack.c.0.s8 %v1954
        %v1956 = vlaneseq
        %v1957 = vshrl.u32 %v1956, 7
        %v1958 = vsub.s32 %v1955, %v1957
        %v1959 = vrot.slane %v1952, %v1958
        %v1960 = vcombine.low %v1935, %v1943
        %v1961 = vcombine.high %v1935, %v1943
        %v1963 = vunpack.c.l.s4 1934713408
        %v1964 = vunpack.c.0.s8 %v1963
        %v1965 = vlaneseq
        %v1966 = vshrl.u32 %v1965, 7
        %v1967 = vsub.s32 %v1964, %v1966
        %v1968 = vrot.slane %v1960, %v1967
        %v1970 = vunpack.c.l.s4 1934713408
        %v1971 = vunpack.c.0.s8 %v1970
        %v1972 = vlaneseq
        %v1973 = vshrl.u32 %v1972, 7
        %v1974 = vsub.s32 %v1971, %v1973
        %v1975 = vrot.slane %v1961, %v1974
        %v1976 = vcombine.low %v1951, %v1959
        %v1977 = vcombine.high %v1951, %v1959
        %v1979 = vunpack.c.l.s4 1934713408
        %v1980 = vunpack.c.0.s8 %v1979
        %v1981 = vlaneseq
        %v1982 = vshrl.u32 %v1981, 7
        %v1983 = vsub.s32 %v1980, %v1982
        %v1984 = vrot.slane %v1976, %v1983
        %v1986 = vunpack.c.l.s4 1934713408
        %v1987 = vunpack.c.0.s8 %v1986
        %v1988 = vlaneseq
        %v1989 = vshrl.u32 %v1988, 7
        %v1990 = vsub.s32 %v1987, %v1989
        %v1991 = vrot.slane %v1977, %v1990
        %v1992 = vcombine.low %v1968, %v1984
        %v1993 = vcombine.high %v1968, %v1984
        %v1994 = vcombine.low %v1975, %v1991
        %v1995 = vcombine.high %v1975, %v1991
        %v1996 = vcombine.low %v1900, %v1907
        %v1998 = vunpack.c.l.s4 1983009808
        %v1999 = vunpack.c.0.s8 %v1998
        %v2000 = vlaneseq
        %v2001 = vshrl.u32 %v2000, 7
        %v2002 = vsub.s32 %v1999, %v2001
        %v2003 = vrot.slane %v1996, %v2002
        %v2004 = vcombine.low %v1924, %v1925
        %v2006 = vunpack.c.l.s4 1983009808
        %v2007 = vunpack.c.0.s8 %v2006
        %v2008 = vlaneseq
        %v2009 = vshrl.u32 %v2008, 7
        %v2010 = vsub.s32 %v2007, %v2009
        %v2011 = vrot.slane %v2004, %v2010
        %v2012 = vcombine.low %v1916, %v1923
        %v2014 = vunpack.c.l.s4 1983009808
        %v2015 = vunpack.c.0.s8 %v2014
        %v2016 = vlaneseq
        %v2017 = vshrl.u32 %v2016, 7
        %v2018 = vsub.s32 %v2015, %v2017
        %v2019 = vrot.slane %v2012, %v2018
        %v2020 = vcombine.low %v1926, %v1927
        %v2022 = vunpack.c.l.s4 1983009808
        %v2023 = vunpack.c.0.s8 %v2022
        %v2024 = vlaneseq
        %v2025 = vshrl.u32 %v2024, 7
        %v2026 = vsub.s32 %v2023, %v2025
        %v2027 = vrot.slane %v2020, %v2026
        %v2028 = vcombine.low %v2003, %v2011
        %v2029 = vcombine.high %v2003, %v2011
        %v2031 = vunpack.c.l.s4 1934713408
        %v2032 = vunpack.c.0.s8 %v2031
        %v2033 = vlaneseq
        %v2034 = vshrl.u32 %v2033, 7
        %v2035 = vsub.s32 %v2032, %v2034
        %v2036 = vrot.slane %v2028, %v2035
        %v2038 = vunpack.c.l.s4 1934713408
        %v2039 = vunpack.c.0.s8 %v2038
        %v2040 = vlaneseq
        %v2041 = vshrl.u32 %v2040, 7
        %v2042 = vsub.s32 %v2039, %v2041
        %v2043 = vrot.slane %v2029, %v2042
        %v2044 = vcombine.low %v2019, %v2027
        %v2045 = vcombine.high %v2019, %v2027
        %v2047 = vunpack.c.l.s4 1934713408
        %v2048 = vunpack.c.0.s8 %v2047
        %v2049 = vlaneseq
        %v2050 = vshrl.u32 %v2049, 7
        %v2051 = vsub.s32 %v2048, %v2050
        %v2052 = vrot.slane %v2044, %v2051
        %v2054 = vunpack.c.l.s4 1934713408
        %v2055 = vunpack.c.0.s8 %v2054
        %v2056 = vlaneseq
        %v2057 = vshrl.u32 %v2056, 7
        %v2058 = vsub.s32 %v2055, %v2057
        %v2059 = vrot.slane %v2045, %v2058
        %v2060 = vcombine.low %v2036, %v2052
        %v2061 = vcombine.high %v2036, %v2052
        %v2062 = vcombine.low %v2043, %v2059
        %v2063 = vcombine.high %v2043, %v2059
        %vm2064 = vcmask 261120
        %v2066 = vsel %vm2064, %v1408, 0
        %v2069 = vsel %vm2064, %v1476, 0
        %v2072 = vsel %vm2064, %v1700, 0
        %v2075 = vsel %vm2064, %v1768, 0
        %2077 = vmatprep.subr.mxu0 0.0
        %2078 = vmatpush1.xpose.msra.mxu0 %v2072
        %2079 = vmatprep.subr.mxu0 0.0
        %2080 = vmatpush1.xpose.msra.mxu0 %v2075
        %2081 = vmatprep.subr.mxu0 0.0
        %2082 = vmatpush1.xpose.msra.mxu0 0.0
        %2083 = vmatprep.subr.mxu0 0.0
        %2084 = vmatpush1.xpose.msra.mxu0 0.0
        %2085 = vmatprep.subr.mxu0 0.0
        %2086 = vmatpush1.xpose.msra.mxu0 0.0
        %2087 = vmatprep.subr.mxu0 0.0
        %2088 = vmatpush1.xpose.msra.mxu0 0.0
        %2089 = vmatprep.subr.mxu0 0.0
        %2090 = vmatpush1.xpose.msra.mxu0 0.0
        %2091 = vmatprep.subr.mxu0 0.0
        %2092 = vmatpush1.xpose.msra.mxu0 0.0
        %2093 = vmatprep.subr.mxu0 0.0
        %2094 = vmatpush1.xpose.msra.mxu0 0.0
        %2095 = vmatprep.subr.mxu0 0.0
        %2096 = vmatpush1.xpose.msra.mxu0 0.0
        %2097 = vmatprep.subr.mxu0 0.0
        %2098 = vmatpush1.xpose.msra.mxu0 0.0
        %2099 = vmatprep.subr.mxu0 0.0
        %2100 = vmatpush1.xpose.msra.mxu0 0.0
        %2101 = vmatprep.subr.mxu0 0.0
        %2102 = vmatpush1.xpose.msra.mxu0 0.0
        %2103 = vmatprep.subr.mxu0 0.0
        %2104 = vmatpush1.xpose.msra.mxu0 0.0
        %2105 = vmatprep.subr.mxu0 0.0
        %2106 = vmatpush1.xpose.msra.mxu0 0.0
        %2107 = vmatprep.subr.mxu0 0.0
        %2108 = vmatpush1.xpose.msra.mxu0 0.0
        %2109 = vmatprep.subr.mxu0 0.0
        %2110 = vmatpush1.xpose.msra.mxu0 0.0
        %2111 = vmatprep.subr.mxu0 0.0
        %2112 = vmatpush1.xpose.msra.mxu0 0.0
        %2113 = vmatprep.subr.mxu0 0.0
        %2114 = vmatpush1.xpose.msra.mxu0 0.0
        %2115 = vmatprep.subr.mxu0 0.0
        %2116 = vmatpush1.xpose.msra.mxu0 0.0
        %2117 = vmatprep.subr.mxu0 0.0
        %2118 = vmatpush1.xpose.msra.mxu0 0.0
        %2119 = vmatprep.subr.mxu0 0.0
        %2120 = vmatpush1.xpose.msra.mxu0 0.0
        %2121 = vmatprep.subr.mxu0 0.0
        %2122 = vmatpush1.xpose.msra.mxu0 0.0
        %2123 = vmatprep.subr.mxu0 0.0
        %2124 = vmatpush1.xpose.msra.mxu0 0.0
        %2125 = vmatprep.subr.mxu0 0.0
        %2126 = vmatpush1.xpose.msra.mxu0 0.0
        %2127 = vmatprep.subr.mxu0 0.0
        %2128 = vmatpush1.xpose.msra.mxu0 0.0
        %2129 = vmatprep.subr.mxu0 0.0
        %2130 = vmatpush1.xpose.msra.mxu0 0.0
        %2131 = vmatprep.subr.mxu0 0.0
        %2132 = vmatpush1.xpose.msra.mxu0 0.0
        %2133 = vmatprep.subr.mxu0 0.0
        %2134 = vmatpush1.xpose.msra.mxu0 0.0
        %2135 = vmatprep.subr.mxu0 0.0
        %2136 = vmatpush1.xpose.msra.mxu0 0.0
        %2137 = vmatprep.subr.mxu0 0.0
        %2138 = vmatpush1.xpose.msra.mxu0 0.0
        %2139 = vmatprep.subr.mxu0 0.0
        %2140 = vmatpush1.xpose.msra.mxu0 0.0
        %2141 = vmatprep.mubr.f32.mxu0 0.0
        %2142 = vmatmul.mubr.f32.gmra.mrb[0].mxu0 %v2066
        %v2143 = vpop.f32.mrb[0].mxu0
        %v2144 = vadd.f32 0.0, %v2143
        %v2145 = vpop.f32.mrb[0].mxu0
        %2146 = vmatprep.mubr.f32.mxu0 0.0
        %2147 = vmatmul.mubr.f32.gmra.mrb[0].mxu0 %v2069
        %v2148 = vpop.f32.mrb[0].mxu0
        %v2149 = vadd.f32 0.0, %v2148
        %v2150 = vpop.f32.mrb[0].mxu0
        %2151 = vdwg.mxu0
        %v2153 = vsel %vm2064, %v1409, 0
        %v2156 = vsel %vm2064, %v1477, 0
        %v2159 = vsel %vm2064, %v1701, 0
        %v2162 = vsel %vm2064, %v1769, 0
        %2164 = vmatprep.subr.mxu0 0.0
        %2165 = vmatpush1.xpose.msra.mxu0 %v2159
        %2166 = vmatprep.subr.mxu0 0.0
        %2167 = vmatpush1.xpose.msra.mxu0 %v2162
        %2168 = vmatprep.subr.mxu0 0.0
        %2169 = vmatpush1.xpose.msra.mxu0 0.0
        %2170 = vmatprep.subr.mxu0 0.0
        %2171 = vmatpush1.xpose.msra.mxu0 0.0
        %2172 = vmatprep.subr.mxu0 0.0
        %2173 = vmatpush1.xpose.msra.mxu0 0.0
        %2174 = vmatprep.subr.mxu0 0.0
        %2175 = vmatpush1.xpose.msra.mxu0 0.0
        %2176 = vmatprep.subr.mxu0 0.0
        %2177 = vmatpush1.xpose.msra.mxu0 0.0
        %2178 = vmatprep.subr.mxu0 0.0
        %2179 = vmatpush1.xpose.msra.mxu0 0.0
        %2180 = vmatprep.subr.mxu0 0.0
        %2181 = vmatpush1.xpose.msra.mxu0 0.0
        %2182 = vmatprep.subr.mxu0 0.0
        %2183 = vmatpush1.xpose.msra.mxu0 0.0
        %2184 = vmatprep.subr.mxu0 0.0
        %2185 = vmatpush1.xpose.msra.mxu0 0.0
        %2186 = vmatprep.subr.mxu0 0.0
        %2187 = vmatpush1.xpose.msra.mxu0 0.0
        %2188 = vmatprep.subr.mxu0 0.0
        %2189 = vmatpush1.xpose.msra.mxu0 0.0
        %2190 = vmatprep.subr.mxu0 0.0
        %2191 = vmatpush1.xpose.msra.mxu0 0.0
        %2192 = vmatprep.subr.mxu0 0.0
        %2193 = vmatpush1.xpose.msra.mxu0 0.0
        %2194 = vmatprep.subr.mxu0 0.0
        %2195 = vmatpush1.xpose.msra.mxu0 0.0
        %2196 = vmatprep.subr.mxu0 0.0
        %2197 = vmatpush1.xpose.msra.mxu0 0.0
        %2198 = vmatprep.subr.mxu0 0.0
        %2199 = vmatpush1.xpose.msra.mxu0 0.0
        %2200 = vmatprep.subr.mxu0 0.0
        %2201 = vmatpush1.xpose.msra.mxu0 0.0
        %2202 = vmatprep.subr.mxu0 0.0
        %2203 = vmatpush1.xpose.msra.mxu0 0.0
        %2204 = vmatprep.subr.mxu0 0.0
        %2205 = vmatpush1.xpose.msra.mxu0 0.0
        %2206 = vmatprep.subr.mxu0 0.0
        %2207 = vmatpush1.xpose.msra.mxu0 0.0
        %2208 = vmatprep.subr.mxu0 0.0
        %2209 = vmatpush1.xpose.msra.mxu0 0.0
        %2210 = vmatprep.subr.mxu0 0.0
        %2211 = vmatpush1.xpose.msra.mxu0 0.0
        %2212 = vmatprep.subr.mxu0 0.0
        %2213 = vmatpush1.xpose.msra.mxu0 0.0
        %2214 = vmatprep.subr.mxu0 0.0
        %2215 = vmatpush1.xpose.msra.mxu0 0.0
        %2216 = vmatprep.subr.mxu0 0.0
        %2217 = vmatpush1.xpose.msra.mxu0 0.0
        %2218 = vmatprep.subr.mxu0 0.0
        %2219 = vmatpush1.xpose.msra.mxu0 0.0
        %2220 = vmatprep.subr.mxu0 0.0
        %2221 = vmatpush1.xpose.msra.mxu0 0.0
        %2222 = vmatprep.subr.mxu0 0.0
        %2223 = vmatpush1.xpose.msra.mxu0 0.0
        %2224 = vmatprep.subr.mxu0 0.0
        %2225 = vmatpush1.xpose.msra.mxu0 0.0
        %2226 = vmatprep.subr.mxu0 0.0
        %2227 = vmatpush1.xpose.msra.mxu0 0.0
        %2228 = vmatprep.mubr.f32.mxu0 0.0
        %2229 = vmatmul.mubr.f32.gmra.mrb[0].mxu0 %v2153
        %v2230 = vpop.f32.mrb[0].mxu0
        %v2231 = vadd.f32 0.0, %v2230
        %v2232 = vpop.f32.mrb[0].mxu0
        %2233 = vmatprep.mubr.f32.mxu0 0.0
        %2234 = vmatmul.mubr.f32.gmra.mrb[0].mxu0 %v2156
        %v2235 = vpop.f32.mrb[0].mxu0
        %v2236 = vadd.f32 0.0, %v2235
        %v2237 = vpop.f32.mrb[0].mxu0
        %2238 = vdwg.mxu0
        %v2240 = vsel %vm2064, %v1410, 0
        %v2243 = vsel %vm2064, %v1478, 0
        %v2246 = vsel %vm2064, %v1702, 0
        %v2249 = vsel %vm2064, %v1770, 0
        %2251 = vmatprep.subr.mxu0 0.0
        %2252 = vmatpush1.xpose.msra.mxu0 %v2246
        %2253 = vmatprep.subr.mxu0 0.0
        %2254 = vmatpush1.xpose.msra.mxu0 %v2249
        %2255 = vmatprep.subr.mxu0 0.0
        %2256 = vmatpush1.xpose.msra.mxu0 0.0
        %2257 = vmatprep.subr.mxu0 0.0
        %2258 = vmatpush1.xpose.msra.mxu0 0.0
        %2259 = vmatprep.subr.mxu0 0.0
        %2260 = vmatpush1.xpose.msra.mxu0 0.0
        %2261 = vmatprep.subr.mxu0 0.0
        %2262 = vmatpush1.xpose.msra.mxu0 0.0
        %2263 = vmatprep.subr.mxu0 0.0
        %2264 = vmatpush1.xpose.msra.mxu0 0.0
        %2265 = vmatprep.subr.mxu0 0.0
        %2266 = vmatpush1.xpose.msra.mxu0 0.0
        %2267 = vmatprep.subr.mxu0 0.0
        %2268 = vmatpush1.xpose.msra.mxu0 0.0
        %2269 = vmatprep.subr.mxu0 0.0
        %2270 = vmatpush1.xpose.msra.mxu0 0.0
        %2271 = vmatprep.subr.mxu0 0.0
        %2272 = vmatpush1.xpose.msra.mxu0 0.0
        %2273 = vmatprep.subr.mxu0 0.0
        %2274 = vmatpush1.xpose.msra.mxu0 0.0
        %2275 = vmatprep.subr.mxu0 0.0
        %2276 = vmatpush1.xpose.msra.mxu0 0.0
        %2277 = vmatprep.subr.mxu0 0.0
        %2278 = vmatpush1.xpose.msra.mxu0 0.0
        %2279 = vmatprep.subr.mxu0 0.0
        %2280 = vmatpush1.xpose.msra.mxu0 0.0
        %2281 = vmatprep.subr.mxu0 0.0
        %2282 = vmatpush1.xpose.msra.mxu0 0.0
        %2283 = vmatprep.subr.mxu0 0.0
        %2284 = vmatpush1.xpose.msra.mxu0 0.0
        %2285 = vmatprep.subr.mxu0 0.0
        %2286 = vmatpush1.xpose.msra.mxu0 0.0
        %2287 = vmatprep.subr.mxu0 0.0
        %2288 = vmatpush1.xpose.msra.mxu0 0.0
        %2289 = vmatprep.subr.mxu0 0.0
        %2290 = vmatpush1.xpose.msra.mxu0 0.0
        %2291 = vmatprep.subr.mxu0 0.0
        %2292 = vmatpush1.xpose.msra.mxu0 0.0
        %2293 = vmatprep.subr.mxu0 0.0
        %2294 = vmatpush1.xpose.msra.mxu0 0.0
        %2295 = vmatprep.subr.mxu0 0.0
        %2296 = vmatpush1.xpose.msra.mxu0 0.0
        %2297 = vmatprep.subr.mxu0 0.0
        %2298 = vmatpush1.xpose.msra.mxu0 0.0
        %2299 = vmatprep.subr.mxu0 0.0
        %2300 = vmatpush1.xpose.msra.mxu0 0.0
        %2301 = vmatprep.subr.mxu0 0.0
        %2302 = vmatpush1.xpose.msra.mxu0 0.0
        %2303 = vmatprep.subr.mxu0 0.0
        %2304 = vmatpush1.xpose.msra.mxu0 0.0
        %2305 = vmatprep.subr.mxu0 0.0
        %2306 = vmatpush1.xpose.msra.mxu0 0.0
        %2307 = vmatprep.subr.mxu0 0.0
        %2308 = vmatpush1.xpose.msra.mxu0 0.0
        %2309 = vmatprep.subr.mxu0 0.0
        %2310 = vmatpush1.xpose.msra.mxu0 0.0
        %2311 = vmatprep.subr.mxu0 0.0
        %2312 = vmatpush1.xpose.msra.mxu0 0.0
        %2313 = vmatprep.subr.mxu0 0.0
        %2314 = vmatpush1.xpose.msra.mxu0 0.0
        %2315 = vmatprep.mubr.f32.mxu0 0.0
        %2316 = vmatmul.mubr.f32.gmra.mrb[0].mxu0 %v2240
        %v2317 = vpop.f32.mrb[0].mxu0
        %v2318 = vadd.f32 0.0, %v2317
        %v2319 = vpop.f32.mrb[0].mxu0
        %2320 = vmatprep.mubr.f32.mxu0 0.0
        %2321 = vmatmul.mubr.f32.gmra.mrb[0].mxu0 %v2243
        %v2322 = vpop.f32.mrb[0].mxu0
        %v2323 = vadd.f32 0.0, %v2322
        %v2324 = vpop.f32.mrb[0].mxu0
        %2325 = vdwg.mxu0
        %v2327 = vsel %vm2064, %v1411, 0
        %v2330 = vsel %vm2064, %v1479, 0
        %v2333 = vsel %vm2064, %v1703, 0
        %v2336 = vsel %vm2064, %v1771, 0
        %2338 = vmatprep.subr.mxu0 0.0
        %2339 = vmatpush1.xpose.msra.mxu0 %v2333
        %2340 = vmatprep.subr.mxu0 0.0
        %2341 = vmatpush1.xpose.msra.mxu0 %v2336
        %2342 = vmatprep.subr.mxu0 0.0
        %2343 = vmatpush1.xpose.msra.mxu0 0.0
        %2344 = vmatprep.subr.mxu0 0.0
        %2345 = vmatpush1.xpose.msra.mxu0 0.0
        %2346 = vmatprep.subr.mxu0 0.0
        %2347 = vmatpush1.xpose.msra.mxu0 0.0
        %2348 = vmatprep.subr.mxu0 0.0
        %2349 = vmatpush1.xpose.msra.mxu0 0.0
        %2350 = vmatprep.subr.mxu0 0.0
        %2351 = vmatpush1.xpose.msra.mxu0 0.0
        %2352 = vmatprep.subr.mxu0 0.0
        %2353 = vmatpush1.xpose.msra.mxu0 0.0
        %2354 = vmatprep.subr.mxu0 0.0
        %2355 = vmatpush1.xpose.msra.mxu0 0.0
        %2356 = vmatprep.subr.mxu0 0.0
        %2357 = vmatpush1.xpose.msra.mxu0 0.0
        %2358 = vmatprep.subr.mxu0 0.0
        %2359 = vmatpush1.xpose.msra.mxu0 0.0
        %2360 = vmatprep.subr.mxu0 0.0
        %2361 = vmatpush1.xpose.msra.mxu0 0.0
        %2362 = vmatprep.subr.mxu0 0.0
        %2363 = vmatpush1.xpose.msra.mxu0 0.0
        %2364 = vmatprep.subr.mxu0 0.0
        %2365 = vmatpush1.xpose.msra.mxu0 0.0
        %2366 = vmatprep.subr.mxu0 0.0
        %2367 = vmatpush1.xpose.msra.mxu0 0.0
        %2368 = vmatprep.subr.mxu0 0.0
        %2369 = vmatpush1.xpose.msra.mxu0 0.0
        %2370 = vmatprep.subr.mxu0 0.0
        %2371 = vmatpush1.xpose.msra.mxu0 0.0
        %2372 = vmatprep.subr.mxu0 0.0
        %2373 = vmatpush1.xpose.msra.mxu0 0.0
        %2374 = vmatprep.subr.mxu0 0.0
        %2375 = vmatpush1.xpose.msra.mxu0 0.0
        %2376 = vmatprep.subr.mxu0 0.0
        %2377 = vmatpush1.xpose.msra.mxu0 0.0
        %2378 = vmatprep.subr.mxu0 0.0
        %2379 = vmatpush1.xpose.msra.mxu0 0.0
        %2380 = vmatprep.subr.mxu0 0.0
        %2381 = vmatpush1.xpose.msra.mxu0 0.0
        %2382 = vmatprep.subr.mxu0 0.0
        %2383 = vmatpush1.xpose.msra.mxu0 0.0
        %2384 = vmatprep.subr.mxu0 0.0
        %2385 = vmatpush1.xpose.msra.mxu0 0.0
        %2386 = vmatprep.subr.mxu0 0.0
        %2387 = vmatpush1.xpose.msra.mxu0 0.0
        %2388 = vmatprep.subr.mxu0 0.0
        %2389 = vmatpush1.xpose.msra.mxu0 0.0
        %2390 = vmatprep.subr.mxu0 0.0
        %2391 = vmatpush1.xpose.msra.mxu0 0.0
        %2392 = vmatprep.subr.mxu0 0.0
        %2393 = vmatpush1.xpose.msra.mxu0 0.0
        %2394 = vmatprep.subr.mxu0 0.0
        %2395 = vmatpush1.xpose.msra.mxu0 0.0
        %2396 = vmatprep.subr.mxu0 0.0
        %2397 = vmatpush1.xpose.msra.mxu0 0.0
        %2398 = vmatprep.subr.mxu0 0.0
        %2399 = vmatpush1.xpose.msra.mxu0 0.0
        %2400 = vmatprep.subr.mxu0 0.0
        %2401 = vmatpush1.xpose.msra.mxu0 0.0
        %2402 = vmatprep.mubr.f32.mxu0 0.0
        %2403 = vmatmul.mubr.f32.gmra.mrb[0].mxu0 %v2327
        %v2404 = vpop.f32.mrb[0].mxu0
        %v2405 = vadd.f32 0.0, %v2404
        %v2406 = vpop.f32.mrb[0].mxu0
        %2407 = vmatprep.mubr.f32.mxu0 0.0
        %2408 = vmatmul.mubr.f32.gmra.mrb[0].mxu0 %v2330
        %v2409 = vpop.f32.mrb[0].mxu0
        %v2410 = vadd.f32 0.0, %v2409
        %v2411 = vpop.f32.mrb[0].mxu0
        %2412 = vdwg.mxu0
        %v2413 = vmul.f32 %v2144, 0.17677669
        %v2414 = vmul.f32 %v2149, 0.17677669
        %v2415 = vmul.f32 %v2231, 0.17677669
        %v2416 = vmul.f32 %v2236, 0.17677669
        %v2417 = vmul.f32 %v2318, 0.17677669
        %v2418 = vmul.f32 %v2323, 0.17677669
        %v2419 = vmul.f32 %v2405, 0.17677669
        %v2420 = vmul.f32 %v2410, 0.17677669
        %v2421 = vsel %vm1186, 1, 0
        %v2422 = vsel %vm1187, 1, 0
        %vm2423 = vcmp.eq.s32.totalorder %v2421, 1
        %vm2424 = vcmp.eq.s32.totalorder %v2422, 1
        %v2425 = vsel %vm2423, -1e+30, %v2413
        %v2426 = vsel %vm2424, -1e+30, %v2414
        %v2427 = vsel %vm2423, -1e+30, %v2415
        %v2428 = vsel %vm2424, -1e+30, %v2416
        %v2429 = vsel %vm2423, -1e+30, %v2417
        %v2430 = vsel %vm2424, -1e+30, %v2418
        %v2431 = vsel %vm2423, -1e+30, %v2419
        %v2432 = vsel %vm2424, -1e+30, %v2420
        %vm2433 = vcmask 130048
        %v2434 = vsel %vm2433, %v2425, -inf
        %2435 = vmax.xlane.f32.xlu0 %v2434
        %v2436 = vpop.xlane.xlu0 %2435
        %v2437 = vsel %vm2433, %v2426, -inf
        %2438 = vmax.xlane.f32.xlu0 %v2437
        %v2439 = vpop.xlane.xlu0 %2438
        %v2440 = vsel %vm2433, %v2427, -inf
        %2441 = vmax.xlane.f32.xlu0 %v2440
        %v2442 = vpop.xlane.xlu0 %2441
        %v2443 = vsel %vm2433, %v2428, -inf
        %2444 = vmax.xlane.f32.xlu0 %v2443
        %v2445 = vpop.xlane.xlu0 %2444
        %v2446 = vsel %vm2433, %v2429, -inf
        %2447 = vmax.xlane.f32.xlu0 %v2446
        %v2448 = vpop.xlane.xlu0 %2447
        %v2449 = vsel %vm2433, %v2430, -inf
        %2450 = vmax.xlane.f32.xlu0 %v2449
        %v2451 = vpop.xlane.xlu0 %2450
        %v2452 = vsel %vm2433, %v2431, -inf
        %2453 = vmax.xlane.f32.xlu0 %v2452
        %v2454 = vpop.xlane.xlu0 %2453
        %v2455 = vsel %vm2433, %v2432, -inf
        %2456 = vmax.xlane.f32.xlu0 %v2455
        %v2457 = vpop.xlane.xlu0 %2456
        %v2458 = vsub.f32 %v2425, %v2436
        %v2459 = vsub.f32 %v2426, %v2439
        %v2460 = vsub.f32 %v2427, %v2442
        %v2461 = vsub.f32 %v2428, %v2445
        %v2462 = vsub.f32 %v2429, %v2448
        %v2463 = vsub.f32 %v2430, %v2451
        %v2464 = vsub.f32 %v2431, %v2454
        %v2465 = vsub.f32 %v2432, %v2457
        %v2466 = vmul.f32 %v2458, 1.442695
        %v2467 = vpow.pop %v2466
        %v2468 = vmul.f32 %v2459, 1.442695
        %v2469 = vpow.pop %v2468
        %v2470 = vmul.f32 %v2460, 1.442695
        %v2471 = vpow.pop %v2470
        %v2472 = vmul.f32 %v2461, 1.442695
        %v2473 = vpow.pop %v2472
        %v2474 = vmul.f32 %v2462, 1.442695
        %v2475 = vpow.pop %v2474
        %v2476 = vmul.f32 %v2463, 1.442695
        %v2477 = vpow.pop %v2476
        %v2478 = vmul.f32 %v2464, 1.442695
        %v2479 = vpow.pop %v2478
        %v2480 = vmul.f32 %v2465, 1.442695
        %v2481 = vpow.pop %v2480
        %v2482 = vsel %vm2433, %v2467, 0.0
        %2483 = vadd.xlane.f32.xlu0 %v2482
        %v2484 = vpop.xlane.xlu0 %2483
        %v2485 = vsel %vm2433, %v2469, 0.0
        %2486 = vadd.xlane.f32.xlu0 %v2485
        %v2487 = vpop.xlane.xlu0 %2486
        %v2488 = vsel %vm2433, %v2471, 0.0
        %2489 = vadd.xlane.f32.xlu0 %v2488
        %v2490 = vpop.xlane.xlu0 %2489
        %v2491 = vsel %vm2433, %v2473, 0.0
        %2492 = vadd.xlane.f32.xlu0 %v2491
        %v2493 = vpop.xlane.xlu0 %2492
        %v2494 = vsel %vm2433, %v2475, 0.0
        %2495 = vadd.xlane.f32.xlu0 %v2494
        %v2496 = vpop.xlane.xlu0 %2495
        %v2497 = vsel %vm2433, %v2477, 0.0
        %2498 = vadd.xlane.f32.xlu0 %v2497
        %v2499 = vpop.xlane.xlu0 %2498
        %v2500 = vsel %vm2433, %v2479, 0.0
        %2501 = vadd.xlane.f32.xlu0 %v2500
        %v2502 = vpop.xlane.xlu0 %2501
        %v2503 = vsel %vm2433, %v2481, 0.0
        %2504 = vadd.xlane.f32.xlu0 %v2503
        %v2505 = vpop.xlane.xlu0 %2504
        %v2506 = vrcp.pop %v2484
        %v2507 = vrcp.pop %v2487
        %v2508 = vrcp.pop %v2490
        %v2509 = vrcp.pop %v2493
        %v2510 = vrcp.pop %v2496
        %v2511 = vrcp.pop %v2499
        %v2512 = vrcp.pop %v2502
        %v2513 = vrcp.pop %v2505
        %v2514 = vmul.f32 %v2467, %v2506
        %v2515 = vmul.f32 %v2469, %v2507
        %v2516 = vmul.f32 %v2471, %v2508
        %v2517 = vmul.f32 %v2473, %v2509
        %v2518 = vmul.f32 %v2475, %v2510
        %v2519 = vmul.f32 %v2477, %v2511
        %v2520 = vmul.f32 %v2479, %v2512
        %v2521 = vmul.f32 %v2481, %v2513
        %v2523 = vsel %vm2433, %v2514, 0
        %v2526 = vsel %vm2433, %v2515, 0
        %2528 = vmatprep.subr.mxu0 0.0
        %2529 = vmatpush1.msra.mxu0 %v1992
        %2530 = vmatprep.subr.mxu0 0.0
        %2531 = vmatpush1.msra.mxu0 %v2060
        %2532 = vmatprep.subr.mxu0 0.0
        %2533 = vmatpush1.msra.mxu0 0.0
        %2534 = vmatprep.subr.mxu0 0.0
        %2535 = vmatpush1.msra.mxu0 0.0
        %2536 = vmatprep.subr.mxu0 0.0
        %2537 = vmatpush1.msra.mxu0 0.0
        %2538 = vmatprep.subr.mxu0 0.0
        %2539 = vmatpush1.msra.mxu0 0.0
        %2540 = vmatprep.subr.mxu0 0.0
        %2541 = vmatpush1.msra.mxu0 0.0
        %2542 = vmatprep.subr.mxu0 0.0
        %2543 = vmatpush1.msra.mxu0 0.0
        %2544 = vmatprep.subr.mxu0 0.0
        %2545 = vmatpush1.msra.mxu0 0.0
        %2546 = vmatprep.subr.mxu0 0.0
        %2547 = vmatpush1.msra.mxu0 0.0
        %2548 = vmatprep.subr.mxu0 0.0
        %2549 = vmatpush1.msra.mxu0 0.0
        %2550 = vmatprep.subr.mxu0 0.0
        %2551 = vmatpush1.msra.mxu0 0.0
        %2552 = vmatprep.subr.mxu0 0.0
        %2553 = vmatpush1.msra.mxu0 0.0
        %2554 = vmatprep.subr.mxu0 0.0
        %2555 = vmatpush1.msra.mxu0 0.0
        %2556 = vmatprep.subr.mxu0 0.0
        %2557 = vmatpush1.msra.mxu0 0.0
        %2558 = vmatprep.subr.mxu0 0.0
        %2559 = vmatpush1.msra.mxu0 0.0
        %2560 = vmatprep.subr.mxu0 0.0
        %2561 = vmatpush1.msra.mxu0 0.0
        %2562 = vmatprep.subr.mxu0 0.0
        %2563 = vmatpush1.msra.mxu0 0.0
        %2564 = vmatprep.subr.mxu0 0.0
        %2565 = vmatpush1.msra.mxu0 0.0
        %2566 = vmatprep.subr.mxu0 0.0
        %2567 = vmatpush1.msra.mxu0 0.0
        %2568 = vmatprep.subr.mxu0 0.0
        %2569 = vmatpush1.msra.mxu0 0.0
        %2570 = vmatprep.subr.mxu0 0.0
        %2571 = vmatpush1.msra.mxu0 0.0
        %2572 = vmatprep.subr.mxu0 0.0
        %2573 = vmatpush1.msra.mxu0 0.0
        %2574 = vmatprep.subr.mxu0 0.0
        %2575 = vmatpush1.msra.mxu0 0.0
        %2576 = vmatprep.subr.mxu0 0.0
        %2577 = vmatpush1.msra.mxu0 0.0
        %2578 = vmatprep.subr.mxu0 0.0
        %2579 = vmatpush1.msra.mxu0 0.0
        %2580 = vmatprep.subr.mxu0 0.0
        %2581 = vmatpush1.msra.mxu0 0.0
        %2582 = vmatprep.subr.mxu0 0.0
        %2583 = vmatpush1.msra.mxu0 0.0
        %2584 = vmatprep.subr.mxu0 0.0
        %2585 = vmatpush1.msra.mxu0 0.0
        %2586 = vmatprep.subr.mxu0 0.0
        %2587 = vmatpush1.msra.mxu0 0.0
        %2588 = vmatprep.subr.mxu0 0.0
        %2589 = vmatpush1.msra.mxu0 0.0
        %2590 = vmatprep.subr.mxu0 0.0
        %2591 = vmatpush1.msra.mxu0 0.0
        %2592 = vmatprep.mubr.f32.mxu0 0.0
        %2593 = vmatmul.mubr.f32.gmra.mrb[0].mxu0 %v2523
        %v2594 = vpop.f32.mrb[0].mxu0
        %v2595 = vadd.f32 0.0, %v2594
        %v2596 = vpop.f32.mrb[0].mxu0
        %2597 = vmatprep.mubr.f32.mxu0 0.0
        %2598 = vmatmul.mubr.f32.gmra.mrb[0].mxu0 %v2526
        %v2599 = vpop.f32.mrb[0].mxu0
        %v2600 = vadd.f32 0.0, %v2599
        %v2601 = vpop.f32.mrb[0].mxu0
        %2602 = vdwg.mxu0
        %v2604 = vsel %vm2433, %v2516, 0
        %v2607 = vsel %vm2433, %v2517, 0
        %2609 = vmatprep.subr.mxu0 0.0
        %2610 = vmatpush1.msra.mxu0 %v1993
        %2611 = vmatprep.subr.mxu0 0.0
        %2612 = vmatpush1.msra.mxu0 %v2061
        %2613 = vmatprep.subr.mxu0 0.0
        %2614 = vmatpush1.msra.mxu0 0.0
        %2615 = vmatprep.subr.mxu0 0.0
        %2616 = vmatpush1.msra.mxu0 0.0
        %2617 = vmatprep.subr.mxu0 0.0
        %2618 = vmatpush1.msra.mxu0 0.0
        %2619 = vmatprep.subr.mxu0 0.0
        %2620 = vmatpush1.msra.mxu0 0.0
        %2621 = vmatprep.subr.mxu0 0.0
        %2622 = vmatpush1.msra.mxu0 0.0
        %2623 = vmatprep.subr.mxu0 0.0
        %2624 = vmatpush1.msra.mxu0 0.0
        %2625 = vmatprep.subr.mxu0 0.0
        %2626 = vmatpush1.msra.mxu0 0.0
        %2627 = vmatprep.subr.mxu0 0.0
        %2628 = vmatpush1.msra.mxu0 0.0
        %2629 = vmatprep.subr.mxu0 0.0
        %2630 = vmatpush1.msra.mxu0 0.0
        %2631 = vmatprep.subr.mxu0 0.0
        %2632 = vmatpush1.msra.mxu0 0.0
        %2633 = vmatprep.subr.mxu0 0.0
        %2634 = vmatpush1.msra.mxu0 0.0
        %2635 = vmatprep.subr.mxu0 0.0
        %2636 = vmatpush1.msra.mxu0 0.0
        %2637 = vmatprep.subr.mxu0 0.0
        %2638 = vmatpush1.msra.mxu0 0.0
        %2639 = vmatprep.subr.mxu0 0.0
        %2640 = vmatpush1.msra.mxu0 0.0
        %2641 = vmatprep.subr.mxu0 0.0
        %2642 = vmatpush1.msra.mxu0 0.0
        %2643 = vmatprep.subr.mxu0 0.0
        %2644 = vmatpush1.msra.mxu0 0.0
        %2645 = vmatprep.subr.mxu0 0.0
        %2646 = vmatpush1.msra.mxu0 0.0
        %2647 = vmatprep.subr.mxu0 0.0
        %2648 = vmatpush1.msra.mxu0 0.0
        %2649 = vmatprep.subr.mxu0 0.0
        %2650 = vmatpush1.msra.mxu0 0.0
        %2651 = vmatprep.subr.mxu0 0.0
        %2652 = vmatpush1.msra.mxu0 0.0
        %2653 = vmatprep.subr.mxu0 0.0
        %2654 = vmatpush1.msra.mxu0 0.0
        %2655 = vmatprep.subr.mxu0 0.0
        %2656 = vmatpush1.msra.mxu0 0.0
        %2657 = vmatprep.subr.mxu0 0.0
        %2658 = vmatpush1.msra.mxu0 0.0
        %2659 = vmatprep.subr.mxu0 0.0
        %2660 = vmatpush1.msra.mxu0 0.0
        %2661 = vmatprep.subr.mxu0 0.0
        %2662 = vmatpush1.msra.mxu0 0.0
        %2663 = vmatprep.subr.mxu0 0.0
        %2664 = vmatpush1.msra.mxu0 0.0
        %2665 = vmatprep.subr.mxu0 0.0
        %2666 = vmatpush1.msra.mxu0 0.0
        %2667 = vmatprep.subr.mxu0 0.0
        %2668 = vmatpush1.msra.mxu0 0.0
        %2669 = vmatprep.subr.mxu0 0.0
        %2670 = vmatpush1.msra.mxu0 0.0
        %2671 = vmatprep.subr.mxu0 0.0
        %2672 = vmatpush1.msra.mxu0 0.0
        %2673 = vmatprep.mubr.f32.mxu0 0.0
        %2674 = vmatmul.mubr.f32.gmra.mrb[0].mxu0 %v2604
        %v2675 = vpop.f32.mrb[0].mxu0
        %v2676 = vadd.f32 0.0, %v2675
        %v2677 = vpop.f32.mrb[0].mxu0
        %2678 = vmatprep.mubr.f32.mxu0 0.0
        %2679 = vmatmul.mubr.f32.gmra.mrb[0].mxu0 %v2607
        %v2680 = vpop.f32.mrb[0].mxu0
        %v2681 = vadd.f32 0.0, %v2680
        %v2682 = vpop.f32.mrb[0].mxu0
        %2683 = vdwg.mxu0
        %v2685 = vsel %vm2433, %v2518, 0
        %v2688 = vsel %vm2433, %v2519, 0
        %2690 = vmatprep.subr.mxu0 0.0
        %2691 = vmatpush1.msra.mxu0 %v1994
        %2692 = vmatprep.subr.mxu0 0.0
        %2693 = vmatpush1.msra.mxu0 %v2062
        %2694 = vmatprep.subr.mxu0 0.0
        %2695 = vmatpush1.msra.mxu0 0.0
        %2696 = vmatprep.subr.mxu0 0.0
        %2697 = vmatpush1.msra.mxu0 0.0
        %2698 = vmatprep.subr.mxu0 0.0
        %2699 = vmatpush1.msra.mxu0 0.0
        %2700 = vmatprep.subr.mxu0 0.0
        %2701 = vmatpush1.msra.mxu0 0.0
        %2702 = vmatprep.subr.mxu0 0.0
        %2703 = vmatpush1.msra.mxu0 0.0
        %2704 = vmatprep.subr.mxu0 0.0
        %2705 = vmatpush1.msra.mxu0 0.0
        %2706 = vmatprep.subr.mxu0 0.0
        %2707 = vmatpush1.msra.mxu0 0.0
        %2708 = vmatprep.subr.mxu0 0.0
        %2709 = vmatpush1.msra.mxu0 0.0
        %2710 = vmatprep.subr.mxu0 0.0
        %2711 = vmatpush1.msra.mxu0 0.0
        %2712 = vmatprep.subr.mxu0 0.0
        %2713 = vmatpush1.msra.mxu0 0.0
        %2714 = vmatprep.subr.mxu0 0.0
        %2715 = vmatpush1.msra.mxu0 0.0
        %2716 = vmatprep.subr.mxu0 0.0
        %2717 = vmatpush1.msra.mxu0 0.0
        %2718 = vmatprep.subr.mxu0 0.0
        %2719 = vmatpush1.msra.mxu0 0.0
        %2720 = vmatprep.subr.mxu0 0.0
        %2721 = vmatpush1.msra.mxu0 0.0
        %2722 = vmatprep.subr.mxu0 0.0
        %2723 = vmatpush1.msra.mxu0 0.0
        %2724 = vmatprep.subr.mxu0 0.0
        %2725 = vmatpush1.msra.mxu0 0.0
        %2726 = vmatprep.subr.mxu0 0.0
        %2727 = vmatpush1.msra.mxu0 0.0
        %2728 = vmatprep.subr.mxu0 0.0
        %2729 = vmatpush1.msra.mxu0 0.0
        %2730 = vmatprep.subr.mxu0 0.0
        %2731 = vmatpush1.msra.mxu0 0.0
        %2732 = vmatprep.subr.mxu0 0.0
        %2733 = vmatpush1.msra.mxu0 0.0
        %2734 = vmatprep.subr.mxu0 0.0
        %2735 = vmatpush1.msra.mxu0 0.0
        %2736 = vmatprep.subr.mxu0 0.0
        %2737 = vmatpush1.msra.mxu0 0.0
        %2738 = vmatprep.subr.mxu0 0.0
        %2739 = vmatpush1.msra.mxu0 0.0
        %2740 = vmatprep.subr.mxu0 0.0
        %2741 = vmatpush1.msra.mxu0 0.0
        %2742 = vmatprep.subr.mxu0 0.0
        %2743 = vmatpush1.msra.mxu0 0.0
        %2744 = vmatprep.subr.mxu0 0.0
        %2745 = vmatpush1.msra.mxu0 0.0
        %2746 = vmatprep.subr.mxu0 0.0
        %2747 = vmatpush1.msra.mxu0 0.0
        %2748 = vmatprep.subr.mxu0 0.0
        %2749 = vmatpush1.msra.mxu0 0.0
        %2750 = vmatprep.subr.mxu0 0.0
        %2751 = vmatpush1.msra.mxu0 0.0
        %2752 = vmatprep.subr.mxu0 0.0
        %2753 = vmatpush1.msra.mxu0 0.0
        %2754 = vmatprep.mubr.f32.mxu0 0.0
        %2755 = vmatmul.mubr.f32.gmra.mrb[0].mxu0 %v2685
        %v2756 = vpop.f32.mrb[0].mxu0
        %v2757 = vadd.f32 0.0, %v2756
        %v2758 = vpop.f32.mrb[0].mxu0
        %2759 = vmatprep.mubr.f32.mxu0 0.0
        %2760 = vmatmul.mubr.f32.gmra.mrb[0].mxu0 %v2688
        %v2761 = vpop.f32.mrb[0].mxu0
        %v2762 = vadd.f32 0.0, %v2761
        %v2763 = vpop.f32.mrb[0].mxu0
        %2764 = vdwg.mxu0
        %v2766 = vsel %vm2433, %v2520, 0
        %v2769 = vsel %vm2433, %v2521, 0
        %2771 = vmatprep.subr.mxu0 0.0
        %2772 = vmatpush1.msra.mxu0 %v1995
        %2773 = vmatprep.subr.mxu0 0.0
        %2774 = vmatpush1.msra.mxu0 %v2063
        %2775 = vmatprep.subr.mxu0 0.0
        %2776 = vmatpush1.msra.mxu0 0.0
        %2777 = vmatprep.subr.mxu0 0.0
        %2778 = vmatpush1.msra.mxu0 0.0
        %2779 = vmatprep.subr.mxu0 0.0
        %2780 = vmatpush1.msra.mxu0 0.0
        %2781 = vmatprep.subr.mxu0 0.0
        %2782 = vmatpush1.msra.mxu0 0.0
        %2783 = vmatprep.subr.mxu0 0.0
        %2784 = vmatpush1.msra.mxu0 0.0
        %2785 = vmatprep.subr.mxu0 0.0
        %2786 = vmatpush1.msra.mxu0 0.0
        %2787 = vmatprep.subr.mxu0 0.0
        %2788 = vmatpush1.msra.mxu0 0.0
        %2789 = vmatprep.subr.mxu0 0.0
        %2790 = vmatpush1.msra.mxu0 0.0
        %2791 = vmatprep.subr.mxu0 0.0
        %2792 = vmatpush1.msra.mxu0 0.0
        %2793 = vmatprep.subr.mxu0 0.0
        %2794 = vmatpush1.msra.mxu0 0.0
        %2795 = vmatprep.subr.mxu0 0.0
        %2796 = vmatpush1.msra.mxu0 0.0
        %2797 = vmatprep.subr.mxu0 0.0
        %2798 = vmatpush1.msra.mxu0 0.0
        %2799 = vmatprep.subr.mxu0 0.0
        %2800 = vmatpush1.msra.mxu0 0.0
        %2801 = vmatprep.subr.mxu0 0.0
        %2802 = vmatpush1.msra.mxu0 0.0
        %2803 = vmatprep.subr.mxu0 0.0
        %2804 = vmatpush1.msra.mxu0 0.0
        %2805 = vmatprep.subr.mxu0 0.0
        %2806 = vmatpush1.msra.mxu0 0.0
        %2807 = vmatprep.subr.mxu0 0.0
        %2808 = vmatpush1.msra.mxu0 0.0
        %2809 = vmatprep.subr.mxu0 0.0
        %2810 = vmatpush1.msra.mxu0 0.0
        %2811 = vmatprep.subr.mxu0 0.0
        %2812 = vmatpush1.msra.mxu0 0.0
        %2813 = vmatprep.subr.mxu0 0.0
        %2814 = vmatpush1.msra.mxu0 0.0
        %2815 = vmatprep.subr.mxu0 0.0
        %2816 = vmatpush1.msra.mxu0 0.0
        %2817 = vmatprep.subr.mxu0 0.0
        %2818 = vmatpush1.msra.mxu0 0.0
        %2819 = vmatprep.subr.mxu0 0.0
        %2820 = vmatpush1.msra.mxu0 0.0
        %2821 = vmatprep.subr.mxu0 0.0
        %2822 = vmatpush1.msra.mxu0 0.0
        %2823 = vmatprep.subr.mxu0 0.0
        %2824 = vmatpush1.msra.mxu0 0.0
        %2825 = vmatprep.subr.mxu0 0.0
        %2826 = vmatpush1.msra.mxu0 0.0
        %2827 = vmatprep.subr.mxu0 0.0
        %2828 = vmatpush1.msra.mxu0 0.0
        %2829 = vmatprep.subr.mxu0 0.0
        %2830 = vmatpush1.msra.mxu0 0.0
        %2831 = vmatprep.subr.mxu0 0.0
        %2832 = vmatpush1.msra.mxu0 0.0
        %2833 = vmatprep.subr.mxu0 0.0
        %2834 = vmatpush1.msra.mxu0 0.0
        %2835 = vmatprep.mubr.f32.mxu0 0.0
        %2836 = vmatmul.mubr.f32.gmra.mrb[0].mxu0 %v2766
        %v2837 = vpop.f32.mrb[0].mxu0
        %v2838 = vadd.f32 0.0, %v2837
        %v2839 = vpop.f32.mrb[0].mxu0
        %2840 = vmatprep.mubr.f32.mxu0 0.0
        %2841 = vmatmul.mubr.f32.gmra.mrb[0].mxu0 %v2769
        %v2842 = vpop.f32.mrb[0].mxu0
        %v2843 = vadd.f32 0.0, %v2842
        %v2844 = vpop.f32.mrb[0].mxu0
        %2845 = vdwg.mxu0
        %v2846 = vcombine.low %v2595, %v2757
        %v2847 = vcombine.high %v2595, %v2757
        %v2849 = vunpack.c.l.s4 1983009808
        %v2850 = vunpack.c.0.s8 %v2849
        %v2851 = vlaneseq
        %v2852 = vshrl.u32 %v2851, 7
        %v2853 = vsub.s32 %v2850, %v2852
        %v2854 = vrot.slane %v2846, %v2853
        %v2856 = vunpack.c.l.s4 1983009808
        %v2857 = vunpack.c.0.s8 %v2856
        %v2858 = vlaneseq
        %v2859 = vshrl.u32 %v2858, 7
        %v2860 = vsub.s32 %v2857, %v2859
        %v2861 = vrot.slane %v2847, %v2860
        %v2862 = vcombine.low %v2676, %v2838
        %v2863 = vcombine.high %v2676, %v2838
        %v2865 = vunpack.c.l.s4 1983009808
        %v2866 = vunpack.c.0.s8 %v2865
        %v2867 = vlaneseq
        %v2868 = vshrl.u32 %v2867, 7
        %v2869 = vsub.s32 %v2866, %v2868
        %v2870 = vrot.slane %v2862, %v2869
        %v2872 = vunpack.c.l.s4 1983009808
        %v2873 = vunpack.c.0.s8 %v2872
        %v2874 = vlaneseq
        %v2875 = vshrl.u32 %v2874, 7
        %v2876 = vsub.s32 %v2873, %v2875
        %v2877 = vrot.slane %v2863, %v2876
        %v2878 = vcombine.low %v2854, %v2870
        %v2879 = vcombine.high %v2854, %v2870
        %v2881 = vunpack.c.l.s4 1934713408
        %v2882 = vunpack.c.0.s8 %v2881
        %v2883 = vlaneseq
        %v2884 = vshrl.u32 %v2883, 7
        %v2885 = vsub.s32 %v2882, %v2884
        %v2886 = vrot.slane %v2878, %v2885
        %v2888 = vunpack.c.l.s4 1934713408
        %v2889 = vunpack.c.0.s8 %v2888
        %v2890 = vlaneseq
        %v2891 = vshrl.u32 %v2890, 7
        %v2892 = vsub.s32 %v2889, %v2891
        %v2893 = vrot.slane %v2879, %v2892
        %v2894 = vcombine.low %v2861, %v2877
        %v2895 = vcombine.high %v2861, %v2877
        %v2897 = vunpack.c.l.s4 1934713408
        %v2898 = vunpack.c.0.s8 %v2897
        %v2899 = vlaneseq
        %v2900 = vshrl.u32 %v2899, 7
        %v2901 = vsub.s32 %v2898, %v2900
        %v2902 = vrot.slane %v2894, %v2901
        %v2904 = vunpack.c.l.s4 1934713408
        %v2905 = vunpack.c.0.s8 %v2904
        %v2906 = vlaneseq
        %v2907 = vshrl.u32 %v2906, 7
        %v2908 = vsub.s32 %v2905, %v2907
        %v2909 = vrot.slane %v2895, %v2908
        %v2910 = vcombine.high %v2886, 0.0
        %v2911 = vcombine.high %v2893, 0.0
        %v2912 = vcombine.high %v2902, 0.0
        %v2913 = vcombine.high %v2909, 0.0
        %v2914 = vcombine.low %v2600, %v2762
        %v2915 = vcombine.high %v2600, %v2762
        %v2917 = vunpack.c.l.s4 1983009808
        %v2918 = vunpack.c.0.s8 %v2917
        %v2919 = vlaneseq
        %v2920 = vshrl.u32 %v2919, 7
        %v2921 = vsub.s32 %v2918, %v2920
        %v2922 = vrot.slane %v2914, %v2921
        %v2924 = vunpack.c.l.s4 1983009808
        %v2925 = vunpack.c.0.s8 %v2924
        %v2926 = vlaneseq
        %v2927 = vshrl.u32 %v2926, 7
        %v2928 = vsub.s32 %v2925, %v2927
        %v2929 = vrot.slane %v2915, %v2928
        %v2930 = vcombine.low %v2681, %v2843
        %v2931 = vcombine.high %v2681, %v2843
        %v2933 = vunpack.c.l.s4 1983009808
        %v2934 = vunpack.c.0.s8 %v2933
        %v2935 = vlaneseq
        %v2936 = vshrl.u32 %v2935, 7
        %v2937 = vsub.s32 %v2934, %v2936
        %v2938 = vrot.slane %v2930, %v2937
        %v2940 = vunpack.c.l.s4 1983009808
        %v2941 = vunpack.c.0.s8 %v2940
        %v2942 = vlaneseq
        %v2943 = vshrl.u32 %v2942, 7
        %v2944 = vsub.s32 %v2941, %v2943
        %v2945 = vrot.slane %v2931, %v2944
        %v2946 = vcombine.low %v2922, %v2938
        %v2947 = vcombine.high %v2922, %v2938
        %v2949 = vunpack.c.l.s4 1934713408
        %v2950 = vunpack.c.0.s8 %v2949
        %v2951 = vlaneseq
        %v2952 = vshrl.u32 %v2951, 7
        %v2953 = vsub.s32 %v2950, %v2952
        %v2954 = vrot.slane %v2946, %v2953
        %v2956 = vunpack.c.l.s4 1934713408
        %v2957 = vunpack.c.0.s8 %v2956
        %v2958 = vlaneseq
        %v2959 = vshrl.u32 %v2958, 7
        %v2960 = vsub.s32 %v2957, %v2959
        %v2961 = vrot.slane %v2947, %v2960
        %v2962 = vcombine.low %v2929, %v2945
        %v2963 = vcombine.high %v2929, %v2945
        %v2965 = vunpack.c.l.s4 1934713408
        %v2966 = vunpack.c.0.s8 %v2965
        %v2967 = vlaneseq
        %v2968 = vshrl.u32 %v2967, 7
        %v2969 = vsub.s32 %v2966, %v2968
        %v2970 = vrot.slane %v2962, %v2969
        %v2972 = vunpack.c.l.s4 1934713408
        %v2973 = vunpack.c.0.s8 %v2972
        %v2974 = vlaneseq
        %v2975 = vshrl.u32 %v2974, 7
        %v2976 = vsub.s32 %v2973, %v2975
        %v2977 = vrot.slane %v2963, %v2976
        %v2978 = vcombine.high %v2954, 0.0
        %v2979 = vcombine.high %v2961, 0.0
        %v2980 = vcombine.high %v2970, 0.0
        %v2981 = vcombine.high %v2977, 0.0
        %v2982 = vcombine.low %v2886, %v2893
        %v2984 = vunpack.c.l.s4 1983009808
        %v2985 = vunpack.c.0.s8 %v2984
        %v2986 = vlaneseq
        %v2987 = vshrl.u32 %v2986, 7
        %v2988 = vsub.s32 %v2985, %v2987
        %v2989 = vrot.slane %v2982, %v2988
        %v2990 = vcombine.low %v2910, %v2911
        %v2992 = vunpack.c.l.s4 1983009808
        %v2993 = vunpack.c.0.s8 %v2992
        %v2994 = vlaneseq
        %v2995 = vshrl.u32 %v2994, 7
        %v2996 = vsub.s32 %v2993, %v2995
        %v2997 = vrot.slane %v2990, %v2996
        %v2998 = vcombine.low %v2902, %v2909
        %v3000 = vunpack.c.l.s4 1983009808
        %v3001 = vunpack.c.0.s8 %v3000
        %v3002 = vlaneseq
        %v3003 = vshrl.u32 %v3002, 7
        %v3004 = vsub.s32 %v3001, %v3003
        %v3005 = vrot.slane %v2998, %v3004
        %v3006 = vcombine.low %v2912, %v2913
        %v3008 = vunpack.c.l.s4 1983009808
        %v3009 = vunpack.c.0.s8 %v3008
        %v3010 = vlaneseq
        %v3011 = vshrl.u32 %v3010, 7
        %v3012 = vsub.s32 %v3009, %v3011
        %v3013 = vrot.slane %v3006, %v3012
        %v3014 = vcombine.low %v2989, %v2997
        %v3015 = vcombine.high %v2989, %v2997
        %v3017 = vunpack.c.l.s4 1934713408
        %v3018 = vunpack.c.0.s8 %v3017
        %v3019 = vlaneseq
        %v3020 = vshrl.u32 %v3019, 7
        %v3021 = vsub.s32 %v3018, %v3020
        %v3022 = vrot.slane %v3014, %v3021
        %v3024 = vunpack.c.l.s4 1934713408
        %v3025 = vunpack.c.0.s8 %v3024
        %v3026 = vlaneseq
        %v3027 = vshrl.u32 %v3026, 7
        %v3028 = vsub.s32 %v3025, %v3027
        %v3029 = vrot.slane %v3015, %v3028
        %v3030 = vcombine.low %v3005, %v3013
        %v3031 = vcombine.high %v3005, %v3013
        %v3033 = vunpack.c.l.s4 1934713408
        %v3034 = vunpack.c.0.s8 %v3033
        %v3035 = vlaneseq
        %v3036 = vshrl.u32 %v3035, 7
        %v3037 = vsub.s32 %v3034, %v3036
        %v3038 = vrot.slane %v3030, %v3037
        %v3040 = vunpack.c.l.s4 1934713408
        %v3041 = vunpack.c.0.s8 %v3040
        %v3042 = vlaneseq
        %v3043 = vshrl.u32 %v3042, 7
        %v3044 = vsub.s32 %v3041, %v3043
        %v3045 = vrot.slane %v3031, %v3044
        %v3046 = vcombine.low %v3022, %v3038
        %v3047 = vcombine.high %v3022, %v3038
        %v3048 = vcombine.low %v3029, %v3045
        %v3049 = vcombine.high %v3029, %v3045
        %v3050 = vcombine.low %v2954, %v2961
        %v3052 = vunpack.c.l.s4 1983009808
        %v3053 = vunpack.c.0.s8 %v3052
        %v3054 = vlaneseq
        %v3055 = vshrl.u32 %v3054, 7
        %v3056 = vsub.s32 %v3053, %v3055
        %v3057 = vrot.slane %v3050, %v3056
        %v3058 = vcombine.low %v2978, %v2979
        %v3060 = vunpack.c.l.s4 1983009808
        %v3061 = vunpack.c.0.s8 %v3060
        %v3062 = vlaneseq
        %v3063 = vshrl.u32 %v3062, 7
        %v3064 = vsub.s32 %v3061, %v3063
        %v3065 = vrot.slane %v3058, %v3064
        %v3066 = vcombine.low %v2970, %v2977
        %v3068 = vunpack.c.l.s4 1983009808
        %v3069 = vunpack.c.0.s8 %v3068
        %v3070 = vlaneseq
        %v3071 = vshrl.u32 %v3070, 7
        %v3072 = vsub.s32 %v3069, %v3071
        %v3073 = vrot.slane %v3066, %v3072
        %v3074 = vcombine.low %v2980, %v2981
        %v3076 = vunpack.c.l.s4 1983009808
        %v3077 = vunpack.c.0.s8 %v3076
        %v3078 = vlaneseq
        %v3079 = vshrl.u32 %v3078, 7
        %v3080 = vsub.s32 %v3077, %v3079
        %v3081 = vrot.slane %v3074, %v3080
        %v3082 = vcombine.low %v3057, %v3065
        %v3083 = vcombine.high %v3057, %v3065
        %v3085 = vunpack.c.l.s4 1934713408
        %v3086 = vunpack.c.0.s8 %v3085
        %v3087 = vlaneseq
        %v3088 = vshrl.u32 %v3087, 7
        %v3089 = vsub.s32 %v3086, %v3088
        %v3090 = vrot.slane %v3082, %v3089
        %v3092 = vunpack.c.l.s4 1934713408
        %v3093 = vunpack.c.0.s8 %v3092
        %v3094 = vlaneseq
        %v3095 = vshrl.u32 %v3094, 7
        %v3096 = vsub.s32 %v3093, %v3095
        %v3097 = vrot.slane %v3083, %v3096
        %v3098 = vcombine.low %v3073, %v3081
        %v3099 = vcombine.high %v3073, %v3081
        %v3101 = vunpack.c.l.s4 1934713408
        %v3102 = vunpack.c.0.s8 %v3101
        %v3103 = vlaneseq
        %v3104 = vshrl.u32 %v3103, 7
        %v3105 = vsub.s32 %v3102, %v3104
        %v3106 = vrot.slane %v3098, %v3105
        %v3108 = vunpack.c.l.s4 1934713408
        %v3109 = vunpack.c.0.s8 %v3108
        %v3110 = vlaneseq
        %v3111 = vshrl.u32 %v3110, 7
        %v3112 = vsub.s32 %v3109, %v3111
        %v3113 = vrot.slane %v3099, %v3112
        %v3114 = vcombine.low %v3090, %v3106
        %v3115 = vcombine.high %v3090, %v3106
        %v3116 = vcombine.low %v3097, %v3113
        %v3117 = vcombine.high %v3097, %v3113
        %3120 = vrot.lane.b32.xlu0 %v3047, 32
        %v3121 = vpop.permute.xlu0 %3120
        %3122 = vrot.lane.b32.xlu0 %v3115, 32
        %v3123 = vpop.permute.xlu0 %3122
        %3128 = vrot.lane.b32.xlu0 %v3048, 64
        %v3129 = vpop.permute.xlu0 %3128
        %3130 = vrot.lane.b32.xlu0 %v3116, 64
        %v3131 = vpop.permute.xlu0 %3130
        %3136 = vrot.lane.b32.xlu0 %v3049, 96
        %v3137 = vpop.permute.xlu0 %3136
        %3138 = vrot.lane.b32.xlu0 %v3117, 96
        %v3139 = vpop.permute.xlu0 %3138
        %v3142 = vsel %vm2064, %v3046, %v3121
        %v3143 = vsel %vm2064, %v3114, %v3123
        %vm3144 = vcmask 523264
        %v3145 = vsel %vm3144, %v3142, %v3129
        %v3146 = vsel %vm3144, %v3143, %v3131
        %vm3147 = vcmask 785408
        %v3148 = vsel %vm3147, %v3145, %v3137
        %v3149 = vsel %vm3147, %v3146, %v3139
        %3152 = vrot.lane.b32.xlu0 %v1121, 96
        %v3153 = vpop.permute.xlu0 %3152
        %3154 = vrot.lane.b32.xlu0 %v1125, 96
        %v3155 = vpop.permute.xlu0 %3154
        %3158 = vrot.lane.b32.xlu0 %v1121, 64
        %v3159 = vpop.permute.xlu0 %3158
        %3160 = vrot.lane.b32.xlu0 %v1125, 64
        %v3161 = vpop.permute.xlu0 %3160
        %3164 = vrot.lane.b32.xlu0 %v1121, 32
        %v3165 = vpop.permute.xlu0 %3164
        %3166 = vrot.lane.b32.xlu0 %v1125, 32
        %v3167 = vpop.permute.xlu0 %3166
        %v3170 = vcombine.low %v1121, %v3159
        %v3171 = vcombine.high %v1121, %v3159
        %v3173 = vunpack.c.l.s4 1983009808
        %v3174 = vunpack.c.0.s8 %v3173
        %v3175 = vlaneseq
        %v3176 = vshrl.u32 %v3175, 7
        %v3177 = vsub.s32 %v3174, %v3176
        %v3178 = vrot.slane %v3170, %v3177
        %v3180 = vunpack.c.l.s4 1983009808
        %v3181 = vunpack.c.0.s8 %v3180
        %v3182 = vlaneseq
        %v3183 = vshrl.u32 %v3182, 7
        %v3184 = vsub.s32 %v3181, %v3183
        %v3185 = vrot.slane %v3171, %v3184
        %v3186 = vcombine.low %v3153, %v3165
        %v3187 = vcombine.high %v3153, %v3165
        %v3189 = vunpack.c.l.s4 1983009808
        %v3190 = vunpack.c.0.s8 %v3189
        %v3191 = vlaneseq
        %v3192 = vshrl.u32 %v3191, 7
        %v3193 = vsub.s32 %v3190, %v3192
        %v3194 = vrot.slane %v3186, %v3193
        %v3196 = vunpack.c.l.s4 1983009808
        %v3197 = vunpack.c.0.s8 %v3196
        %v3198 = vlaneseq
        %v3199 = vshrl.u32 %v3198, 7
        %v3200 = vsub.s32 %v3197, %v3199
        %v3201 = vrot.slane %v3187, %v3200
        %v3202 = vcombine.low %v3178, %v3194
        %v3203 = vcombine.high %v3178, %v3194
        %v3205 = vunpack.c.l.s4 1934713408
        %v3206 = vunpack.c.0.s8 %v3205
        %v3207 = vlaneseq
        %v3208 = vshrl.u32 %v3207, 7
        %v3209 = vsub.s32 %v3206, %v3208
        %v3210 = vrot.slane %v3202, %v3209
        %v3212 = vunpack.c.l.s4 1934713408
        %v3213 = vunpack.c.0.s8 %v3212
        %v3214 = vlaneseq
        %v3215 = vshrl.u32 %v3214, 7
        %v3216 = vsub.s32 %v3213, %v3215
        %v3217 = vrot.slane %v3203, %v3216
        %v3218 = vcombine.low %v3185, %v3201
        %v3219 = vcombine.high %v3185, %v3201
        %v3221 = vunpack.c.l.s4 1934713408
        %v3222 = vunpack.c.0.s8 %v3221
        %v3223 = vlaneseq
        %v3224 = vshrl.u32 %v3223, 7
        %v3225 = vsub.s32 %v3222, %v3224
        %v3226 = vrot.slane %v3218, %v3225
        %v3228 = vunpack.c.l.s4 1934713408
        %v3229 = vunpack.c.0.s8 %v3228
        %v3230 = vlaneseq
        %v3231 = vshrl.u32 %v3230, 7
        %v3232 = vsub.s32 %v3229, %v3231
        %v3233 = vrot.slane %v3219, %v3232
        %v3234 = vcombine.high %v3210, 0.0
        %v3235 = vcombine.high %v3217, 0.0
        %v3236 = vcombine.high %v3226, 0.0
        %v3237 = vcombine.high %v3233, 0.0
        %v3238 = vcombine.low %v1125, %v3161
        %v3239 = vcombine.high %v1125, %v3161
        %v3241 = vunpack.c.l.s4 1983009808
        %v3242 = vunpack.c.0.s8 %v3241
        %v3243 = vlaneseq
        %v3244 = vshrl.u32 %v3243, 7
        %v3245 = vsub.s32 %v3242, %v3244
        %v3246 = vrot.slane %v3238, %v3245
        %v3248 = vunpack.c.l.s4 1983009808
        %v3249 = vunpack.c.0.s8 %v3248
        %v3250 = vlaneseq
        %v3251 = vshrl.u32 %v3250, 7
        %v3252 = vsub.s32 %v3249, %v3251
        %v3253 = vrot.slane %v3239, %v3252
        %v3254 = vcombine.low %v3155, %v3167
        %v3255 = vcombine.high %v3155, %v3167
        %v3257 = vunpack.c.l.s4 1983009808
        %v3258 = vunpack.c.0.s8 %v3257
        %v3259 = vlaneseq
        %v3260 = vshrl.u32 %v3259, 7
        %v3261 = vsub.s32 %v3258, %v3260
        %v3262 = vrot.slane %v3254, %v3261
        %v3264 = vunpack.c.l.s4 1983009808
        %v3265 = vunpack.c.0.s8 %v3264
        %v3266 = vlaneseq
        %v3267 = vshrl.u32 %v3266, 7
        %v3268 = vsub.s32 %v3265, %v3267
        %v3269 = vrot.slane %v3255, %v3268
        %v3270 = vcombine.low %v3246, %v3262
        %v3271 = vcombine.high %v3246, %v3262
        %v3273 = vunpack.c.l.s4 1934713408
        %v3274 = vunpack.c.0.s8 %v3273
        %v3275 = vlaneseq
        %v3276 = vshrl.u32 %v3275, 7
        %v3277 = vsub.s32 %v3274, %v3276
        %v3278 = vrot.slane %v3270, %v3277
        %v3280 = vunpack.c.l.s4 1934713408
        %v3281 = vunpack.c.0.s8 %v3280
        %v3282 = vlaneseq
        %v3283 = vshrl.u32 %v3282, 7
        %v3284 = vsub.s32 %v3281, %v3283
        %v3285 = vrot.slane %v3271, %v3284
        %v3286 = vcombine.low %v3253, %v3269
        %v3287 = vcombine.high %v3253, %v3269
        %v3289 = vunpack.c.l.s4 1934713408
        %v3290 = vunpack.c.0.s8 %v3289
        %v3291 = vlaneseq
        %v3292 = vshrl.u32 %v3291, 7
        %v3293 = vsub.s32 %v3290, %v3292
        %v3294 = vrot.slane %v3286, %v3293
        %v3296 = vunpack.c.l.s4 1934713408
        %v3297 = vunpack.c.0.s8 %v3296
        %v3298 = vlaneseq
        %v3299 = vshrl.u32 %v3298, 7
        %v3300 = vsub.s32 %v3297, %v3299
        %v3301 = vrot.slane %v3287, %v3300
        %v3302 = vcombine.high %v3278, 0.0
        %v3303 = vcombine.high %v3285, 0.0
        %v3304 = vcombine.high %v3294, 0.0
        %v3305 = vcombine.high %v3301, 0.0
        %v3306 = vcombine.low %v3210, %v3217
        %v3308 = vunpack.c.l.s4 1983009808
        %v3309 = vunpack.c.0.s8 %v3308
        %v3310 = vlaneseq
        %v3311 = vshrl.u32 %v3310, 7
        %v3312 = vsub.s32 %v3309, %v3311
        %v3313 = vrot.slane %v3306, %v3312
        %v3314 = vcombine.low %v3234, %v3235
        %v3316 = vunpack.c.l.s4 1983009808
        %v3317 = vunpack.c.0.s8 %v3316
        %v3318 = vlaneseq
        %v3319 = vshrl.u32 %v3318, 7
        %v3320 = vsub.s32 %v3317, %v3319
        %v3321 = vrot.slane %v3314, %v3320
        %v3322 = vcombine.low %v3226, %v3233
        %v3324 = vunpack.c.l.s4 1983009808
        %v3325 = vunpack.c.0.s8 %v3324
        %v3326 = vlaneseq
        %v3327 = vshrl.u32 %v3326, 7
        %v3328 = vsub.s32 %v3325, %v3327
        %v3329 = vrot.slane %v3322, %v3328
        %v3330 = vcombine.low %v3236, %v3237
        %v3332 = vunpack.c.l.s4 1983009808
        %v3333 = vunpack.c.0.s8 %v3332
        %v3334 = vlaneseq
        %v3335 = vshrl.u32 %v3334, 7
        %v3336 = vsub.s32 %v3333, %v3335
        %v3337 = vrot.slane %v3330, %v3336
        %v3338 = vcombine.low %v3313, %v3321
        %v3339 = vcombine.high %v3313, %v3321
        %v3341 = vunpack.c.l.s4 1934713408
        %v3342 = vunpack.c.0.s8 %v3341
        %v3343 = vlaneseq
        %v3344 = vshrl.u32 %v3343, 7
        %v3345 = vsub.s32 %v3342, %v3344
        %v3346 = vrot.slane %v3338, %v3345
        %v3348 = vunpack.c.l.s4 1934713408
        %v3349 = vunpack.c.0.s8 %v3348
        %v3350 = vlaneseq
        %v3351 = vshrl.u32 %v3350, 7
        %v3352 = vsub.s32 %v3349, %v3351
        %v3353 = vrot.slane %v3339, %v3352
        %v3354 = vcombine.low %v3329, %v3337
        %v3355 = vcombine.high %v3329, %v3337
        %v3357 = vunpack.c.l.s4 1934713408
        %v3358 = vunpack.c.0.s8 %v3357
        %v3359 = vlaneseq
        %v3360 = vshrl.u32 %v3359, 7
        %v3361 = vsub.s32 %v3358, %v3360
        %v3362 = vrot.slane %v3354, %v3361
        %v3364 = vunpack.c.l.s4 1934713408
        %v3365 = vunpack.c.0.s8 %v3364
        %v3366 = vlaneseq
        %v3367 = vshrl.u32 %v3366, 7
        %v3368 = vsub.s32 %v3365, %v3367
        %v3369 = vrot.slane %v3355, %v3368
        %v3370 = vcombine.low %v3346, %v3362
        %v3371 = vcombine.high %v3346, %v3362
        %v3372 = vcombine.low %v3353, %v3369
        %v3373 = vcombine.high %v3353, %v3369
        %v3374 = vcombine.low %v3278, %v3285
        %v3376 = vunpack.c.l.s4 1983009808
        %v3377 = vunpack.c.0.s8 %v3376
        %v3378 = vlaneseq
        %v3379 = vshrl.u32 %v3378, 7
        %v3380 = vsub.s32 %v3377, %v3379
        %v3381 = vrot.slane %v3374, %v3380
        %v3382 = vcombine.low %v3302, %v3303
        %v3384 = vunpack.c.l.s4 1983009808
        %v3385 = vunpack.c.0.s8 %v3384
        %v3386 = vlaneseq
        %v3387 = vshrl.u32 %v3386, 7
        %v3388 = vsub.s32 %v3385, %v3387
        %v3389 = vrot.slane %v3382, %v3388
        %v3390 = vcombine.low %v3294, %v3301
        %v3392 = vunpack.c.l.s4 1983009808
        %v3393 = vunpack.c.0.s8 %v3392
        %v3394 = vlaneseq
        %v3395 = vshrl.u32 %v3394, 7
        %v3396 = vsub.s32 %v3393, %v3395
        %v3397 = vrot.slane %v3390, %v3396
        %v3398 = vcombine.low %v3304, %v3305
        %v3400 = vunpack.c.l.s4 1983009808
        %v3401 = vunpack.c.0.s8 %v3400
        %v3402 = vlaneseq
        %v3403 = vshrl.u32 %v3402, 7
        %v3404 = vsub.s32 %v3401, %v3403
        %v3405 = vrot.slane %v3398, %v3404
        %v3406 = vcombine.low %v3381, %v3389
        %v3407 = vcombine.high %v3381, %v3389
        %v3409 = vunpack.c.l.s4 1934713408
        %v3410 = vunpack.c.0.s8 %v3409
        %v3411 = vlaneseq
        %v3412 = vshrl.u32 %v3411, 7
        %v3413 = vsub.s32 %v3410, %v3412
        %v3414 = vrot.slane %v3406, %v3413
        %v3416 = vunpack.c.l.s4 1934713408
        %v3417 = vunpack.c.0.s8 %v3416
        %v3418 = vlaneseq
        %v3419 = vshrl.u32 %v3418, 7
        %v3420 = vsub.s32 %v3417, %v3419
        %v3421 = vrot.slane %v3407, %v3420
        %v3422 = vcombine.low %v3397, %v3405
        %v3423 = vcombine.high %v3397, %v3405
        %v3425 = vunpack.c.l.s4 1934713408
        %v3426 = vunpack.c.0.s8 %v3425
        %v3427 = vlaneseq
        %v3428 = vshrl.u32 %v3427, 7
        %v3429 = vsub.s32 %v3426, %v3428
        %v3430 = vrot.slane %v3422, %v3429
        %v3432 = vunpack.c.l.s4 1934713408
        %v3433 = vunpack.c.0.s8 %v3432
        %v3434 = vlaneseq
        %v3435 = vshrl.u32 %v3434, 7
        %v3436 = vsub.s32 %v3433, %v3435
        %v3437 = vrot.slane %v3423, %v3436
        %v3438 = vcombine.low %v3414, %v3430
        %v3439 = vcombine.high %v3414, %v3430
        %v3440 = vcombine.low %v3421, %v3437
        %v3441 = vcombine.high %v3421, %v3437
        %3444 = vrot.lane.b32.xlu0 %v1123, 96
        %v3445 = vpop.permute.xlu0 %3444
        %3446 = vrot.lane.b32.xlu0 %v1127, 96
        %v3447 = vpop.permute.xlu0 %3446
        %3450 = vrot.lane.b32.xlu0 %v1123, 64
        %v3451 = vpop.permute.xlu0 %3450
        %3452 = vrot.lane.b32.xlu0 %v1127, 64
        %v3453 = vpop.permute.xlu0 %3452
        %3456 = vrot.lane.b32.xlu0 %v1123, 32
        %v3457 = vpop.permute.xlu0 %3456
        %3458 = vrot.lane.b32.xlu0 %v1127, 32
        %v3459 = vpop.permute.xlu0 %3458
        %v3462 = vcombine.low %v1123, %v3451
        %v3463 = vcombine.high %v1123, %v3451
        %v3465 = vunpack.c.l.s4 1983009808
        %v3466 = vunpack.c.0.s8 %v3465
        %v3467 = vlaneseq
        %v3468 = vshrl.u32 %v3467, 7
        %v3469 = vsub.s32 %v3466, %v3468
        %v3470 = vrot.slane %v3462, %v3469
        %v3472 = vunpack.c.l.s4 1983009808
        %v3473 = vunpack.c.0.s8 %v3472
        %v3474 = vlaneseq
        %v3475 = vshrl.u32 %v3474, 7
        %v3476 = vsub.s32 %v3473, %v3475
        %v3477 = vrot.slane %v3463, %v3476
        %v3478 = vcombine.low %v3445, %v3457
        %v3479 = vcombine.high %v3445, %v3457
        %v3481 = vunpack.c.l.s4 1983009808
        %v3482 = vunpack.c.0.s8 %v3481
        %v3483 = vlaneseq
        %v3484 = vshrl.u32 %v3483, 7
        %v3485 = vsub.s32 %v3482, %v3484
        %v3486 = vrot.slane %v3478, %v3485
        %v3488 = vunpack.c.l.s4 1983009808
        %v3489 = vunpack.c.0.s8 %v3488
        %v3490 = vlaneseq
        %v3491 = vshrl.u32 %v3490, 7
        %v3492 = vsub.s32 %v3489, %v3491
        %v3493 = vrot.slane %v3479, %v3492
        %v3494 = vcombine.low %v3470, %v3486
        %v3495 = vcombine.high %v3470, %v3486
        %v3497 = vunpack.c.l.s4 1934713408
        %v3498 = vunpack.c.0.s8 %v3497
        %v3499 = vlaneseq
        %v3500 = vshrl.u32 %v3499, 7
        %v3501 = vsub.s32 %v3498, %v3500
        %v3502 = vrot.slane %v3494, %v3501
        %v3504 = vunpack.c.l.s4 1934713408
        %v3505 = vunpack.c.0.s8 %v3504
        %v3506 = vlaneseq
        %v3507 = vshrl.u32 %v3506, 7
        %v3508 = vsub.s32 %v3505, %v3507
        %v3509 = vrot.slane %v3495, %v3508
        %v3510 = vcombine.low %v3477, %v3493
        %v3511 = vcombine.high %v3477, %v3493
        %v3513 = vunpack.c.l.s4 1934713408
        %v3514 = vunpack.c.0.s8 %v3513
        %v3515 = vlaneseq
        %v3516 = vshrl.u32 %v3515, 7
        %v3517 = vsub.s32 %v3514, %v3516
        %v3518 = vrot.slane %v3510, %v3517
        %v3520 = vunpack.c.l.s4 1934713408
        %v3521 = vunpack.c.0.s8 %v3520
        %v3522 = vlaneseq
        %v3523 = vshrl.u32 %v3522, 7
        %v3524 = vsub.s32 %v3521, %v3523
        %v3525 = vrot.slane %v3511, %v3524
        %v3526 = vcombine.high %v3502, 0.0
        %v3527 = vcombine.high %v3509, 0.0
        %v3528 = vcombine.high %v3518, 0.0
        %v3529 = vcombine.high %v3525, 0.0
        %v3530 = vcombine.low %v1127, %v3453
        %v3531 = vcombine.high %v1127, %v3453
        %v3533 = vunpack.c.l.s4 1983009808
        %v3534 = vunpack.c.0.s8 %v3533
        %v3535 = vlaneseq
        %v3536 = vshrl.u32 %v3535, 7
        %v3537 = vsub.s32 %v3534, %v3536
        %v3538 = vrot.slane %v3530, %v3537
        %v3540 = vunpack.c.l.s4 1983009808
        %v3541 = vunpack.c.0.s8 %v3540
        %v3542 = vlaneseq
        %v3543 = vshrl.u32 %v3542, 7
        %v3544 = vsub.s32 %v3541, %v3543
        %v3545 = vrot.slane %v3531, %v3544
        %v3546 = vcombine.low %v3447, %v3459
        %v3547 = vcombine.high %v3447, %v3459
        %v3549 = vunpack.c.l.s4 1983009808
        %v3550 = vunpack.c.0.s8 %v3549
        %v3551 = vlaneseq
        %v3552 = vshrl.u32 %v3551, 7
        %v3553 = vsub.s32 %v3550, %v3552
        %v3554 = vrot.slane %v3546, %v3553
        %v3556 = vunpack.c.l.s4 1983009808
        %v3557 = vunpack.c.0.s8 %v3556
        %v3558 = vlaneseq
        %v3559 = vshrl.u32 %v3558, 7
        %v3560 = vsub.s32 %v3557, %v3559
        %v3561 = vrot.slane %v3547, %v3560
        %v3562 = vcombine.low %v3538, %v3554
        %v3563 = vcombine.high %v3538, %v3554
        %v3565 = vunpack.c.l.s4 1934713408
        %v3566 = vunpack.c.0.s8 %v3565
        %v3567 = vlaneseq
        %v3568 = vshrl.u32 %v3567, 7
        %v3569 = vsub.s32 %v3566, %v3568
        %v3570 = vrot.slane %v3562, %v3569
        %v3572 = vunpack.c.l.s4 1934713408
        %v3573 = vunpack.c.0.s8 %v3572
        %v3574 = vlaneseq
        %v3575 = vshrl.u32 %v3574, 7
        %v3576 = vsub.s32 %v3573, %v3575
        %v3577 = vrot.slane %v3563, %v3576
        %v3578 = vcombine.low %v3545, %v3561
        %v3579 = vcombine.high %v3545, %v3561
        %v3581 = vunpack.c.l.s4 1934713408
        %v3582 = vunpack.c.0.s8 %v3581
        %v3583 = vlaneseq
        %v3584 = vshrl.u32 %v3583, 7
        %v3585 = vsub.s32 %v3582, %v3584
        %v3586 = vrot.slane %v3578, %v3585
        %v3588 = vunpack.c.l.s4 1934713408
        %v3589 = vunpack.c.0.s8 %v3588
        %v3590 = vlaneseq
        %v3591 = vshrl.u32 %v3590, 7
        %v3592 = vsub.s32 %v3589, %v3591
        %v3593 = vrot.slane %v3579, %v3592
        %v3594 = vcombine.high %v3570, 0.0
        %v3595 = vcombine.high %v3577, 0.0
        %v3596 = vcombine.high %v3586, 0.0
        %v3597 = vcombine.high %v3593, 0.0
        %v3598 = vcombine.low %v3502, %v3509
        %v3600 = vunpack.c.l.s4 1983009808
        %v3601 = vunpack.c.0.s8 %v3600
        %v3602 = vlaneseq
        %v3603 = vshrl.u32 %v3602, 7
        %v3604 = vsub.s32 %v3601, %v3603
        %v3605 = vrot.slane %v3598, %v3604
        %v3606 = vcombine.low %v3526, %v3527
        %v3608 = vunpack.c.l.s4 1983009808
        %v3609 = vunpack.c.0.s8 %v3608
        %v3610 = vlaneseq
        %v3611 = vshrl.u32 %v3610, 7
        %v3612 = vsub.s32 %v3609, %v3611
        %v3613 = vrot.slane %v3606, %v3612
        %v3614 = vcombine.low %v3518, %v3525
        %v3616 = vunpack.c.l.s4 1983009808
        %v3617 = vunpack.c.0.s8 %v3616
        %v3618 = vlaneseq
        %v3619 = vshrl.u32 %v3618, 7
        %v3620 = vsub.s32 %v3617, %v3619
        %v3621 = vrot.slane %v3614, %v3620
        %v3622 = vcombine.low %v3528, %v3529
        %v3624 = vunpack.c.l.s4 1983009808
        %v3625 = vunpack.c.0.s8 %v3624
        %v3626 = vlaneseq
        %v3627 = vshrl.u32 %v3626, 7
        %v3628 = vsub.s32 %v3625, %v3627
        %v3629 = vrot.slane %v3622, %v3628
        %v3630 = vcombine.low %v3605, %v3613
        %v3631 = vcombine.high %v3605, %v3613
        %v3633 = vunpack.c.l.s4 1934713408
        %v3634 = vunpack.c.0.s8 %v3633
        %v3635 = vlaneseq
        %v3636 = vshrl.u32 %v3635, 7
        %v3637 = vsub.s32 %v3634, %v3636
        %v3638 = vrot.slane %v3630, %v3637
        %v3640 = vunpack.c.l.s4 1934713408
        %v3641 = vunpack.c.0.s8 %v3640
        %v3642 = vlaneseq
        %v3643 = vshrl.u32 %v3642, 7
        %v3644 = vsub.s32 %v3641, %v3643
        %v3645 = vrot.slane %v3631, %v3644
        %v3646 = vcombine.low %v3621, %v3629
        %v3647 = vcombine.high %v3621, %v3629
        %v3649 = vunpack.c.l.s4 1934713408
        %v3650 = vunpack.c.0.s8 %v3649
        %v3651 = vlaneseq
        %v3652 = vshrl.u32 %v3651, 7
        %v3653 = vsub.s32 %v3650, %v3652
        %v3654 = vrot.slane %v3646, %v3653
        %v3656 = vunpack.c.l.s4 1934713408
        %v3657 = vunpack.c.0.s8 %v3656
        %v3658 = vlaneseq
        %v3659 = vshrl.u32 %v3658, 7
        %v3660 = vsub.s32 %v3657, %v3659
        %v3661 = vrot.slane %v3647, %v3660
        %v3662 = vcombine.low %v3638, %v3654
        %v3663 = vcombine.high %v3638, %v3654
        %v3664 = vcombine.low %v3645, %v3661
        %v3665 = vcombine.high %v3645, %v3661
        %v3666 = vcombine.low %v3570, %v3577
        %v3668 = vunpack.c.l.s4 1983009808
        %v3669 = vunpack.c.0.s8 %v3668
        %v3670 = vlaneseq
        %v3671 = vshrl.u32 %v3670, 7
        %v3672 = vsub.s32 %v3669, %v3671
        %v3673 = vrot.slane %v3666, %v3672
        %v3674 = vcombine.low %v3594, %v3595
        %v3676 = vunpack.c.l.s4 1983009808
        %v3677 = vunpack.c.0.s8 %v3676
        %v3678 = vlaneseq
        %v3679 = vshrl.u32 %v3678, 7
        %v3680 = vsub.s32 %v3677, %v3679
        %v3681 = vrot.slane %v3674, %v3680
        %v3682 = vcombine.low %v3586, %v3593
        %v3684 = vunpack.c.l.s4 1983009808
        %v3685 = vunpack.c.0.s8 %v3684
        %v3686 = vlaneseq
        %v3687 = vshrl.u32 %v3686, 7
        %v3688 = vsub.s32 %v3685, %v3687
        %v3689 = vrot.slane %v3682, %v3688
        %v3690 = vcombine.low %v3596, %v3597
        %v3692 = vunpack.c.l.s4 1983009808
        %v3693 = vunpack.c.0.s8 %v3692
        %v3694 = vlaneseq
        %v3695 = vshrl.u32 %v3694, 7
        %v3696 = vsub.s32 %v3693, %v3695
        %v3697 = vrot.slane %v3690, %v3696
        %v3698 = vcombine.low %v3673, %v3681
        %v3699 = vcombine.high %v3673, %v3681
        %v3701 = vunpack.c.l.s4 1934713408
        %v3702 = vunpack.c.0.s8 %v3701
        %v3703 = vlaneseq
        %v3704 = vshrl.u32 %v3703, 7
        %v3705 = vsub.s32 %v3702, %v3704
        %v3706 = vrot.slane %v3698, %v3705
        %v3708 = vunpack.c.l.s4 1934713408
        %v3709 = vunpack.c.0.s8 %v3708
        %v3710 = vlaneseq
        %v3711 = vshrl.u32 %v3710, 7
        %v3712 = vsub.s32 %v3709, %v3711
        %v3713 = vrot.slane %v3699, %v3712
        %v3714 = vcombine.low %v3689, %v3697
        %v3715 = vcombine.high %v3689, %v3697
        %v3717 = vunpack.c.l.s4 1934713408
        %v3718 = vunpack.c.0.s8 %v3717
        %v3719 = vlaneseq
        %v3720 = vshrl.u32 %v3719, 7
        %v3721 = vsub.s32 %v3718, %v3720
        %v3722 = vrot.slane %v3714, %v3721
        %v3724 = vunpack.c.l.s4 1934713408
        %v3725 = vunpack.c.0.s8 %v3724
        %v3726 = vlaneseq
        %v3727 = vshrl.u32 %v3726, 7
        %v3728 = vsub.s32 %v3725, %v3727
        %v3729 = vrot.slane %v3715, %v3728
        %v3730 = vcombine.low %v3706, %v3722
        %v3731 = vcombine.high %v3706, %v3722
        %v3732 = vcombine.low %v3713, %v3729
        %v3733 = vcombine.high %v3713, %v3729
        %3736 = vrot.lane.b32.xlu0 %v1172, 96
        %v3737 = vpop.permute.xlu0 %3736
        %3738 = vrot.lane.b32.xlu0 %v1175, 96
        %v3739 = vpop.permute.xlu0 %3738
        %3742 = vrot.lane.b32.xlu0 %v1172, 64
        %v3743 = vpop.permute.xlu0 %3742
        %3744 = vrot.lane.b32.xlu0 %v1175, 64
        %v3745 = vpop.permute.xlu0 %3744
        %3748 = vrot.lane.b32.xlu0 %v1172, 32
        %v3749 = vpop.permute.xlu0 %3748
        %3750 = vrot.lane.b32.xlu0 %v1175, 32
        %v3751 = vpop.permute.xlu0 %3750
        %v3754 = vcombine.low %v1172, %v3743
        %v3755 = vcombine.high %v1172, %v3743
        %v3757 = vunpack.c.l.s4 1983009808
        %v3758 = vunpack.c.0.s8 %v3757
        %v3759 = vlaneseq
        %v3760 = vshrl.u32 %v3759, 7
        %v3761 = vsub.s32 %v3758, %v3760
        %v3762 = vrot.slane %v3754, %v3761
        %v3764 = vunpack.c.l.s4 1983009808
        %v3765 = vunpack.c.0.s8 %v3764
        %v3766 = vlaneseq
        %v3767 = vshrl.u32 %v3766, 7
        %v3768 = vsub.s32 %v3765, %v3767
        %v3769 = vrot.slane %v3755, %v3768
        %v3770 = vcombine.low %v3737, %v3749
        %v3771 = vcombine.high %v3737, %v3749
        %v3773 = vunpack.c.l.s4 1983009808
        %v3774 = vunpack.c.0.s8 %v3773
        %v3775 = vlaneseq
        %v3776 = vshrl.u32 %v3775, 7
        %v3777 = vsub.s32 %v3774, %v3776
        %v3778 = vrot.slane %v3770, %v3777
        %v3780 = vunpack.c.l.s4 1983009808
        %v3781 = vunpack.c.0.s8 %v3780
        %v3782 = vlaneseq
        %v3783 = vshrl.u32 %v3782, 7
        %v3784 = vsub.s32 %v3781, %v3783
        %v3785 = vrot.slane %v3771, %v3784
        %v3786 = vcombine.low %v3762, %v3778
        %v3787 = vcombine.high %v3762, %v3778
        %v3789 = vunpack.c.l.s4 1934713408
        %v3790 = vunpack.c.0.s8 %v3789
        %v3791 = vlaneseq
        %v3792 = vshrl.u32 %v3791, 7
        %v3793 = vsub.s32 %v3790, %v3792
        %v3794 = vrot.slane %v3786, %v3793
        %v3796 = vunpack.c.l.s4 1934713408
        %v3797 = vunpack.c.0.s8 %v3796
        %v3798 = vlaneseq
        %v3799 = vshrl.u32 %v3798, 7
        %v3800 = vsub.s32 %v3797, %v3799
        %v3801 = vrot.slane %v3787, %v3800
        %v3802 = vcombine.low %v3769, %v3785
        %v3803 = vcombine.high %v3769, %v3785
        %v3805 = vunpack.c.l.s4 1934713408
        %v3806 = vunpack.c.0.s8 %v3805
        %v3807 = vlaneseq
        %v3808 = vshrl.u32 %v3807, 7
        %v3809 = vsub.s32 %v3806, %v3808
        %v3810 = vrot.slane %v3802, %v3809
        %v3812 = vunpack.c.l.s4 1934713408
        %v3813 = vunpack.c.0.s8 %v3812
        %v3814 = vlaneseq
        %v3815 = vshrl.u32 %v3814, 7
        %v3816 = vsub.s32 %v3813, %v3815
        %v3817 = vrot.slane %v3803, %v3816
        %v3818 = vcombine.high %v3794, 0.0
        %v3819 = vcombine.high %v3801, 0.0
        %v3820 = vcombine.high %v3810, 0.0
        %v3821 = vcombine.high %v3817, 0.0
        %v3822 = vcombine.low %v1175, %v3745
        %v3823 = vcombine.high %v1175, %v3745
        %v3825 = vunpack.c.l.s4 1983009808
        %v3826 = vunpack.c.0.s8 %v3825
        %v3827 = vlaneseq
        %v3828 = vshrl.u32 %v3827, 7
        %v3829 = vsub.s32 %v3826, %v3828
        %v3830 = vrot.slane %v3822, %v3829
        %v3832 = vunpack.c.l.s4 1983009808
        %v3833 = vunpack.c.0.s8 %v3832
        %v3834 = vlaneseq
        %v3835 = vshrl.u32 %v3834, 7
        %v3836 = vsub.s32 %v3833, %v3835
        %v3837 = vrot.slane %v3823, %v3836
        %v3838 = vcombine.low %v3739, %v3751
        %v3839 = vcombine.high %v3739, %v3751
        %v3841 = vunpack.c.l.s4 1983009808
        %v3842 = vunpack.c.0.s8 %v3841
        %v3843 = vlaneseq
        %v3844 = vshrl.u32 %v3843, 7
        %v3845 = vsub.s32 %v3842, %v3844
        %v3846 = vrot.slane %v3838, %v3845
        %v3848 = vunpack.c.l.s4 1983009808
        %v3849 = vunpack.c.0.s8 %v3848
        %v3850 = vlaneseq
        %v3851 = vshrl.u32 %v3850, 7
        %v3852 = vsub.s32 %v3849, %v3851
        %v3853 = vrot.slane %v3839, %v3852
        %v3854 = vcombine.low %v3830, %v3846
        %v3855 = vcombine.high %v3830, %v3846
        %v3857 = vunpack.c.l.s4 1934713408
        %v3858 = vunpack.c.0.s8 %v3857
        %v3859 = vlaneseq
        %v3860 = vshrl.u32 %v3859, 7
        %v3861 = vsub.s32 %v3858, %v3860
        %v3862 = vrot.slane %v3854, %v3861
        %v3864 = vunpack.c.l.s4 1934713408
        %v3865 = vunpack.c.0.s8 %v3864
        %v3866 = vlaneseq
        %v3867 = vshrl.u32 %v3866, 7
        %v3868 = vsub.s32 %v3865, %v3867
        %v3869 = vrot.slane %v3855, %v3868
        %v3870 = vcombine.low %v3837, %v3853
        %v3871 = vcombine.high %v3837, %v3853
        %v3873 = vunpack.c.l.s4 1934713408
        %v3874 = vunpack.c.0.s8 %v3873
        %v3875 = vlaneseq
        %v3876 = vshrl.u32 %v3875, 7
        %v3877 = vsub.s32 %v3874, %v3876
        %v3878 = vrot.slane %v3870, %v3877
        %v3880 = vunpack.c.l.s4 1934713408
        %v3881 = vunpack.c.0.s8 %v3880
        %v3882 = vlaneseq
        %v3883 = vshrl.u32 %v3882, 7
        %v3884 = vsub.s32 %v3881, %v3883
        %v3885 = vrot.slane %v3871, %v3884
        %v3886 = vcombine.high %v3862, 0.0
        %v3887 = vcombine.high %v3869, 0.0
        %v3888 = vcombine.high %v3878, 0.0
        %v3889 = vcombine.high %v3885, 0.0
        %v3890 = vcombine.low %v3794, %v3801
        %v3892 = vunpack.c.l.s4 1983009808
        %v3893 = vunpack.c.0.s8 %v3892
        %v3894 = vlaneseq
        %v3895 = vshrl.u32 %v3894, 7
        %v3896 = vsub.s32 %v3893, %v3895
        %v3897 = vrot.slane %v3890, %v3896
        %v3898 = vcombine.low %v3818, %v3819
        %v3900 = vunpack.c.l.s4 1983009808
        %v3901 = vunpack.c.0.s8 %v3900
        %v3902 = vlaneseq
        %v3903 = vshrl.u32 %v3902, 7
        %v3904 = vsub.s32 %v3901, %v3903
        %v3905 = vrot.slane %v3898, %v3904
        %v3906 = vcombine.low %v3810, %v3817
        %v3908 = vunpack.c.l.s4 1983009808
        %v3909 = vunpack.c.0.s8 %v3908
        %v3910 = vlaneseq
        %v3911 = vshrl.u32 %v3910, 7
        %v3912 = vsub.s32 %v3909, %v3911
        %v3913 = vrot.slane %v3906, %v3912
        %v3914 = vcombine.low %v3820, %v3821
        %v3916 = vunpack.c.l.s4 1983009808
        %v3917 = vunpack.c.0.s8 %v3916
        %v3918 = vlaneseq
        %v3919 = vshrl.u32 %v3918, 7
        %v3920 = vsub.s32 %v3917, %v3919
        %v3921 = vrot.slane %v3914, %v3920
        %v3922 = vcombine.low %v3897, %v3905
        %v3923 = vcombine.high %v3897, %v3905
        %v3925 = vunpack.c.l.s4 1934713408
        %v3926 = vunpack.c.0.s8 %v3925
        %v3927 = vlaneseq
        %v3928 = vshrl.u32 %v3927, 7
        %v3929 = vsub.s32 %v3926, %v3928
        %v3930 = vrot.slane %v3922, %v3929
        %v3932 = vunpack.c.l.s4 1934713408
        %v3933 = vunpack.c.0.s8 %v3932
        %v3934 = vlaneseq
        %v3935 = vshrl.u32 %v3934, 7
        %v3936 = vsub.s32 %v3933, %v3935
        %v3937 = vrot.slane %v3923, %v3936
        %v3938 = vcombine.low %v3913, %v3921
        %v3939 = vcombine.high %v3913, %v3921
        %v3941 = vunpack.c.l.s4 1934713408
        %v3942 = vunpack.c.0.s8 %v3941
        %v3943 = vlaneseq
        %v3944 = vshrl.u32 %v3943, 7
        %v3945 = vsub.s32 %v3942, %v3944
        %v3946 = vrot.slane %v3938, %v3945
        %v3948 = vunpack.c.l.s4 1934713408
        %v3949 = vunpack.c.0.s8 %v3948
        %v3950 = vlaneseq
        %v3951 = vshrl.u32 %v3950, 7
        %v3952 = vsub.s32 %v3949, %v3951
        %v3953 = vrot.slane %v3939, %v3952
        %v3954 = vcombine.low %v3930, %v3946
        %v3955 = vcombine.high %v3930, %v3946
        %v3956 = vcombine.low %v3937, %v3953
        %v3957 = vcombine.high %v3937, %v3953
        %v3958 = vcombine.low %v3862, %v3869
        %v3960 = vunpack.c.l.s4 1983009808
        %v3961 = vunpack.c.0.s8 %v3960
        %v3962 = vlaneseq
        %v3963 = vshrl.u32 %v3962, 7
        %v3964 = vsub.s32 %v3961, %v3963
        %v3965 = vrot.slane %v3958, %v3964
        %v3966 = vcombine.low %v3886, %v3887
        %v3968 = vunpack.c.l.s4 1983009808
        %v3969 = vunpack.c.0.s8 %v3968
        %v3970 = vlaneseq
        %v3971 = vshrl.u32 %v3970, 7
        %v3972 = vsub.s32 %v3969, %v3971
        %v3973 = vrot.slane %v3966, %v3972
        %v3974 = vcombine.low %v3878, %v3885
        %v3976 = vunpack.c.l.s4 1983009808
        %v3977 = vunpack.c.0.s8 %v3976
        %v3978 = vlaneseq
        %v3979 = vshrl.u32 %v3978, 7
        %v3980 = vsub.s32 %v3977, %v3979
        %v3981 = vrot.slane %v3974, %v3980
        %v3982 = vcombine.low %v3888, %v3889
        %v3984 = vunpack.c.l.s4 1983009808
        %v3985 = vunpack.c.0.s8 %v3984
        %v3986 = vlaneseq
        %v3987 = vshrl.u32 %v3986, 7
        %v3988 = vsub.s32 %v3985, %v3987
        %v3989 = vrot.slane %v3982, %v3988
        %v3990 = vcombine.low %v3965, %v3973
        %v3991 = vcombine.high %v3965, %v3973
        %v3993 = vunpack.c.l.s4 1934713408
        %v3994 = vunpack.c.0.s8 %v3993
        %v3995 = vlaneseq
        %v3996 = vshrl.u32 %v3995, 7
        %v3997 = vsub.s32 %v3994, %v3996
        %v3998 = vrot.slane %v3990, %v3997
        %v4000 = vunpack.c.l.s4 1934713408
        %v4001 = vunpack.c.0.s8 %v4000
        %v4002 = vlaneseq
        %v4003 = vshrl.u32 %v4002, 7
        %v4004 = vsub.s32 %v4001, %v4003
        %v4005 = vrot.slane %v3991, %v4004
        %v4006 = vcombine.low %v3981, %v3989
        %v4007 = vcombine.high %v3981, %v3989
        %v4009 = vunpack.c.l.s4 1934713408
        %v4010 = vunpack.c.0.s8 %v4009
        %v4011 = vlaneseq
        %v4012 = vshrl.u32 %v4011, 7
        %v4013 = vsub.s32 %v4010, %v4012
        %v4014 = vrot.slane %v4006, %v4013
        %v4016 = vunpack.c.l.s4 1934713408
        %v4017 = vunpack.c.0.s8 %v4016
        %v4018 = vlaneseq
        %v4019 = vshrl.u32 %v4018, 7
        %v4020 = vsub.s32 %v4017, %v4019
        %v4021 = vrot.slane %v4007, %v4020
        %v4022 = vcombine.low %v3998, %v4014
        %v4023 = vcombine.high %v3998, %v4014
        %v4024 = vcombine.low %v4005, %v4021
        %v4025 = vcombine.high %v4005, %v4021
        %v4027 = vsel %vm2064, %v3370, 0
        %v4030 = vsel %vm2064, %v3438, 0
        %v4033 = vsel %vm2064, %v3662, 0
        %v4036 = vsel %vm2064, %v3730, 0
        %4038 = vmatprep.subr.mxu0 0.0
        %4039 = vmatpush1.xpose.msra.mxu0 %v4033
        %4040 = vmatprep.subr.mxu0 0.0
        %4041 = vmatpush1.xpose.msra.mxu0 %v4036
        %4042 = vmatprep.subr.mxu0 0.0
        %4043 = vmatpush1.xpose.msra.mxu0 0.0
        %4044 = vmatprep.subr.mxu0 0.0
        %4045 = vmatpush1.xpose.msra.mxu0 0.0
        %4046 = vmatprep.subr.mxu0 0.0
        %4047 = vmatpush1.xpose.msra.mxu0 0.0
        %4048 = vmatprep.subr.mxu0 0.0
        %4049 = vmatpush1.xpose.msra.mxu0 0.0
        %4050 = vmatprep.subr.mxu0 0.0
        %4051 = vmatpush1.xpose.msra.mxu0 0.0
        %4052 = vmatprep.subr.mxu0 0.0
        %4053 = vmatpush1.xpose.msra.mxu0 0.0
        %4054 = vmatprep.subr.mxu0 0.0
        %4055 = vmatpush1.xpose.msra.mxu0 0.0
        %4056 = vmatprep.subr.mxu0 0.0
        %4057 = vmatpush1.xpose.msra.mxu0 0.0
        %4058 = vmatprep.subr.mxu0 0.0
        %4059 = vmatpush1.xpose.msra.mxu0 0.0
        %4060 = vmatprep.subr.mxu0 0.0
        %4061 = vmatpush1.xpose.msra.mxu0 0.0
        %4062 = vmatprep.subr.mxu0 0.0
        %4063 = vmatpush1.xpose.msra.mxu0 0.0
        %4064 = vmatprep.subr.mxu0 0.0
        %4065 = vmatpush1.xpose.msra.mxu0 0.0
        %4066 = vmatprep.subr.mxu0 0.0
        %4067 = vmatpush1.xpose.msra.mxu0 0.0
        %4068 = vmatprep.subr.mxu0 0.0
        %4069 = vmatpush1.xpose.msra.mxu0 0.0
        %4070 = vmatprep.subr.mxu0 0.0
        %4071 = vmatpush1.xpose.msra.mxu0 0.0
        %4072 = vmatprep.subr.mxu0 0.0
        %4073 = vmatpush1.xpose.msra.mxu0 0.0
        %4074 = vmatprep.subr.mxu0 0.0
        %4075 = vmatpush1.xpose.msra.mxu0 0.0
        %4076 = vmatprep.subr.mxu0 0.0
        %4077 = vmatpush1.xpose.msra.mxu0 0.0
        %4078 = vmatprep.subr.mxu0 0.0
        %4079 = vmatpush1.xpose.msra.mxu0 0.0
        %4080 = vmatprep.subr.mxu0 0.0
        %4081 = vmatpush1.xpose.msra.mxu0 0.0
        %4082 = vmatprep.subr.mxu0 0.0
        %4083 = vmatpush1.xpose.msra.mxu0 0.0
        %4084 = vmatprep.subr.mxu0 0.0
        %4085 = vmatpush1.xpose.msra.mxu0 0.0
        %4086 = vmatprep.subr.mxu0 0.0
        %4087 = vmatpush1.xpose.msra.mxu0 0.0
        %4088 = vmatprep.subr.mxu0 0.0
        %4089 = vmatpush1.xpose.msra.mxu0 0.0
        %4090 = vmatprep.subr.mxu0 0.0
        %4091 = vmatpush1.xpose.msra.mxu0 0.0
        %4092 = vmatprep.subr.mxu0 0.0
        %4093 = vmatpush1.xpose.msra.mxu0 0.0
        %4094 = vmatprep.subr.mxu0 0.0
        %4095 = vmatpush1.xpose.msra.mxu0 0.0
        %4096 = vmatprep.subr.mxu0 0.0
        %4097 = vmatpush1.xpose.msra.mxu0 0.0
        %4098 = vmatprep.subr.mxu0 0.0
        %4099 = vmatpush1.xpose.msra.mxu0 0.0
        %4100 = vmatprep.subr.mxu0 0.0
        %4101 = vmatpush1.xpose.msra.mxu0 0.0
        %4102 = vmatprep.mubr.f32.mxu0 0.0
        %4103 = vmatmul.mubr.f32.gmra.mrb[0].mxu0 %v4027
        %v4104 = vpop.f32.mrb[0].mxu0
        %v4105 = vadd.f32 0.0, %v4104
        %v4106 = vpop.f32.mrb[0].mxu0
        %4107 = vmatprep.mubr.f32.mxu0 0.0
        %4108 = vmatmul.mubr.f32.gmra.mrb[0].mxu0 %v4030
        %v4109 = vpop.f32.mrb[0].mxu0
        %v4110 = vadd.f32 0.0, %v4109
        %v4111 = vpop.f32.mrb[0].mxu0
        %4112 = vdwg.mxu0
        %v4114 = vsel %vm2064, %v3371, 0
        %v4117 = vsel %vm2064, %v3439, 0
        %v4120 = vsel %vm2064, %v3663, 0
        %v4123 = vsel %vm2064, %v3731, 0
        %4125 = vmatprep.subr.mxu0 0.0
        %4126 = vmatpush1.xpose.msra.mxu0 %v4120
        %4127 = vmatprep.subr.mxu0 0.0
        %4128 = vmatpush1.xpose.msra.mxu0 %v4123
        %4129 = vmatprep.subr.mxu0 0.0
        %4130 = vmatpush1.xpose.msra.mxu0 0.0
        %4131 = vmatprep.subr.mxu0 0.0
        %4132 = vmatpush1.xpose.msra.mxu0 0.0
        %4133 = vmatprep.subr.mxu0 0.0
        %4134 = vmatpush1.xpose.msra.mxu0 0.0
        %4135 = vmatprep.subr.mxu0 0.0
        %4136 = vmatpush1.xpose.msra.mxu0 0.0
        %4137 = vmatprep.subr.mxu0 0.0
        %4138 = vmatpush1.xpose.msra.mxu0 0.0
        %4139 = vmatprep.subr.mxu0 0.0
        %4140 = vmatpush1.xpose.msra.mxu0 0.0
        %4141 = vmatprep.subr.mxu0 0.0
        %4142 = vmatpush1.xpose.msra.mxu0 0.0
        %4143 = vmatprep.subr.mxu0 0.0
        %4144 = vmatpush1.xpose.msra.mxu0 0.0
        %4145 = vmatprep.subr.mxu0 0.0
        %4146 = vmatpush1.xpose.msra.mxu0 0.0
        %4147 = vmatprep.subr.mxu0 0.0
        %4148 = vmatpush1.xpose.msra.mxu0 0.0
        %4149 = vmatprep.subr.mxu0 0.0
        %4150 = vmatpush1.xpose.msra.mxu0 0.0
        %4151 = vmatprep.subr.mxu0 0.0
        %4152 = vmatpush1.xpose.msra.mxu0 0.0
        %4153 = vmatprep.subr.mxu0 0.0
        %4154 = vmatpush1.xpose.msra.mxu0 0.0
        %4155 = vmatprep.subr.mxu0 0.0
        %4156 = vmatpush1.xpose.msra.mxu0 0.0
        %4157 = vmatprep.subr.mxu0 0.0
        %4158 = vmatpush1.xpose.msra.mxu0 0.0
        %4159 = vmatprep.subr.mxu0 0.0
        %4160 = vmatpush1.xpose.msra.mxu0 0.0
        %4161 = vmatprep.subr.mxu0 0.0
        %4162 = vmatpush1.xpose.msra.mxu0 0.0
        %4163 = vmatprep.subr.mxu0 0.0
        %4164 = vmatpush1.xpose.msra.mxu0 0.0
        %4165 = vmatprep.subr.mxu0 0.0
        %4166 = vmatpush1.xpose.msra.mxu0 0.0
        %4167 = vmatprep.subr.mxu0 0.0
        %4168 = vmatpush1.xpose.msra.mxu0 0.0
        %4169 = vmatprep.subr.mxu0 0.0
        %4170 = vmatpush1.xpose.msra.mxu0 0.0
        %4171 = vmatprep.subr.mxu0 0.0
        %4172 = vmatpush1.xpose.msra.mxu0 0.0
        %4173 = vmatprep.subr.mxu0 0.0
        %4174 = vmatpush1.xpose.msra.mxu0 0.0
        %4175 = vmatprep.subr.mxu0 0.0
        %4176 = vmatpush1.xpose.msra.mxu0 0.0
        %4177 = vmatprep.subr.mxu0 0.0
        %4178 = vmatpush1.xpose.msra.mxu0 0.0
        %4179 = vmatprep.subr.mxu0 0.0
        %4180 = vmatpush1.xpose.msra.mxu0 0.0
        %4181 = vmatprep.subr.mxu0 0.0
        %4182 = vmatpush1.xpose.msra.mxu0 0.0
        %4183 = vmatprep.subr.mxu0 0.0
        %4184 = vmatpush1.xpose.msra.mxu0 0.0
        %4185 = vmatprep.subr.mxu0 0.0
        %4186 = vmatpush1.xpose.msra.mxu0 0.0
        %4187 = vmatprep.subr.mxu0 0.0
        %4188 = vmatpush1.xpose.msra.mxu0 0.0
        %4189 = vmatprep.mubr.f32.mxu0 0.0
        %4190 = vmatmul.mubr.f32.gmra.mrb[0].mxu0 %v4114
        %v4191 = vpop.f32.mrb[0].mxu0
        %v4192 = vadd.f32 0.0, %v4191
        %v4193 = vpop.f32.mrb[0].mxu0
        %4194 = vmatprep.mubr.f32.mxu0 0.0
        %4195 = vmatmul.mubr.f32.gmra.mrb[0].mxu0 %v4117
        %v4196 = vpop.f32.mrb[0].mxu0
        %v4197 = vadd.f32 0.0, %v4196
        %v4198 = vpop.f32.mrb[0].mxu0
        %4199 = vdwg.mxu0
        %v4201 = vsel %vm2064, %v3372, 0
        %v4204 = vsel %vm2064, %v3440, 0
        %v4207 = vsel %vm2064, %v3664, 0
        %v4210 = vsel %vm2064, %v3732, 0
        %4212 = vmatprep.subr.mxu0 0.0
        %4213 = vmatpush1.xpose.msra.mxu0 %v4207
        %4214 = vmatprep.subr.mxu0 0.0
        %4215 = vmatpush1.xpose.msra.mxu0 %v4210
        %4216 = vmatprep.subr.mxu0 0.0
        %4217 = vmatpush1.xpose.msra.mxu0 0.0
        %4218 = vmatprep.subr.mxu0 0.0
        %4219 = vmatpush1.xpose.msra.mxu0 0.0
        %4220 = vmatprep.subr.mxu0 0.0
        %4221 = vmatpush1.xpose.msra.mxu0 0.0
        %4222 = vmatprep.subr.mxu0 0.0
        %4223 = vmatpush1.xpose.msra.mxu0 0.0
        %4224 = vmatprep.subr.mxu0 0.0
        %4225 = vmatpush1.xpose.msra.mxu0 0.0
        %4226 = vmatprep.subr.mxu0 0.0
        %4227 = vmatpush1.xpose.msra.mxu0 0.0
        %4228 = vmatprep.subr.mxu0 0.0
        %4229 = vmatpush1.xpose.msra.mxu0 0.0
        %4230 = vmatprep.subr.mxu0 0.0
        %4231 = vmatpush1.xpose.msra.mxu0 0.0
        %4232 = vmatprep.subr.mxu0 0.0
        %4233 = vmatpush1.xpose.msra.mxu0 0.0
        %4234 = vmatprep.subr.mxu0 0.0
        %4235 = vmatpush1.xpose.msra.mxu0 0.0
        %4236 = vmatprep.subr.mxu0 0.0
        %4237 = vmatpush1.xpose.msra.mxu0 0.0
        %4238 = vmatprep.subr.mxu0 0.0
        %4239 = vmatpush1.xpose.msra.mxu0 0.0
        %4240 = vmatprep.subr.mxu0 0.0
        %4241 = vmatpush1.xpose.msra.mxu0 0.0
        %4242 = vmatprep.subr.mxu0 0.0
        %4243 = vmatpush1.xpose.msra.mxu0 0.0
        %4244 = vmatprep.subr.mxu0 0.0
        %4245 = vmatpush1.xpose.msra.mxu0 0.0
        %4246 = vmatprep.subr.mxu0 0.0
        %4247 = vmatpush1.xpose.msra.mxu0 0.0
        %4248 = vmatprep.subr.mxu0 0.0
        %4249 = vmatpush1.xpose.msra.mxu0 0.0
        %4250 = vmatprep.subr.mxu0 0.0
        %4251 = vmatpush1.xpose.msra.mxu0 0.0
        %4252 = vmatprep.subr.mxu0 0.0
        %4253 = vmatpush1.xpose.msra.mxu0 0.0
        %4254 = vmatprep.subr.mxu0 0.0
        %4255 = vmatpush1.xpose.msra.mxu0 0.0
        %4256 = vmatprep.subr.mxu0 0.0
        %4257 = vmatpush1.xpose.msra.mxu0 0.0
        %4258 = vmatprep.subr.mxu0 0.0
        %4259 = vmatpush1.xpose.msra.mxu0 0.0
        %4260 = vmatprep.subr.mxu0 0.0
        %4261 = vmatpush1.xpose.msra.mxu0 0.0
        %4262 = vmatprep.subr.mxu0 0.0
        %4263 = vmatpush1.xpose.msra.mxu0 0.0
        %4264 = vmatprep.subr.mxu0 0.0
        %4265 = vmatpush1.xpose.msra.mxu0 0.0
        %4266 = vmatprep.subr.mxu0 0.0
        %4267 = vmatpush1.xpose.msra.mxu0 0.0
        %4268 = vmatprep.subr.mxu0 0.0
        %4269 = vmatpush1.xpose.msra.mxu0 0.0
        %4270 = vmatprep.subr.mxu0 0.0
        %4271 = vmatpush1.xpose.msra.mxu0 0.0
        %4272 = vmatprep.subr.mxu0 0.0
        %4273 = vmatpush1.xpose.msra.mxu0 0.0
        %4274 = vmatprep.subr.mxu0 0.0
        %4275 = vmatpush1.xpose.msra.mxu0 0.0
        %4276 = vmatprep.mubr.f32.mxu0 0.0
        %4277 = vmatmul.mubr.f32.gmra.mrb[0].mxu0 %v4201
        %v4278 = vpop.f32.mrb[0].mxu0
        %v4279 = vadd.f32 0.0, %v4278
        %v4280 = vpop.f32.mrb[0].mxu0
        %4281 = vmatprep.mubr.f32.mxu0 0.0
        %4282 = vmatmul.mubr.f32.gmra.mrb[0].mxu0 %v4204
        %v4283 = vpop.f32.mrb[0].mxu0
        %v4284 = vadd.f32 0.0, %v4283
        %v4285 = vpop.f32.mrb[0].mxu0
        %4286 = vdwg.mxu0
        %v4288 = vsel %vm2064, %v3373, 0
        %v4291 = vsel %vm2064, %v3441, 0
        %v4294 = vsel %vm2064, %v3665, 0
        %v4297 = vsel %vm2064, %v3733, 0
        %4299 = vmatprep.subr.mxu0 0.0
        %4300 = vmatpush1.xpose.msra.mxu0 %v4294
        %4301 = vmatprep.subr.mxu0 0.0
        %4302 = vmatpush1.xpose.msra.mxu0 %v4297
        %4303 = vmatprep.subr.mxu0 0.0
        %4304 = vmatpush1.xpose.msra.mxu0 0.0
        %4305 = vmatprep.subr.mxu0 0.0
        %4306 = vmatpush1.xpose.msra.mxu0 0.0
        %4307 = vmatprep.subr.mxu0 0.0
        %4308 = vmatpush1.xpose.msra.mxu0 0.0
        %4309 = vmatprep.subr.mxu0 0.0
        %4310 = vmatpush1.xpose.msra.mxu0 0.0
        %4311 = vmatprep.subr.mxu0 0.0
        %4312 = vmatpush1.xpose.msra.mxu0 0.0
        %4313 = vmatprep.subr.mxu0 0.0
        %4314 = vmatpush1.xpose.msra.mxu0 0.0
        %4315 = vmatprep.subr.mxu0 0.0
        %4316 = vmatpush1.xpose.msra.mxu0 0.0
        %4317 = vmatprep.subr.mxu0 0.0
        %4318 = vmatpush1.xpose.msra.mxu0 0.0
        %4319 = vmatprep.subr.mxu0 0.0
        %4320 = vmatpush1.xpose.msra.mxu0 0.0
        %4321 = vmatprep.subr.mxu0 0.0
        %4322 = vmatpush1.xpose.msra.mxu0 0.0
        %4323 = vmatprep.subr.mxu0 0.0
        %4324 = vmatpush1.xpose.msra.mxu0 0.0
        %4325 = vmatprep.subr.mxu0 0.0
        %4326 = vmatpush1.xpose.msra.mxu0 0.0
        %4327 = vmatprep.subr.mxu0 0.0
        %4328 = vmatpush1.xpose.msra.mxu0 0.0
        %4329 = vmatprep.subr.mxu0 0.0
        %4330 = vmatpush1.xpose.msra.mxu0 0.0
        %4331 = vmatprep.subr.mxu0 0.0
        %4332 = vmatpush1.xpose.msra.mxu0 0.0
        %4333 = vmatprep.subr.mxu0 0.0
        %4334 = vmatpush1.xpose.msra.mxu0 0.0
        %4335 = vmatprep.subr.mxu0 0.0
        %4336 = vmatpush1.xpose.msra.mxu0 0.0
        %4337 = vmatprep.subr.mxu0 0.0
        %4338 = vmatpush1.xpose.msra.mxu0 0.0
        %4339 = vmatprep.subr.mxu0 0.0
        %4340 = vmatpush1.xpose.msra.mxu0 0.0
        %4341 = vmatprep.subr.mxu0 0.0
        %4342 = vmatpush1.xpose.msra.mxu0 0.0
        %4343 = vmatprep.subr.mxu0 0.0
        %4344 = vmatpush1.xpose.msra.mxu0 0.0
        %4345 = vmatprep.subr.mxu0 0.0
        %4346 = vmatpush1.xpose.msra.mxu0 0.0
        %4347 = vmatprep.subr.mxu0 0.0
        %4348 = vmatpush1.xpose.msra.mxu0 0.0
        %4349 = vmatprep.subr.mxu0 0.0
        %4350 = vmatpush1.xpose.msra.mxu0 0.0
        %4351 = vmatprep.subr.mxu0 0.0
        %4352 = vmatpush1.xpose.msra.mxu0 0.0
        %4353 = vmatprep.subr.mxu0 0.0
        %4354 = vmatpush1.xpose.msra.mxu0 0.0
        %4355 = vmatprep.subr.mxu0 0.0
        %4356 = vmatpush1.xpose.msra.mxu0 0.0
        %4357 = vmatprep.subr.mxu0 0.0
        %4358 = vmatpush1.xpose.msra.mxu0 0.0
        %4359 = vmatprep.subr.mxu0 0.0
        %4360 = vmatpush1.xpose.msra.mxu0 0.0
        %4361 = vmatprep.subr.mxu0 0.0
        %4362 = vmatpush1.xpose.msra.mxu0 0.0
        %4363 = vmatprep.mubr.f32.mxu0 0.0
        %4364 = vmatmul.mubr.f32.gmra.mrb[0].mxu0 %v4288
        %v4365 = vpop.f32.mrb[0].mxu0
        %v4366 = vadd.f32 0.0, %v4365
        %v4367 = vpop.f32.mrb[0].mxu0
        %4368 = vmatprep.mubr.f32.mxu0 0.0
        %4369 = vmatmul.mubr.f32.gmra.mrb[0].mxu0 %v4291
        %v4370 = vpop.f32.mrb[0].mxu0
        %v4371 = vadd.f32 0.0, %v4370
        %v4372 = vpop.f32.mrb[0].mxu0
        %4373 = vdwg.mxu0
        %v4374 = vmul.f32 %v4105, 0.17677669
        %v4375 = vmul.f32 %v4110, 0.17677669
        %v4376 = vmul.f32 %v4192, 0.17677669
        %v4377 = vmul.f32 %v4197, 0.17677669
        %v4378 = vmul.f32 %v4279, 0.17677669
        %v4379 = vmul.f32 %v4284, 0.17677669
        %v4380 = vmul.f32 %v4366, 0.17677669
        %v4381 = vmul.f32 %v4371, 0.17677669
        %v4382 = vsel %vm2423, -1e+30, %v4374
        %v4383 = vsel %vm2424, -1e+30, %v4375
        %v4384 = vsel %vm2423, -1e+30, %v4376
        %v4385 = vsel %vm2424, -1e+30, %v4377
        %v4386 = vsel %vm2423, -1e+30, %v4378
        %v4387 = vsel %vm2424, -1e+30, %v4379
        %v4388 = vsel %vm2423, -1e+30, %v4380
        %v4389 = vsel %vm2424, -1e+30, %v4381
        %v4390 = vsel %vm2433, %v4382, -inf
        %4391 = vmax.xlane.f32.xlu0 %v4390
        %v4392 = vpop.xlane.xlu0 %4391
        %v4393 = vsel %vm2433, %v4383, -inf
        %4394 = vmax.xlane.f32.xlu0 %v4393
        %v4395 = vpop.xlane.xlu0 %4394
        %v4396 = vsel %vm2433, %v4384, -inf
        %4397 = vmax.xlane.f32.xlu0 %v4396
        %v4398 = vpop.xlane.xlu0 %4397
        %v4399 = vsel %vm2433, %v4385, -inf
        %4400 = vmax.xlane.f32.xlu0 %v4399
        %v4401 = vpop.xlane.xlu0 %4400
        %v4402 = vsel %vm2433, %v4386, -inf
        %4403 = vmax.xlane.f32.xlu0 %v4402
        %v4404 = vpop.xlane.xlu0 %4403
        %v4405 = vsel %vm2433, %v4387, -inf
        %4406 = vmax.xlane.f32.xlu0 %v4405
        %v4407 = vpop.xlane.xlu0 %4406
        %v4408 = vsel %vm2433, %v4388, -inf
        %4409 = vmax.xlane.f32.xlu0 %v4408
        %v4410 = vpop.xlane.xlu0 %4409
        %v4411 = vsel %vm2433, %v4389, -inf
        %4412 = vmax.xlane.f32.xlu0 %v4411
        %v4413 = vpop.xlane.xlu0 %4412
        %v4414 = vsub.f32 %v4382, %v4392
        %v4415 = vsub.f32 %v4383, %v4395
        %v4416 = vsub.f32 %v4384, %v4398
        %v4417 = vsub.f32 %v4385, %v4401
        %v4418 = vsub.f32 %v4386, %v4404
        %v4419 = vsub.f32 %v4387, %v4407
        %v4420 = vsub.f32 %v4388, %v4410
        %v4421 = vsub.f32 %v4389, %v4413
        %v4422 = vmul.f32 %v4414, 1.442695
        %v4423 = vpow.pop %v4422
        %v4424 = vmul.f32 %v4415, 1.442695
        %v4425 = vpow.pop %v4424
        %v4426 = vmul.f32 %v4416, 1.442695
        %v4427 = vpow.pop %v4426
        %v4428 = vmul.f32 %v4417, 1.442695
        %v4429 = vpow.pop %v4428
        %v4430 = vmul.f32 %v4418, 1.442695
        %v4431 = vpow.pop %v4430
        %v4432 = vmul.f32 %v4419, 1.442695
        %v4433 = vpow.pop %v4432
        %v4434 = vmul.f32 %v4420, 1.442695
        %v4435 = vpow.pop %v4434
        %v4436 = vmul.f32 %v4421, 1.442695
        %v4437 = vpow.pop %v4436
        %v4438 = vsel %vm2433, %v4423, 0.0
        %4439 = vadd.xlane.f32.xlu0 %v4438
        %v4440 = vpop.xlane.xlu0 %4439
        %v4441 = vsel %vm2433, %v4425, 0.0
        %4442 = vadd.xlane.f32.xlu0 %v4441
        %v4443 = vpop.xlane.xlu0 %4442
        %v4444 = vsel %vm2433, %v4427, 0.0
        %4445 = vadd.xlane.f32.xlu0 %v4444
        %v4446 = vpop.xlane.xlu0 %4445
        %v4447 = vsel %vm2433, %v4429, 0.0
        %4448 = vadd.xlane.f32.xlu0 %v4447
        %v4449 = vpop.xlane.xlu0 %4448
        %v4450 = vsel %vm2433, %v4431, 0.0
        %4451 = vadd.xlane.f32.xlu0 %v4450
        %v4452 = vpop.xlane.xlu0 %4451
        %v4453 = vsel %vm2433, %v4433, 0.0
        %4454 = vadd.xlane.f32.xlu0 %v4453
        %v4455 = vpop.xlane.xlu0 %4454
        %v4456 = vsel %vm2433, %v4435, 0.0
        %4457 = vadd.xlane.f32.xlu0 %v4456
        %v4458 = vpop.xlane.xlu0 %4457
        %v4459 = vsel %vm2433, %v4437, 0.0
        %4460 = vadd.xlane.f32.xlu0 %v4459
        %v4461 = vpop.xlane.xlu0 %4460
        %v4462 = vrcp.pop %v4440
        %v4463 = vrcp.pop %v4443
        %v4464 = vrcp.pop %v4446
        %v4465 = vrcp.pop %v4449
        %v4466 = vrcp.pop %v4452
        %v4467 = vrcp.pop %v4455
        %v4468 = vrcp.pop %v4458
        %v4469 = vrcp.pop %v4461
        %v4470 = vmul.f32 %v4423, %v4462
        %v4471 = vmul.f32 %v4425, %v4463
        %v4472 = vmul.f32 %v4427, %v4464
        %v4473 = vmul.f32 %v4429, %v4465
        %v4474 = vmul.f32 %v4431, %v4466
        %v4475 = vmul.f32 %v4433, %v4467
        %v4476 = vmul.f32 %v4435, %v4468
        %v4477 = vmul.f32 %v4437, %v4469
        %v4479 = vsel %vm2433, %v4470, 0
        %v4482 = vsel %vm2433, %v4471, 0
        %4484 = vmatprep.subr.mxu0 0.0
        %4485 = vmatpush1.msra.mxu0 %v3954
        %4486 = vmatprep.subr.mxu0 0.0
        %4487 = vmatpush1.msra.mxu0 %v4022
        %4488 = vmatprep.subr.mxu0 0.0
        %4489 = vmatpush1.msra.mxu0 0.0
        %4490 = vmatprep.subr.mxu0 0.0
        %4491 = vmatpush1.msra.mxu0 0.0
        %4492 = vmatprep.subr.mxu0 0.0
        %4493 = vmatpush1.msra.mxu0 0.0
        %4494 = vmatprep.subr.mxu0 0.0
        %4495 = vmatpush1.msra.mxu0 0.0
        %4496 = vmatprep.subr.mxu0 0.0
        %4497 = vmatpush1.msra.mxu0 0.0
        %4498 = vmatprep.subr.mxu0 0.0
        %4499 = vmatpush1.msra.mxu0 0.0
        %4500 = vmatprep.subr.mxu0 0.0
        %4501 = vmatpush1.msra.mxu0 0.0
        %4502 = vmatprep.subr.mxu0 0.0
        %4503 = vmatpush1.msra.mxu0 0.0
        %4504 = vmatprep.subr.mxu0 0.0
        %4505 = vmatpush1.msra.mxu0 0.0
        %4506 = vmatprep.subr.mxu0 0.0
        %4507 = vmatpush1.msra.mxu0 0.0
        %4508 = vmatprep.subr.mxu0 0.0
        %4509 = vmatpush1.msra.mxu0 0.0
        %4510 = vmatprep.subr.mxu0 0.0
        %4511 = vmatpush1.msra.mxu0 0.0
        %4512 = vmatprep.subr.mxu0 0.0
        %4513 = vmatpush1.msra.mxu0 0.0
        %4514 = vmatprep.subr.mxu0 0.0
        %4515 = vmatpush1.msra.mxu0 0.0
        %4516 = vmatprep.subr.mxu0 0.0
        %4517 = vmatpush1.msra.mxu0 0.0
        %4518 = vmatprep.subr.mxu0 0.0
        %4519 = vmatpush1.msra.mxu0 0.0
        %4520 = vmatprep.subr.mxu0 0.0
        %4521 = vmatpush1.msra.mxu0 0.0
        %4522 = vmatprep.subr.mxu0 0.0
        %4523 = vmatpush1.msra.mxu0 0.0
        %4524 = vmatprep.subr.mxu0 0.0
        %4525 = vmatpush1.msra.mxu0 0.0
        %4526 = vmatprep.subr.mxu0 0.0
        %4527 = vmatpush1.msra.mxu0 0.0
        %4528 = vmatprep.subr.mxu0 0.0
        %4529 = vmatpush1.msra.mxu0 0.0
        %4530 = vmatprep.subr.mxu0 0.0
        %4531 = vmatpush1.msra.mxu0 0.0
        %4532 = vmatprep.subr.mxu0 0.0
        %4533 = vmatpush1.msra.mxu0 0.0
        %4534 = vmatprep.subr.mxu0 0.0
        %4535 = vmatpush1.msra.mxu0 0.0
        %4536 = vmatprep.subr.mxu0 0.0
        %4537 = vmatpush1.msra.mxu0 0.0
        %4538 = vmatprep.subr.mxu0 0.0
        %4539 = vmatpush1.msra.mxu0 0.0
        %4540 = vmatprep.subr.mxu0 0.0
        %4541 = vmatpush1.msra.mxu0 0.0
        %4542 = vmatprep.subr.mxu0 0.0
        %4543 = vmatpush1.msra.mxu0 0.0
        %4544 = vmatprep.subr.mxu0 0.0
        %4545 = vmatpush1.msra.mxu0 0.0
        %4546 = vmatprep.subr.mxu0 0.0
        %4547 = vmatpush1.msra.mxu0 0.0
        %4548 = vmatprep.mubr.f32.mxu0 0.0
        %4549 = vmatmul.mubr.f32.gmra.mrb[0].mxu0 %v4479
        %v4550 = vpop.f32.mrb[0].mxu0
        %v4551 = vadd.f32 0.0, %v4550
        %v4552 = vpop.f32.mrb[0].mxu0
        %4553 = vmatprep.mubr.f32.mxu0 0.0
        %4554 = vmatmul.mubr.f32.gmra.mrb[0].mxu0 %v4482
        %v4555 = vpop.f32.mrb[0].mxu0
        %v4556 = vadd.f32 0.0, %v4555
        %v4557 = vpop.f32.mrb[0].mxu0
        %4558 = vdwg.mxu0
        %v4560 = vsel %vm2433, %v4472, 0
        %v4563 = vsel %vm2433, %v4473, 0
        %4565 = vmatprep.subr.mxu0 0.0
        %4566 = vmatpush1.msra.mxu0 %v3955
        %4567 = vmatprep.subr.mxu0 0.0
        %4568 = vmatpush1.msra.mxu0 %v4023
        %4569 = vmatprep.subr.mxu0 0.0
        %4570 = vmatpush1.msra.mxu0 0.0
        %4571 = vmatprep.subr.mxu0 0.0
        %4572 = vmatpush1.msra.mxu0 0.0
        %4573 = vmatprep.subr.mxu0 0.0
        %4574 = vmatpush1.msra.mxu0 0.0
        %4575 = vmatprep.subr.mxu0 0.0
        %4576 = vmatpush1.msra.mxu0 0.0
        %4577 = vmatprep.subr.mxu0 0.0
        %4578 = vmatpush1.msra.mxu0 0.0
        %4579 = vmatprep.subr.mxu0 0.0
        %4580 = vmatpush1.msra.mxu0 0.0
        %4581 = vmatprep.subr.mxu0 0.0
        %4582 = vmatpush1.msra.mxu0 0.0
        %4583 = vmatprep.subr.mxu0 0.0
        %4584 = vmatpush1.msra.mxu0 0.0
        %4585 = vmatprep.subr.mxu0 0.0
        %4586 = vmatpush1.msra.mxu0 0.0
        %4587 = vmatprep.subr.mxu0 0.0
        %4588 = vmatpush1.msra.mxu0 0.0
        %4589 = vmatprep.subr.mxu0 0.0
        %4590 = vmatpush1.msra.mxu0 0.0
        %4591 = vmatprep.subr.mxu0 0.0
        %4592 = vmatpush1.msra.mxu0 0.0
        %4593 = vmatprep.subr.mxu0 0.0
        %4594 = vmatpush1.msra.mxu0 0.0
        %4595 = vmatprep.subr.mxu0 0.0
        %4596 = vmatpush1.msra.mxu0 0.0
        %4597 = vmatprep.subr.mxu0 0.0
        %4598 = vmatpush1.msra.mxu0 0.0
        %4599 = vmatprep.subr.mxu0 0.0
        %4600 = vmatpush1.msra.mxu0 0.0
        %4601 = vmatprep.subr.mxu0 0.0
        %4602 = vmatpush1.msra.mxu0 0.0
        %4603 = vmatprep.subr.mxu0 0.0
        %4604 = vmatpush1.msra.mxu0 0.0
        %4605 = vmatprep.subr.mxu0 0.0
        %4606 = vmatpush1.msra.mxu0 0.0
        %4607 = vmatprep.subr.mxu0 0.0
        %4608 = vmatpush1.msra.mxu0 0.0
        %4609 = vmatprep.subr.mxu0 0.0
        %4610 = vmatpush1.msra.mxu0 0.0
        %4611 = vmatprep.subr.mxu0 0.0
        %4612 = vmatpush1.msra.mxu0 0.0
        %4613 = vmatprep.subr.mxu0 0.0
        %4614 = vmatpush1.msra.mxu0 0.0
        %4615 = vmatprep.subr.mxu0 0.0
        %4616 = vmatpush1.msra.mxu0 0.0
        %4617 = vmatprep.subr.mxu0 0.0
        %4618 = vmatpush1.msra.mxu0 0.0
        %4619 = vmatprep.subr.mxu0 0.0
        %4620 = vmatpush1.msra.mxu0 0.0
        %4621 = vmatprep.subr.mxu0 0.0
        %4622 = vmatpush1.msra.mxu0 0.0
        %4623 = vmatprep.subr.mxu0 0.0
        %4624 = vmatpush1.msra.mxu0 0.0
        %4625 = vmatprep.subr.mxu0 0.0
        %4626 = vmatpush1.msra.mxu0 0.0
        %4627 = vmatprep.subr.mxu0 0.0
        %4628 = vmatpush1.msra.mxu0 0.0
        %4629 = vmatprep.mubr.f32.mxu0 0.0
        %4630 = vmatmul.mubr.f32.gmra.mrb[0].mxu0 %v4560
        %v4631 = vpop.f32.mrb[0].mxu0
        %v4632 = vadd.f32 0.0, %v4631
        %v4633 = vpop.f32.mrb[0].mxu0
        %4634 = vmatprep.mubr.f32.mxu0 0.0
        %4635 = vmatmul.mubr.f32.gmra.mrb[0].mxu0 %v4563
        %v4636 = vpop.f32.mrb[0].mxu0
        %v4637 = vadd.f32 0.0, %v4636
        %v4638 = vpop.f32.mrb[0].mxu0
        %4639 = vdwg.mxu0
        %v4641 = vsel %vm2433, %v4474, 0
        %v4644 = vsel %vm2433, %v4475, 0
        %4646 = vmatprep.subr.mxu0 0.0
        %4647 = vmatpush1.msra.mxu0 %v3956
        %4648 = vmatprep.subr.mxu0 0.0
        %4649 = vmatpush1.msra.mxu0 %v4024
        %4650 = vmatprep.subr.mxu0 0.0
        %4651 = vmatpush1.msra.mxu0 0.0
        %4652 = vmatprep.subr.mxu0 0.0
        %4653 = vmatpush1.msra.mxu0 0.0
        %4654 = vmatprep.subr.mxu0 0.0
        %4655 = vmatpush1.msra.mxu0 0.0
        %4656 = vmatprep.subr.mxu0 0.0
        %4657 = vmatpush1.msra.mxu0 0.0
        %4658 = vmatprep.subr.mxu0 0.0
        %4659 = vmatpush1.msra.mxu0 0.0
        %4660 = vmatprep.subr.mxu0 0.0
        %4661 = vmatpush1.msra.mxu0 0.0
        %4662 = vmatprep.subr.mxu0 0.0
        %4663 = vmatpush1.msra.mxu0 0.0
        %4664 = vmatprep.subr.mxu0 0.0
        %4665 = vmatpush1.msra.mxu0 0.0
        %4666 = vmatprep.subr.mxu0 0.0
        %4667 = vmatpush1.msra.mxu0 0.0
        %4668 = vmatprep.subr.mxu0 0.0
        %4669 = vmatpush1.msra.mxu0 0.0
        %4670 = vmatprep.subr.mxu0 0.0
        %4671 = vmatpush1.msra.mxu0 0.0
        %4672 = vmatprep.subr.mxu0 0.0
        %4673 = vmatpush1.msra.mxu0 0.0
        %4674 = vmatprep.subr.mxu0 0.0
        %4675 = vmatpush1.msra.mxu0 0.0
        %4676 = vmatprep.subr.mxu0 0.0
        %4677 = vmatpush1.msra.mxu0 0.0
        %4678 = vmatprep.subr.mxu0 0.0
        %4679 = vmatpush1.msra.mxu0 0.0
        %4680 = vmatprep.subr.mxu0 0.0
        %4681 = vmatpush1.msra.mxu0 0.0
        %4682 = vmatprep.subr.mxu0 0.0
        %4683 = vmatpush1.msra.mxu0 0.0
        %4684 = vmatprep.subr.mxu0 0.0
        %4685 = vmatpush1.msra.mxu0 0.0
        %4686 = vmatprep.subr.mxu0 0.0
        %4687 = vmatpush1.msra.mxu0 0.0
        %4688 = vmatprep.subr.mxu0 0.0
        %4689 = vmatpush1.msra.mxu0 0.0
        %4690 = vmatprep.subr.mxu0 0.0
        %4691 = vmatpush1.msra.mxu0 0.0
        %4692 = vmatprep.subr.mxu0 0.0
        %4693 = vmatpush1.msra.mxu0 0.0
        %4694 = vmatprep.subr.mxu0 0.0
        %4695 = vmatpush1.msra.mxu0 0.0
        %4696 = vmatprep.subr.mxu0 0.0
        %4697 = vmatpush1.msra.mxu0 0.0
        %4698 = vmatprep.subr.mxu0 0.0
        %4699 = vmatpush1.msra.mxu0 0.0
        %4700 = vmatprep.subr.mxu0 0.0
        %4701 = vmatpush1.msra.mxu0 0.0
        %4702 = vmatprep.subr.mxu0 0.0
        %4703 = vmatpush1.msra.mxu0 0.0
        %4704 = vmatprep.subr.mxu0 0.0
        %4705 = vmatpush1.msra.mxu0 0.0
        %4706 = vmatprep.subr.mxu0 0.0
        %4707 = vmatpush1.msra.mxu0 0.0
        %4708 = vmatprep.subr.mxu0 0.0
        %4709 = vmatpush1.msra.mxu0 0.0
        %4710 = vmatprep.mubr.f32.mxu0 0.0
        %4711 = vmatmul.mubr.f32.gmra.mrb[0].mxu0 %v4641
        %v4712 = vpop.f32.mrb[0].mxu0
        %v4713 = vadd.f32 0.0, %v4712
        %v4714 = vpop.f32.mrb[0].mxu0
        %4715 = vmatprep.mubr.f32.mxu0 0.0
        %4716 = vmatmul.mubr.f32.gmra.mrb[0].mxu0 %v4644
        %v4717 = vpop.f32.mrb[0].mxu0
        %v4718 = vadd.f32 0.0, %v4717
        %v4719 = vpop.f32.mrb[0].mxu0
        %4720 = vdwg.mxu0
        %v4722 = vsel %vm2433, %v4476, 0
        %v4725 = vsel %vm2433, %v4477, 0
        %4727 = vmatprep.subr.mxu0 0.0
        %4728 = vmatpush1.msra.mxu0 %v3957
        %4729 = vmatprep.subr.mxu0 0.0
        %4730 = vmatpush1.msra.mxu0 %v4025
        %4731 = vmatprep.subr.mxu0 0.0
        %4732 = vmatpush1.msra.mxu0 0.0
        %4733 = vmatprep.subr.mxu0 0.0
        %4734 = vmatpush1.msra.mxu0 0.0
        %4735 = vmatprep.subr.mxu0 0.0
        %4736 = vmatpush1.msra.mxu0 0.0
        %4737 = vmatprep.subr.mxu0 0.0
        %4738 = vmatpush1.msra.mxu0 0.0
        %4739 = vmatprep.subr.mxu0 0.0
        %4740 = vmatpush1.msra.mxu0 0.0
        %4741 = vmatprep.subr.mxu0 0.0
        %4742 = vmatpush1.msra.mxu0 0.0
        %4743 = vmatprep.subr.mxu0 0.0
        %4744 = vmatpush1.msra.mxu0 0.0
        %4745 = vmatprep.subr.mxu0 0.0
        %4746 = vmatpush1.msra.mxu0 0.0
        %4747 = vmatprep.subr.mxu0 0.0
        %4748 = vmatpush1.msra.mxu0 0.0
        %4749 = vmatprep.subr.mxu0 0.0
        %4750 = vmatpush1.msra.mxu0 0.0
        %4751 = vmatprep.subr.mxu0 0.0
        %4752 = vmatpush1.msra.mxu0 0.0
        %4753 = vmatprep.subr.mxu0 0.0
        %4754 = vmatpush1.msra.mxu0 0.0
        %4755 = vmatprep.subr.mxu0 0.0
        %4756 = vmatpush1.msra.mxu0 0.0
        %4757 = vmatprep.subr.mxu0 0.0
        %4758 = vmatpush1.msra.mxu0 0.0
        %4759 = vmatprep.subr.mxu0 0.0
        %4760 = vmatpush1.msra.mxu0 0.0
        %4761 = vmatprep.subr.mxu0 0.0
        %4762 = vmatpush1.msra.mxu0 0.0
        %4763 = vmatprep.subr.mxu0 0.0
        %4764 = vmatpush1.msra.mxu0 0.0
        %4765 = vmatprep.subr.mxu0 0.0
        %4766 = vmatpush1.msra.mxu0 0.0
        %4767 = vmatprep.subr.mxu0 0.0
        %4768 = vmatpush1.msra.mxu0 0.0
        %4769 = vmatprep.subr.mxu0 0.0
        %4770 = vmatpush1.msra.mxu0 0.0
        %4771 = vmatprep.subr.mxu0 0.0
        %4772 = vmatpush1.msra.mxu0 0.0
        %4773 = vmatprep.subr.mxu0 0.0
        %4774 = vmatpush1.msra.mxu0 0.0
        %4775 = vmatprep.subr.mxu0 0.0
        %4776 = vmatpush1.msra.mxu0 0.0
        %4777 = vmatprep.subr.mxu0 0.0
        %4778 = vmatpush1.msra.mxu0 0.0
        %4779 = vmatprep.subr.mxu0 0.0
        %4780 = vmatpush1.msra.mxu0 0.0
        %4781 = vmatprep.subr.mxu0 0.0
        %4782 = vmatpush1.msra.mxu0 0.0
        %4783 = vmatprep.subr.mxu0 0.0
        %4784 = vmatpush1.msra.mxu0 0.0
        %4785 = vmatprep.subr.mxu0 0.0
        %4786 = vmatpush1.msra.mxu0 0.0
        %4787 = vmatprep.subr.mxu0 0.0
        %4788 = vmatpush1.msra.mxu0 0.0
        %4789 = vmatprep.subr.mxu0 0.0
        %4790 = vmatpush1.msra.mxu0 0.0
        %4791 = vmatprep.mubr.f32.mxu0 0.0
        %4792 = vmatmul.mubr.f32.gmra.mrb[0].mxu0 %v4722
        %v4793 = vpop.f32.mrb[0].mxu0
        %v4794 = vadd.f32 0.0, %v4793
        %v4795 = vpop.f32.mrb[0].mxu0
        %4796 = vmatprep.mubr.f32.mxu0 0.0
        %4797 = vmatmul.mubr.f32.gmra.mrb[0].mxu0 %v4725
        %v4798 = vpop.f32.mrb[0].mxu0
        %v4799 = vadd.f32 0.0, %v4798
        %v4800 = vpop.f32.mrb[0].mxu0
        %4801 = vdwg.mxu0
        %v4802 = vcombine.low %v4551, %v4713
        %v4803 = vcombine.high %v4551, %v4713
        %v4805 = vunpack.c.l.s4 1983009808
        %v4806 = vunpack.c.0.s8 %v4805
        %v4807 = vlaneseq
        %v4808 = vshrl.u32 %v4807, 7
        %v4809 = vsub.s32 %v4806, %v4808
        %v4810 = vrot.slane %v4802, %v4809
        %v4812 = vunpack.c.l.s4 1983009808
        %v4813 = vunpack.c.0.s8 %v4812
        %v4814 = vlaneseq
        %v4815 = vshrl.u32 %v4814, 7
        %v4816 = vsub.s32 %v4813, %v4815
        %v4817 = vrot.slane %v4803, %v4816
        %v4818 = vcombine.low %v4632, %v4794
        %v4819 = vcombine.high %v4632, %v4794
        %v4821 = vunpack.c.l.s4 1983009808
        %v4822 = vunpack.c.0.s8 %v4821
        %v4823 = vlaneseq
        %v4824 = vshrl.u32 %v4823, 7
        %v4825 = vsub.s32 %v4822, %v4824
        %v4826 = vrot.slane %v4818, %v4825
        %v4828 = vunpack.c.l.s4 1983009808
        %v4829 = vunpack.c.0.s8 %v4828
        %v4830 = vlaneseq
        %v4831 = vshrl.u32 %v4830, 7
        %v4832 = vsub.s32 %v4829, %v4831
        %v4833 = vrot.slane %v4819, %v4832
        %v4834 = vcombine.low %v4810, %v4826
        %v4835 = vcombine.high %v4810, %v4826
        %v4837 = vunpack.c.l.s4 1934713408
        %v4838 = vunpack.c.0.s8 %v4837
        %v4839 = vlaneseq
        %v4840 = vshrl.u32 %v4839, 7
        %v4841 = vsub.s32 %v4838, %v4840
        %v4842 = vrot.slane %v4834, %v4841
        %v4844 = vunpack.c.l.s4 1934713408
        %v4845 = vunpack.c.0.s8 %v4844
        %v4846 = vlaneseq
        %v4847 = vshrl.u32 %v4846, 7
        %v4848 = vsub.s32 %v4845, %v4847
        %v4849 = vrot.slane %v4835, %v4848
        %v4850 = vcombine.low %v4817, %v4833
        %v4851 = vcombine.high %v4817, %v4833
        %v4853 = vunpack.c.l.s4 1934713408
        %v4854 = vunpack.c.0.s8 %v4853
        %v4855 = vlaneseq
        %v4856 = vshrl.u32 %v4855, 7
        %v4857 = vsub.s32 %v4854, %v4856
        %v4858 = vrot.slane %v4850, %v4857
        %v4860 = vunpack.c.l.s4 1934713408
        %v4861 = vunpack.c.0.s8 %v4860
        %v4862 = vlaneseq
        %v4863 = vshrl.u32 %v4862, 7
        %v4864 = vsub.s32 %v4861, %v4863
        %v4865 = vrot.slane %v4851, %v4864
        %v4866 = vcombine.high %v4842, 0.0
        %v4867 = vcombine.high %v4849, 0.0
        %v4868 = vcombine.high %v4858, 0.0
        %v4869 = vcombine.high %v4865, 0.0
        %v4870 = vcombine.low %v4556, %v4718
        %v4871 = vcombine.high %v4556, %v4718
        %v4873 = vunpack.c.l.s4 1983009808
        %v4874 = vunpack.c.0.s8 %v4873
        %v4875 = vlaneseq
        %v4876 = vshrl.u32 %v4875, 7
        %v4877 = vsub.s32 %v4874, %v4876
        %v4878 = vrot.slane %v4870, %v4877
        %v4880 = vunpack.c.l.s4 1983009808
        %v4881 = vunpack.c.0.s8 %v4880
        %v4882 = vlaneseq
        %v4883 = vshrl.u32 %v4882, 7
        %v4884 = vsub.s32 %v4881, %v4883
        %v4885 = vrot.slane %v4871, %v4884
        %v4886 = vcombine.low %v4637, %v4799
        %v4887 = vcombine.high %v4637, %v4799
        %v4889 = vunpack.c.l.s4 1983009808
        %v4890 = vunpack.c.0.s8 %v4889
        %v4891 = vlaneseq
        %v4892 = vshrl.u32 %v4891, 7
        %v4893 = vsub.s32 %v4890, %v4892
        %v4894 = vrot.slane %v4886, %v4893
        %v4896 = vunpack.c.l.s4 1983009808
        %v4897 = vunpack.c.0.s8 %v4896
        %v4898 = vlaneseq
        %v4899 = vshrl.u32 %v4898, 7
        %v4900 = vsub.s32 %v4897, %v4899
        %v4901 = vrot.slane %v4887, %v4900
        %v4902 = vcombine.low %v4878, %v4894
        %v4903 = vcombine.high %v4878, %v4894
        %v4905 = vunpack.c.l.s4 1934713408
        %v4906 = vunpack.c.0.s8 %v4905
        %v4907 = vlaneseq
        %v4908 = vshrl.u32 %v4907, 7
        %v4909 = vsub.s32 %v4906, %v4908
        %v4910 = vrot.slane %v4902, %v4909
        %v4912 = vunpack.c.l.s4 1934713408
        %v4913 = vunpack.c.0.s8 %v4912
        %v4914 = vlaneseq
        %v4915 = vshrl.u32 %v4914, 7
        %v4916 = vsub.s32 %v4913, %v4915
        %v4917 = vrot.slane %v4903, %v4916
        %v4918 = vcombine.low %v4885, %v4901
        %v4919 = vcombine.high %v4885, %v4901
        %v4921 = vunpack.c.l.s4 1934713408
        %v4922 = vunpack.c.0.s8 %v4921
        %v4923 = vlaneseq
        %v4924 = vshrl.u32 %v4923, 7
        %v4925 = vsub.s32 %v4922, %v4924
        %v4926 = vrot.slane %v4918, %v4925
        %v4928 = vunpack.c.l.s4 1934713408
        %v4929 = vunpack.c.0.s8 %v4928
        %v4930 = vlaneseq
        %v4931 = vshrl.u32 %v4930, 7
        %v4932 = vsub.s32 %v4929, %v4931
        %v4933 = vrot.slane %v4919, %v4932
        %v4934 = vcombine.high %v4910, 0.0
        %v4935 = vcombine.high %v4917, 0.0
        %v4936 = vcombine.high %v4926, 0.0
        %v4937 = vcombine.high %v4933, 0.0
        %v4938 = vcombine.low %v4842, %v4849
        %v4940 = vunpack.c.l.s4 1983009808
        %v4941 = vunpack.c.0.s8 %v4940
        %v4942 = vlaneseq
        %v4943 = vshrl.u32 %v4942, 7
        %v4944 = vsub.s32 %v4941, %v4943
        %v4945 = vrot.slane %v4938, %v4944
        %v4946 = vcombine.low %v4866, %v4867
        %v4948 = vunpack.c.l.s4 1983009808
        %v4949 = vunpack.c.0.s8 %v4948
        %v4950 = vlaneseq
        %v4951 = vshrl.u32 %v4950, 7
        %v4952 = vsub.s32 %v4949, %v4951
        %v4953 = vrot.slane %v4946, %v4952
        %v4954 = vcombine.low %v4858, %v4865
        %v4956 = vunpack.c.l.s4 1983009808
        %v4957 = vunpack.c.0.s8 %v4956
        %v4958 = vlaneseq
        %v4959 = vshrl.u32 %v4958, 7
        %v4960 = vsub.s32 %v4957, %v4959
        %v4961 = vrot.slane %v4954, %v4960
        %v4962 = vcombine.low %v4868, %v4869
        %v4964 = vunpack.c.l.s4 1983009808
        %v4965 = vunpack.c.0.s8 %v4964
        %v4966 = vlaneseq
        %v4967 = vshrl.u32 %v4966, 7
        %v4968 = vsub.s32 %v4965, %v4967
        %v4969 = vrot.slane %v4962, %v4968
        %v4970 = vcombine.low %v4945, %v4953
        %v4971 = vcombine.high %v4945, %v4953
        %v4973 = vunpack.c.l.s4 1934713408
        %v4974 = vunpack.c.0.s8 %v4973
        %v4975 = vlaneseq
        %v4976 = vshrl.u32 %v4975, 7
        %v4977 = vsub.s32 %v4974, %v4976
        %v4978 = vrot.slane %v4970, %v4977
        %v4980 = vunpack.c.l.s4 1934713408
        %v4981 = vunpack.c.0.s8 %v4980
        %v4982 = vlaneseq
        %v4983 = vshrl.u32 %v4982, 7
        %v4984 = vsub.s32 %v4981, %v4983
        %v4985 = vrot.slane %v4971, %v4984
        %v4986 = vcombine.low %v4961, %v4969
        %v4987 = vcombine.high %v4961, %v4969
        %v4989 = vunpack.c.l.s4 1934713408
        %v4990 = vunpack.c.0.s8 %v4989
        %v4991 = vlaneseq
        %v4992 = vshrl.u32 %v4991, 7
        %v4993 = vsub.s32 %v4990, %v4992
        %v4994 = vrot.slane %v4986, %v4993
        %v4996 = vunpack.c.l.s4 1934713408
        %v4997 = vunpack.c.0.s8 %v4996
        %v4998 = vlaneseq
        %v4999 = vshrl.u32 %v4998, 7
        %v5000 = vsub.s32 %v4997, %v4999
        %v5001 = vrot.slane %v4987, %v5000
        %v5002 = vcombine.low %v4978, %v4994
        %v5003 = vcombine.high %v4978, %v4994
        %v5004 = vcombine.low %v4985, %v5001
        %v5005 = vcombine.high %v4985, %v5001
        %v5006 = vcombine.low %v4910, %v4917
        %v5008 = vunpack.c.l.s4 1983009808
        %v5009 = vunpack.c.0.s8 %v5008
        %v5010 = vlaneseq
        %v5011 = vshrl.u32 %v5010, 7
        %v5012 = vsub.s32 %v5009, %v5011
        %v5013 = vrot.slane %v5006, %v5012
        %v5014 = vcombine.low %v4934, %v4935
        %v5016 = vunpack.c.l.s4 1983009808
        %v5017 = vunpack.c.0.s8 %v5016
        %v5018 = vlaneseq
        %v5019 = vshrl.u32 %v5018, 7
        %v5020 = vsub.s32 %v5017, %v5019
        %v5021 = vrot.slane %v5014, %v5020
        %v5022 = vcombine.low %v4926, %v4933
        %v5024 = vunpack.c.l.s4 1983009808
        %v5025 = vunpack.c.0.s8 %v5024
        %v5026 = vlaneseq
        %v5027 = vshrl.u32 %v5026, 7
        %v5028 = vsub.s32 %v5025, %v5027
        %v5029 = vrot.slane %v5022, %v5028
        %v5030 = vcombine.low %v4936, %v4937
        %v5032 = vunpack.c.l.s4 1983009808
        %v5033 = vunpack.c.0.s8 %v5032
        %v5034 = vlaneseq
        %v5035 = vshrl.u32 %v5034, 7
        %v5036 = vsub.s32 %v5033, %v5035
        %v5037 = vrot.slane %v5030, %v5036
        %v5038 = vcombine.low %v5013, %v5021
        %v5039 = vcombine.high %v5013, %v5021
        %v5041 = vunpack.c.l.s4 1934713408
        %v5042 = vunpack.c.0.s8 %v5041
        %v5043 = vlaneseq
        %v5044 = vshrl.u32 %v5043, 7
        %v5045 = vsub.s32 %v5042, %v5044
        %v5046 = vrot.slane %v5038, %v5045
        %v5048 = vunpack.c.l.s4 1934713408
        %v5049 = vunpack.c.0.s8 %v5048
        %v5050 = vlaneseq
        %v5051 = vshrl.u32 %v5050, 7
        %v5052 = vsub.s32 %v5049, %v5051
        %v5053 = vrot.slane %v5039, %v5052
        %v5054 = vcombine.low %v5029, %v5037
        %v5055 = vcombine.high %v5029, %v5037
        %v5057 = vunpack.c.l.s4 1934713408
        %v5058 = vunpack.c.0.s8 %v5057
        %v5059 = vlaneseq
        %v5060 = vshrl.u32 %v5059, 7
        %v5061 = vsub.s32 %v5058, %v5060
        %v5062 = vrot.slane %v5054, %v5061
        %v5064 = vunpack.c.l.s4 1934713408
        %v5065 = vunpack.c.0.s8 %v5064
        %v5066 = vlaneseq
        %v5067 = vshrl.u32 %v5066, 7
        %v5068 = vsub.s32 %v5065, %v5067
        %v5069 = vrot.slane %v5055, %v5068
        %v5070 = vcombine.low %v5046, %v5062
        %v5071 = vcombine.high %v5046, %v5062
        %v5072 = vcombine.low %v5053, %v5069
        %v5073 = vcombine.high %v5053, %v5069
        %5076 = vrot.lane.b32.xlu0 %v5003, 32
        %v5077 = vpop.permute.xlu0 %5076
        %5078 = vrot.lane.b32.xlu0 %v5071, 32
        %v5079 = vpop.permute.xlu0 %5078
        %5084 = vrot.lane.b32.xlu0 %v5004, 64
        %v5085 = vpop.permute.xlu0 %5084
        %5086 = vrot.lane.b32.xlu0 %v5072, 64
        %v5087 = vpop.permute.xlu0 %5086
        %5092 = vrot.lane.b32.xlu0 %v5005, 96
        %v5093 = vpop.permute.xlu0 %5092
        %5094 = vrot.lane.b32.xlu0 %v5073, 96
        %v5095 = vpop.permute.xlu0 %5094
        %v5098 = vsel %vm2064, %v5002, %v5077
        %v5099 = vsel %vm2064, %v5070, %v5079
        %v5100 = vsel %vm3144, %v5098, %v5085
        %v5101 = vsel %vm3144, %v5099, %v5087
        %v5102 = vsel %vm3147, %v5100, %v5093
        %v5103 = vsel %vm3147, %v5101, %v5095
        %v5104 = vpack.c.bf16 %v3149, %v3148
        %v5105 = vpack.c.bf16 %v5103, %v5102
        %v5106 = vld [vmem:[%s688] sm:$0xf]
        %v5107 = vld [vmem:[%s688 + $0x4] sm:$0xf]
        %v5108 = vld [vmem:[%s688 + $0x8] sm:$0xf]
        %v5109 = vld [vmem:[%s688 + $0xc] sm:$0xf]
        %v5110 = vld [vmem:[%s688 + $0x10] sm:$0xf]
        %v5111 = vld [vmem:[%s688 + $0x14] sm:$0xf]
        %v5112 = vld [vmem:[%s688 + $0x18] sm:$0xf]
        %v5113 = vld [vmem:[%s688 + $0x1c] sm:$0xf]
        %v5114 = vld [vmem:[%s688 + $0x20] sm:$0xf]
        %v5115 = vld [vmem:[%s688 + $0x24] sm:$0xf]
        %v5116 = vld [vmem:[%s688 + $0x28] sm:$0xf]
        %v5117 = vld [vmem:[%s688 + $0x2c] sm:$0xf]
        %v5118 = vld [vmem:[%s688 + $0x30] sm:$0xf]
        %v5119 = vld [vmem:[%s688 + $0x34] sm:$0xf]
        %v5120 = vld [vmem:[%s688 + $0x38] sm:$0xf]
        %v5121 = vld [vmem:[%s688 + $0x3c] sm:$0xf]
        %v5122 = vld [vmem:[%s798] sm:$0x1]
        %v5124 = vlaneseq
        %v5125 = vshrl.u32 %v5124, 7
        %v5126 = vsub.s32 0, %v5125
        %v5127 = vrot.slane %v5122, %v5126
        %v5145 = vunpack.c.l.b16 %v5106
        %v5146 = vunpack.c.l.b16 %v5107
        %v5147 = vunpack.c.l.b16 %v5108
        %v5148 = vunpack.c.l.b16 %v5109
        %v5149 = vunpack.c.l.b16 %v5110
        %v5150 = vunpack.c.l.b16 %v5111
        %v5151 = vunpack.c.l.b16 %v5112
        %v5152 = vunpack.c.l.b16 %v5113
        %v5153 = vunpack.c.l.b16 %v5114
        %v5154 = vunpack.c.l.b16 %v5115
        %v5155 = vunpack.c.l.b16 %v5116
        %v5156 = vunpack.c.l.b16 %v5117
        %v5157 = vunpack.c.l.b16 %v5118
        %v5158 = vunpack.c.l.b16 %v5119
        %v5159 = vunpack.c.l.b16 %v5120
        %v5160 = vunpack.c.l.b16 %v5121
        %v5161 = vpack.c.b16 %v5146, %v5145
        %v5162 = vpack.c.b16 %v5148, %v5147
        %v5163 = vpack.c.b16 %v5150, %v5149
        %v5164 = vpack.c.b16 %v5152, %v5151
        %v5165 = vpack.c.b16 %v5154, %v5153
        %v5166 = vpack.c.b16 %v5156, %v5155
        %v5167 = vpack.c.b16 %v5158, %v5157
        %v5168 = vpack.c.b16 %v5160, %v5159
        %5177 = vmatprep.subr.bf16.mxu0 0
        %5178 = vmatpush1.bf16.msra.mxu0 %v5161
        %5179 = vmatprep.subr.bf16.mxu0 0
        %5180 = vmatpush1.bf16.msra.mxu0 %v5162
        %5181 = vmatprep.subr.bf16.mxu0 0
        %5182 = vmatpush1.bf16.msra.mxu0 %v5163
        %5183 = vmatprep.subr.bf16.mxu0 0
        %5184 = vmatpush1.bf16.msra.mxu0 %v5164
        %5185 = vmatprep.subr.bf16.mxu0 0
        %5186 = vmatpush1.bf16.msra.mxu0 %v5165
        %5187 = vmatprep.subr.bf16.mxu0 0
        %5188 = vmatpush1.bf16.msra.mxu0 %v5166
        %5189 = vmatprep.subr.bf16.mxu0 0
        %5190 = vmatpush1.bf16.msra.mxu0 %v5167
        %5191 = vmatprep.subr.bf16.mxu0 0
        %5192 = vmatpush1.bf16.msra.mxu0 %v5168
        %5193 = vmatprep.subr.bf16.mxu0 0
        %5194 = vmatpush1.bf16.msra.mxu0 0
        %5195 = vmatprep.subr.bf16.mxu0 0
        %5196 = vmatpush1.bf16.msra.mxu0 0
        %5197 = vmatprep.subr.bf16.mxu0 0
        %5198 = vmatpush1.bf16.msra.mxu0 0
        %5199 = vmatprep.subr.bf16.mxu0 0
        %5200 = vmatpush1.bf16.msra.mxu0 0
        %5201 = vmatprep.subr.bf16.mxu0 0
        %5202 = vmatpush1.bf16.msra.mxu0 0
        %5203 = vmatprep.subr.bf16.mxu0 0
        %5204 = vmatpush1.bf16.msra.mxu0 0
        %5205 = vmatprep.subr.bf16.mxu0 0
        %5206 = vmatpush1.bf16.msra.mxu0 0
        %5207 = vmatprep.subr.bf16.mxu0 0
        %5208 = vmatpush1.bf16.msra.mxu0 0
        %5209 = vmatprep.mubr.bf16.mxu0 0
        %5210 = vmatmul.mubr.bf16.gmra.mrb[0].mxu0 %v5104
        %v5211 = vpop.f32.mrb[0].mxu0
        %v5212 = vadd.f32 %v5127, %v5211
        %v5213 = vpop.f32.mrb[0].mxu0
        %v5214 = vpop.f32.mrb[0].mxu0
        %v5215 = vadd.f32 %v5127, %v5214
        %v5216 = vpop.f32.mrb[0].mxu0
        %5217 = vmatprep.mubr.bf16.mxu0 0
        %5218 = vmatmul.mubr.bf16.gmra.mrb[0].mxu0 %v5105
        %v5219 = vpop.f32.mrb[0].mxu0
        %v5220 = vadd.f32 %v5127, %v5219
        %v5221 = vpop.f32.mrb[0].mxu0
        %v5222 = vpop.f32.mrb[0].mxu0
        %v5223 = vadd.f32 %v5127, %v5222
        %v5224 = vpop.f32.mrb[0].mxu0
        %5225 = vdwg.mxu0
        %v5226 = vadd.f32 %v826, %v5212
        %v5227 = vadd.f32 %v827, %v5215
        %v5228 = vadd.f32 %v828, %v5220
        %v5229 = vadd.f32 %v829, %v5223
        %v5230 = vld [vmem:[%s801] sm:$0x1]
        %v5231 = vld [vmem:[%s804] sm:$0x1]
        %5232 = vadd.xlane.f32.xlu0 %v5226
        %v5233 = vpop.xlane.xlu0 %5232
        %5234 = vadd.xlane.f32.xlu0 %v5227
        %v5235 = vpop.xlane.xlu0 %5234
        %5236 = vadd.xlane.f32.xlu0 %v5228
        %v5237 = vpop.xlane.xlu0 %5236
        %5238 = vadd.xlane.f32.xlu0 %v5229
        %v5239 = vpop.xlane.xlu0 %5238
        %v5240 = vmul.f32 %v5233, %v840
        %v5241 = vmul.f32 %v5235, %v840
        %v5242 = vmul.f32 %v5237, %v840
        %v5243 = vmul.f32 %v5239, %v840
        %v5244 = vsub.f32 %v5226, %v5240
        %v5245 = vsub.f32 %v5227, %v5241
        %v5246 = vsub.f32 %v5228, %v5242
        %v5247 = vsub.f32 %v5229, %v5243
        %v5248 = vmul.f32 %v5244, %v5244
        %v5249 = vmul.f32 %v5245, %v5245
        %v5250 = vmul.f32 %v5246, %v5246
        %v5251 = vmul.f32 %v5247, %v5247
        %5252 = vadd.xlane.f32.xlu0 %v5248
        %v5253 = vpop.xlane.xlu0 %5252
        %5254 = vadd.xlane.f32.xlu0 %v5249
        %v5255 = vpop.xlane.xlu0 %5254
        %5256 = vadd.xlane.f32.xlu0 %v5250
        %v5257 = vpop.xlane.xlu0 %5256
        %5258 = vadd.xlane.f32.xlu0 %v5251
        %v5259 = vpop.xlane.xlu0 %5258
        %v5260 = vmul.f32 %v5253, %v840
        %v5261 = vmul.f32 %v5255, %v840
        %v5262 = vmul.f32 %v5257, %v840
        %v5263 = vmul.f32 %v5259, %v840
        %v5264 = vadd.f32 %v5260, 1e-05
        %v5265 = vadd.f32 %v5261, 1e-05
        %v5266 = vadd.f32 %v5262, 1e-05
        %v5267 = vadd.f32 %v5263, 1e-05
        %v5268 = vrsqrt.pop %v5264
        %v5269 = vrsqrt.pop %v5265
        %v5270 = vrsqrt.pop %v5266
        %v5271 = vrsqrt.pop %v5267
        %v5272 = vmul.f32 %v5244, %v5268
        %v5273 = vmul.f32 %v5245, %v5269
        %v5274 = vmul.f32 %v5246, %v5270
        %v5275 = vmul.f32 %v5247, %v5271
        %v5277 = vlaneseq
        %v5278 = vshrl.u32 %v5277, 7
        %v5279 = vsub.s32 0, %v5278
        %v5280 = vrot.slane %v5230, %v5279
        %v5282 = vmul.f32 %v5272, %v5280
        %v5283 = vmul.f32 %v5273, %v5280
        %v5284 = vmul.f32 %v5274, %v5280
        %v5285 = vmul.f32 %v5275, %v5280
        %v5287 = vlaneseq
        %v5288 = vshrl.u32 %v5287, 7
        %v5289 = vsub.s32 0, %v5288
        %v5290 = vrot.slane %v5231, %v5289
        %v5292 = vadd.f32 %v5282, %v5290
        %v5293 = vadd.f32 %v5283, %v5290
        %v5294 = vadd.f32 %v5284, %v5290
        %v5295 = vadd.f32 %v5285, %v5290
        %v5296 = vpack.c.bf16 %v5293, %v5292
        %v5297 = vpack.c.bf16 %v5295, %v5294
        %v5298 = vld [vmem:[%s697] sm:$0xff]
        %v5299 = vld [vmem:[%s697 + $0x8] sm:$0xff]
        %v5300 = vld [vmem:[%s697 + $0x10] sm:$0xff]
        %v5301 = vld [vmem:[%s697 + $0x18] sm:$0xff]
        %v5302 = vld [vmem:[%s697 + $0x20] sm:$0xff]
        %v5303 = vld [vmem:[%s697 + $0x28] sm:$0xff]
        %v5304 = vld [vmem:[%s697 + $0x30] sm:$0xff]
        %v5305 = vld [vmem:[%s697 + $0x38] sm:$0xff]
        %v5306 = vld [vmem:[%s697 + $0x40] sm:$0xff]
        %v5307 = vld [vmem:[%s697 + $0x48] sm:$0xff]
        %v5308 = vld [vmem:[%s697 + $0x50] sm:$0xff]
        %v5309 = vld [vmem:[%s697 + $0x58] sm:$0xff]
        %v5310 = vld [vmem:[%s697 + $0x60] sm:$0xff]
        %v5311 = vld [vmem:[%s697 + $0x68] sm:$0xff]
        %v5312 = vld [vmem:[%s697 + $0x70] sm:$0xff]
        %v5313 = vld [vmem:[%s697 + $0x78] sm:$0xff]
        %v5314 = vld [vmem:[%s697 + $0x80] sm:$0xff]
        %v5315 = vld [vmem:[%s697 + $0x88] sm:$0xff]
        %v5316 = vld [vmem:[%s697 + $0x90] sm:$0xff]
        %v5317 = vld [vmem:[%s697 + $0x98] sm:$0xff]
        %v5318 = vld [vmem:[%s697 + $0xa0] sm:$0xff]
        %v5319 = vld [vmem:[%s697 + $0xa8] sm:$0xff]
        %v5320 = vld [vmem:[%s697 + $0xb0] sm:$0xff]
        %v5321 = vld [vmem:[%s697 + $0xb8] sm:$0xff]
        %v5322 = vld [vmem:[%s697 + $0xc0] sm:$0xff]
        %v5323 = vld [vmem:[%s697 + $0xc8] sm:$0xff]
        %v5324 = vld [vmem:[%s697 + $0xd0] sm:$0xff]
        %v5325 = vld [vmem:[%s697 + $0xd8] sm:$0xff]
        %v5326 = vld [vmem:[%s697 + $0xe0] sm:$0xff]
        %v5327 = vld [vmem:[%s697 + $0xe8] sm:$0xff]
        %v5328 = vld [vmem:[%s697 + $0xf0] sm:$0xff]
        %v5329 = vld [vmem:[%s697 + $0xf8] sm:$0xff]
        %v5330 = vld [vmem:[%s808] sm:$0xf]
        %v5332 = vlaneseq
        %v5333 = vshrl.u32 %v5332, 7
        %v5334 = vsub.s32 0, %v5333
        %v5335 = vrot.slane %v5330, %v5334
        %v5336 = vlaneseq
        %v5337 = vshrl.u32 %v5336, 7
        %v5338 = vsub.s32 1, %v5337
        %v5339 = vrot.slane %v5330, %v5338
        %v5340 = vlaneseq
        %v5341 = vshrl.u32 %v5340, 7
        %v5342 = vsub.s32 2, %v5341
        %v5343 = vrot.slane %v5330, %v5342
        %v5344 = vlaneseq
        %v5345 = vshrl.u32 %v5344, 7
        %v5346 = vsub.s32 3, %v5345
        %v5347 = vrot.slane %v5330, %v5346
        %v5384 = vunpack.c.l.b16 %v5298
        %v5385 = vunpack.c.h.b16 %v5298
        %v5386 = vunpack.c.l.b16 %v5299
        %v5387 = vunpack.c.h.b16 %v5299
        %v5388 = vunpack.c.l.b16 %v5300
        %v5389 = vunpack.c.h.b16 %v5300
        %v5390 = vunpack.c.l.b16 %v5301
        %v5391 = vunpack.c.h.b16 %v5301
        %v5392 = vunpack.c.l.b16 %v5302
        %v5393 = vunpack.c.h.b16 %v5302
        %v5394 = vunpack.c.l.b16 %v5303
        %v5395 = vunpack.c.h.b16 %v5303
        %v5396 = vunpack.c.l.b16 %v5304
        %v5397 = vunpack.c.h.b16 %v5304
        %v5398 = vunpack.c.l.b16 %v5305
        %v5399 = vunpack.c.h.b16 %v5305
        %v5400 = vunpack.c.l.b16 %v5306
        %v5401 = vunpack.c.h.b16 %v5306
        %v5402 = vunpack.c.l.b16 %v5307
        %v5403 = vunpack.c.h.b16 %v5307
        %v5404 = vunpack.c.l.b16 %v5308
        %v5405 = vunpack.c.h.b16 %v5308
        %v5406 = vunpack.c.l.b16 %v5309
        %v5407 = vunpack.c.h.b16 %v5309
        %v5408 = vunpack.c.l.b16 %v5310
        %v5409 = vunpack.c.h.b16 %v5310
        %v5410 = vunpack.c.l.b16 %v5311
        %v5411 = vunpack.c.h.b16 %v5311
        %v5412 = vunpack.c.l.b16 %v5312
        %v5413 = vunpack.c.h.b16 %v5312
        %v5414 = vunpack.c.l.b16 %v5313
        %v5415 = vunpack.c.h.b16 %v5313
        %v5416 = vunpack.c.l.b16 %v5314
        %v5417 = vunpack.c.h.b16 %v5314
        %v5418 = vunpack.c.l.b16 %v5315
        %v5419 = vunpack.c.h.b16 %v5315
        %v5420 = vunpack.c.l.b16 %v5316
        %v5421 = vunpack.c.h.b16 %v5316
        %v5422 = vunpack.c.l.b16 %v5317
        %v5423 = vunpack.c.h.b16 %v5317
        %v5424 = vunpack.c.l.b16 %v5318
        %v5425 = vunpack.c.h.b16 %v5318
        %v5426 = vunpack.c.l.b16 %v5319
        %v5427 = vunpack.c.h.b16 %v5319
        %v5428 = vunpack.c.l.b16 %v5320
        %v5429 = vunpack.c.h.b16 %v5320
        %v5430 = vunpack.c.l.b16 %v5321
        %v5431 = vunpack.c.h.b16 %v5321
        %v5432 = vunpack.c.l.b16 %v5322
        %v5433 = vunpack.c.h.b16 %v5322
        %v5434 = vunpack.c.l.b16 %v5323
        %v5435 = vunpack.c.h.b16 %v5323
        %v5436 = vunpack.c.l.b16 %v5324
        %v5437 = vunpack.c.h.b16 %v5324
        %v5438 = vunpack.c.l.b16 %v5325
        %v5439 = vunpack.c.h.b16 %v5325
        %v5440 = vunpack.c.l.b16 %v5326
        %v5441 = vunpack.c.h.b16 %v5326
        %v5442 = vunpack.c.l.b16 %v5327
        %v5443 = vunpack.c.h.b16 %v5327
        %v5444 = vunpack.c.l.b16 %v5328
        %v5445 = vunpack.c.h.b16 %v5328
        %v5446 = vunpack.c.l.b16 %v5329
        %v5447 = vunpack.c.h.b16 %v5329
        %v5448 = vpack.c.b16 %v5388, %v5384
        %v5449 = vpack.c.b16 %v5389, %v5385
        %v5450 = vpack.c.b16 %v5390, %v5386
        %v5451 = vpack.c.b16 %v5391, %v5387
        %v5452 = vpack.c.b16 %v5396, %v5392
        %v5453 = vpack.c.b16 %v5397, %v5393
        %v5454 = vpack.c.b16 %v5398, %v5394
        %v5455 = vpack.c.b16 %v5399, %v5395
        %v5456 = vpack.c.b16 %v5404, %v5400
        %v5457 = vpack.c.b16 %v5405, %v5401
        %v5458 = vpack.c.b16 %v5406, %v5402
        %v5459 = vpack.c.b16 %v5407, %v5403
        %v5460 = vpack.c.b16 %v5412, %v5408
        %v5461 = vpack.c.b16 %v5413, %v5409
        %v5462 = vpack.c.b16 %v5414, %v5410
        %v5463 = vpack.c.b16 %v5415, %v5411
        %v5464 = vpack.c.b16 %v5420, %v5416
        %v5465 = vpack.c.b16 %v5421, %v5417
        %v5466 = vpack.c.b16 %v5422, %v5418
        %v5467 = vpack.c.b16 %v5423, %v5419
        %v5468 = vpack.c.b16 %v5428, %v5424
        %v5469 = vpack.c.b16 %v5429, %v5425
        %v5470 = vpack.c.b16 %v5430, %v5426
        %v5471 = vpack.c.b16 %v5431, %v5427
        %v5472 = vpack.c.b16 %v5436, %v5432
        %v5473 = vpack.c.b16 %v5437, %v5433
        %v5474 = vpack.c.b16 %v5438, %v5434
        %v5475 = vpack.c.b16 %v5439, %v5435
        %v5476 = vpack.c.b16 %v5444, %v5440
        %v5477 = vpack.c.b16 %v5445, %v5441
        %v5478 = vpack.c.b16 %v5446, %v5442
        %v5479 = vpack.c.b16 %v5447, %v5443
        %5512 = vmatprep.subr.bf16.mxu0 %v5449
        %5513 = vmatpush1.bf16.msra.mxu0 %v5448
        %5514 = vmatprep.subr.bf16.mxu0 %v5453
        %5515 = vmatpush1.bf16.msra.mxu0 %v5452
        %5516 = vmatprep.subr.bf16.mxu0 %v5457
        %5517 = vmatpush1.bf16.msra.mxu0 %v5456
        %5518 = vmatprep.subr.bf16.mxu0 %v5461
        %5519 = vmatpush1.bf16.msra.mxu0 %v5460
        %5520 = vmatprep.subr.bf16.mxu0 %v5465
        %5521 = vmatpush1.bf16.msra.mxu0 %v5464
        %5522 = vmatprep.subr.bf16.mxu0 %v5469
        %5523 = vmatpush1.bf16.msra.mxu0 %v5468
        %5524 = vmatprep.subr.bf16.mxu0 %v5473
        %5525 = vmatpush1.bf16.msra.mxu0 %v5472
        %5526 = vmatprep.subr.bf16.mxu0 %v5477
        %5527 = vmatpush1.bf16.msra.mxu0 %v5476
        %5528 = vmatprep.subr.bf16.mxu0 0
        %5529 = vmatpush1.bf16.msra.mxu0 0
        %5530 = vmatprep.subr.bf16.mxu0 0
        %5531 = vmatpush1.bf16.msra.mxu0 0
        %5532 = vmatprep.subr.bf16.mxu0 0
        %5533 = vmatpush1.bf16.msra.mxu0 0
        %5534 = vmatprep.subr.bf16.mxu0 0
        %5535 = vmatpush1.bf16.msra.mxu0 0
        %5536 = vmatprep.subr.bf16.mxu0 0
        %5537 = vmatpush1.bf16.msra.mxu0 0
        %5538 = vmatprep.subr.bf16.mxu0 0
        %5539 = vmatpush1.bf16.msra.mxu0 0
        %5540 = vmatprep.subr.bf16.mxu0 0
        %5541 = vmatpush1.bf16.msra.mxu0 0
        %5542 = vmatprep.subr.bf16.mxu0 0
        %5543 = vmatpush1.bf16.msra.mxu0 0
        %5544 = vmatprep.mubr.bf16.mxu0 0
        %5545 = vmatmul.mubr.bf16.gmra.mrb[0].mxu0 %v5296
        %v5546 = vpop.f32.mrb[0].mxu0
        %v5547 = vadd.f32 %v5335, %v5546
        %v5548 = vpop.f32.mrb[0].mxu0
        %v5549 = vadd.f32 %v5339, %v5548
        %v5550 = vpop.f32.mrb[0].mxu0
        %v5551 = vadd.f32 %v5335, %v5550
        %v5552 = vpop.f32.mrb[0].mxu0
        %v5553 = vadd.f32 %v5339, %v5552
        %5554 = vmatprep.mubr.bf16.mxu0 0
        %5555 = vmatmul.mubr.bf16.gmra.mrb[0].mxu0 %v5297
        %v5556 = vpop.f32.mrb[0].mxu0
        %v5557 = vadd.f32 %v5335, %v5556
        %v5558 = vpop.f32.mrb[0].mxu0
        %v5559 = vadd.f32 %v5339, %v5558
        %v5560 = vpop.f32.mrb[0].mxu0
        %v5561 = vadd.f32 %v5335, %v5560
        %v5562 = vpop.f32.mrb[0].mxu0
        %v5563 = vadd.f32 %v5339, %v5562
        %5564 = vdwg.mxu0
        %5565 = vmatprep.subr.bf16.mxu0 %v5451
        %5566 = vmatpush1.bf16.msra.mxu0 %v5450
        %5567 = vmatprep.subr.bf16.mxu0 %v5455
        %5568 = vmatpush1.bf16.msra.mxu0 %v5454
        %5569 = vmatprep.subr.bf16.mxu0 %v5459
        %5570 = vmatpush1.bf16.msra.mxu0 %v5458
        %5571 = vmatprep.subr.bf16.mxu0 %v5463
        %5572 = vmatpush1.bf16.msra.mxu0 %v5462
        %5573 = vmatprep.subr.bf16.mxu0 %v5467
        %5574 = vmatpush1.bf16.msra.mxu0 %v5466
        %5575 = vmatprep.subr.bf16.mxu0 %v5471
        %5576 = vmatpush1.bf16.msra.mxu0 %v5470
        %5577 = vmatprep.subr.bf16.mxu0 %v5475
        %5578 = vmatpush1.bf16.msra.mxu0 %v5474
        %5579 = vmatprep.subr.bf16.mxu0 %v5479
        %5580 = vmatpush1.bf16.msra.mxu0 %v5478
        %5581 = vmatprep.subr.bf16.mxu0 0
        %5582 = vmatpush1.bf16.msra.mxu0 0
        %5583 = vmatprep.subr.bf16.mxu0 0
        %5584 = vmatpush1.bf16.msra.mxu0 0
        %5585 = vmatprep.subr.bf16.mxu0 0
        %5586 = vmatpush1.bf16.msra.mxu0 0
        %5587 = vmatprep.subr.bf16.mxu0 0
        %5588 = vmatpush1.bf16.msra.mxu0 0
        %5589 = vmatprep.subr.bf16.mxu0 0
        %5590 = vmatpush1.bf16.msra.mxu0 0
        %5591 = vmatprep.subr.bf16.mxu0 0
        %5592 = vmatpush1.bf16.msra.mxu0 0
        %5593 = vmatprep.subr.bf16.mxu0 0
        %5594 = vmatpush1.bf16.msra.mxu0 0
        %5595 = vmatprep.subr.bf16.mxu0 0
        %5596 = vmatpush1.bf16.msra.mxu0 0
        %5597 = vmatprep.mubr.bf16.mxu0 0
        %5598 = vmatmul.mubr.bf16.gmra.mrb[0].mxu0 %v5296
        %v5599 = vpop.f32.mrb[0].mxu0
        %v5600 = vadd.f32 %v5343, %v5599
        %v5601 = vpop.f32.mrb[0].mxu0
        %v5602 = vadd.f32 %v5347, %v5601
        %v5603 = vpop.f32.mrb[0].mxu0
        %v5604 = vadd.f32 %v5343, %v5603
        %v5605 = vpop.f32.mrb[0].mxu0
        %v5606 = vadd.f32 %v5347, %v5605
        %5607 = vmatprep.mubr.bf16.mxu0 0
        %5608 = vmatmul.mubr.bf16.gmra.mrb[0].mxu0 %v5297
        %v5609 = vpop.f32.mrb[0].mxu0
        %v5610 = vadd.f32 %v5343, %v5609
        %v5611 = vpop.f32.mrb[0].mxu0
        %v5612 = vadd.f32 %v5347, %v5611
        %v5613 = vpop.f32.mrb[0].mxu0
        %v5614 = vadd.f32 %v5343, %v5613
        %v5615 = vpop.f32.mrb[0].mxu0
        %v5616 = vadd.f32 %v5347, %v5615
        %5617 = vdwg.mxu0
        %v5618 = vmul.f32 %v5547, 1.702
        %v5619 = vmul.f32 %v5549, 1.702
        %v5620 = vmul.f32 %v5600, 1.702
        %v5621 = vmul.f32 %v5602, 1.702
        %v5622 = vmul.f32 %v5551, 1.702
        %v5623 = vmul.f32 %v5553, 1.702
        %v5624 = vmul.f32 %v5604, 1.702
        %v5625 = vmul.f32 %v5606, 1.702
        %v5626 = vmul.f32 %v5557, 1.702
        %v5627 = vmul.f32 %v5559, 1.702
        %v5628 = vmul.f32 %v5610, 1.702
        %v5629 = vmul.f32 %v5612, 1.702
        %v5630 = vmul.f32 %v5561, 1.702
        %v5631 = vmul.f32 %v5563, 1.702
        %v5632 = vmul.f32 %v5614, 1.702
        %v5633 = vmul.f32 %v5616, 1.702
        %v5634 = vxor.u32 %v5618, 2147483648
        %v5635 = vxor.u32 %v5619, 2147483648
        %v5636 = vxor.u32 %v5620, 2147483648
        %v5637 = vxor.u32 %v5621, 2147483648
        %v5638 = vxor.u32 %v5622, 2147483648
        %v5639 = vxor.u32 %v5623, 2147483648
        %v5640 = vxor.u32 %v5624, 2147483648
        %v5641 = vxor.u32 %v5625, 2147483648
        %v5642 = vxor.u32 %v5626, 2147483648
        %v5643 = vxor.u32 %v5627, 2147483648
        %v5644 = vxor.u32 %v5628, 2147483648
        %v5645 = vxor.u32 %v5629, 2147483648
        %v5646 = vxor.u32 %v5630, 2147483648
        %v5647 = vxor.u32 %v5631, 2147483648
        %v5648 = vxor.u32 %v5632, 2147483648
        %v5649 = vxor.u32 %v5633, 2147483648
        %v5650 = vmul.f32 %v5634, 1.442695
        %v5651 = vpow.pop %v5650
        %v5652 = vmul.f32 %v5635, 1.442695
        %v5653 = vpow.pop %v5652
        %v5654 = vmul.f32 %v5636, 1.442695
        %v5655 = vpow.pop %v5654
        %v5656 = vmul.f32 %v5637, 1.442695
        %v5657 = vpow.pop %v5656
        %v5658 = vmul.f32 %v5638, 1.442695
        %v5659 = vpow.pop %v5658
        %v5660 = vmul.f32 %v5639, 1.442695
        %v5661 = vpow.pop %v5660
        %v5662 = vmul.f32 %v5640, 1.442695
        %v5663 = vpow.pop %v5662
        %v5664 = vmul.f32 %v5641, 1.442695
        %v5665 = vpow.pop %v5664
        %v5666 = vmul.f32 %v5642, 1.442695
        %v5667 = vpow.pop %v5666
        %v5668 = vmul.f32 %v5643, 1.442695
        %v5669 = vpow.pop %v5668
        %v5670 = vmul.f32 %v5644, 1.442695
        %v5671 = vpow.pop %v5670
        %v5672 = vmul.f32 %v5645, 1.442695
        %v5673 = vpow.pop %v5672
        %v5674 = vmul.f32 %v5646, 1.442695
        %v5675 = vpow.pop %v5674
        %v5676 = vmul.f32 %v5647, 1.442695
        %v5677 = vpow.pop %v5676
        %v5678 = vmul.f32 %v5648, 1.442695
        %v5679 = vpow.pop %v5678
        %v5680 = vmul.f32 %v5649, 1.442695
        %v5681 = vpow.pop %v5680
        %v5682 = vadd.f32 %v5651, 1.0
        %v5683 = vadd.f32 %v5653, 1.0
        %v5684 = vadd.f32 %v5655, 1.0
        %v5685 = vadd.f32 %v5657, 1.0
        %v5686 = vadd.f32 %v5659, 1.0
        %v5687 = vadd.f32 %v5661, 1.0
        %v5688 = vadd.f32 %v5663, 1.0
        %v5689 = vadd.f32 %v5665, 1.0
        %v5690 = vadd.f32 %v5667, 1.0
        %v5691 = vadd.f32 %v5669, 1.0
        %v5692 = vadd.f32 %v5671, 1.0
        %v5693 = vadd.f32 %v5673, 1.0
        %v5694 = vadd.f32 %v5675, 1.0
        %v5695 = vadd.f32 %v5677, 1.0
        %v5696 = vadd.f32 %v5679, 1.0
        %v5697 = vadd.f32 %v5681, 1.0
        %v5698 = vrcp.pop %v5682
        %v5699 = vmul.f32 1.0, %v5698
        %v5700 = vrcp.pop %v5683
        %v5701 = vmul.f32 1.0, %v5700
        %v5702 = vrcp.pop %v5684
        %v5703 = vmul.f32 1.0, %v5702
        %v5704 = vrcp.pop %v5685
        %v5705 = vmul.f32 1.0, %v5704
        %v5706 = vrcp.pop %v5686
        %v5707 = vmul.f32 1.0, %v5706
        %v5708 = vrcp.pop %v5687
        %v5709 = vmul.f32 1.0, %v5708
        %v5710 = vrcp.pop %v5688
        %v5711 = vmul.f32 1.0, %v5710
        %v5712 = vrcp.pop %v5689
        %v5713 = vmul.f32 1.0, %v5712
        %v5714 = vrcp.pop %v5690
        %v5715 = vmul.f32 1.0, %v5714
        %v5716 = vrcp.pop %v5691
        %v5717 = vmul.f32 1.0, %v5716
        %v5718 = vrcp.pop %v5692
        %v5719 = vmul.f32 1.0, %v5718
        %v5720 = vrcp.pop %v5693
        %v5721 = vmul.f32 1.0, %v5720
        %v5722 = vrcp.pop %v5694
        %v5723 = vmul.f32 1.0, %v5722
        %v5724 = vrcp.pop %v5695
        %v5725 = vmul.f32 1.0, %v5724
        %v5726 = vrcp.pop %v5696
        %v5727 = vmul.f32 1.0, %v5726
        %v5728 = vrcp.pop %v5697
        %v5729 = vmul.f32 1.0, %v5728
        %v5730 = vmul.f32 %v5547, %v5699
        %v5731 = vmul.f32 %v5549, %v5701
        %v5732 = vmul.f32 %v5600, %v5703
        %v5733 = vmul.f32 %v5602, %v5705
        %v5734 = vmul.f32 %v5551, %v5707
        %v5735 = vmul.f32 %v5553, %v5709
        %v5736 = vmul.f32 %v5604, %v5711
        %v5737 = vmul.f32 %v5606, %v5713
        %v5738 = vmul.f32 %v5557, %v5715
        %v5739 = vmul.f32 %v5559, %v5717
        %v5740 = vmul.f32 %v5610, %v5719
        %v5741 = vmul.f32 %v5612, %v5721
        %v5742 = vmul.f32 %v5561, %v5723
        %v5743 = vmul.f32 %v5563, %v5725
        %v5744 = vmul.f32 %v5614, %v5727
        %v5745 = vmul.f32 %v5616, %v5729
        %v5746 = vpack.c.bf16 %v5734, %v5730
        %v5747 = vpack.c.bf16 %v5735, %v5731
        %v5748 = vpack.c.bf16 %v5736, %v5732
        %v5749 = vpack.c.bf16 %v5737, %v5733
        %v5750 = vpack.c.bf16 %v5742, %v5738
        %v5751 = vpack.c.bf16 %v5743, %v5739
        %v5752 = vpack.c.bf16 %v5744, %v5740
        %v5753 = vpack.c.bf16 %v5745, %v5741
        %v5754 = vld [vmem:[%s706] sm:$0xf]
        %v5755 = vld [vmem:[%s706 + $0x4] sm:$0xf]
        %v5756 = vld [vmem:[%s706 + $0x8] sm:$0xf]
        %v5757 = vld [vmem:[%s706 + $0xc] sm:$0xf]
        %v5758 = vld [vmem:[%s706 + $0x10] sm:$0xf]
        %v5759 = vld [vmem:[%s706 + $0x14] sm:$0xf]
        %v5760 = vld [vmem:[%s706 + $0x18] sm:$0xf]
        %v5761 = vld [vmem:[%s706 + $0x1c] sm:$0xf]
        %v5762 = vld [vmem:[%s706 + $0x20] sm:$0xf]
        %v5763 = vld [vmem:[%s706 + $0x24] sm:$0xf]
        %v5764 = vld [vmem:[%s706 + $0x28] sm:$0xf]
        %v5765 = vld [vmem:[%s706 + $0x2c] sm:$0xf]
        %v5766 = vld [vmem:[%s706 + $0x30] sm:$0xf]
        %v5767 = vld [vmem:[%s706 + $0x34] sm:$0xf]
        %v5768 = vld [vmem:[%s706 + $0x38] sm:$0xf]
        %v5769 = vld [vmem:[%s706 + $0x3c] sm:$0xf]
        %v5770 = vld [vmem:[%s706 + $0x40] sm:$0xf]
        %v5771 = vld [vmem:[%s706 + $0x44] sm:$0xf]
        %v5772 = vld [vmem:[%s706 + $0x48] sm:$0xf]
        %v5773 = vld [vmem:[%s706 + $0x4c] sm:$0xf]
        %v5774 = vld [vmem:[%s706 + $0x50] sm:$0xf]
        %v5775 = vld [vmem:[%s706 + $0x54] sm:$0xf]
        %v5776 = vld [vmem:[%s706 + $0x58] sm:$0xf]
        %v5777 = vld [vmem:[%s706 + $0x5c] sm:$0xf]
        %v5778 = vld [vmem:[%s706 + $0x60] sm:$0xf]
        %v5779 = vld [vmem:[%s706 + $0x64] sm:$0xf]
        %v5780 = vld [vmem:[%s706 + $0x68] sm:$0xf]
        %v5781 = vld [vmem:[%s706 + $0x6c] sm:$0xf]
        %v5782 = vld [vmem:[%s706 + $0x70] sm:$0xf]
        %v5783 = vld [vmem:[%s706 + $0x74] sm:$0xf]
        %v5784 = vld [vmem:[%s706 + $0x78] sm:$0xf]
        %v5785 = vld [vmem:[%s706 + $0x7c] sm:$0xf]
        %v5786 = vld [vmem:[%s706 + $0x80] sm:$0xf]
        %v5787 = vld [vmem:[%s706 + $0x84] sm:$0xf]
        %v5788 = vld [vmem:[%s706 + $0x88] sm:$0xf]
        %v5789 = vld [vmem:[%s706 + $0x8c] sm:$0xf]
        %v5790 = vld [vmem:[%s706 + $0x90] sm:$0xf]
        %v5791 = vld [vmem:[%s706 + $0x94] sm:$0xf]
        %v5792 = vld [vmem:[%s706 + $0x98] sm:$0xf]
        %v5793 = vld [vmem:[%s706 + $0x9c] sm:$0xf]
        %v5794 = vld [vmem:[%s706 + $0xa0] sm:$0xf]
        %v5795 = vld [vmem:[%s706 + $0xa4] sm:$0xf]
        %v5796 = vld [vmem:[%s706 + $0xa8] sm:$0xf]
        %v5797 = vld [vmem:[%s706 + $0xac] sm:$0xf]
        %v5798 = vld [vmem:[%s706 + $0xb0] sm:$0xf]
        %v5799 = vld [vmem:[%s706 + $0xb4] sm:$0xf]
        %v5800 = vld [vmem:[%s706 + $0xb8] sm:$0xf]
        %v5801 = vld [vmem:[%s706 + $0xbc] sm:$0xf]
        %v5802 = vld [vmem:[%s706 + $0xc0] sm:$0xf]
        %v5803 = vld [vmem:[%s706 + $0xc4] sm:$0xf]
        %v5804 = vld [vmem:[%s706 + $0xc8] sm:$0xf]
        %v5805 = vld [vmem:[%s706 + $0xcc] sm:$0xf]
        %v5806 = vld [vmem:[%s706 + $0xd0] sm:$0xf]
        %v5807 = vld [vmem:[%s706 + $0xd4] sm:$0xf]
        %v5808 = vld [vmem:[%s706 + $0xd8] sm:$0xf]
        %v5809 = vld [vmem:[%s706 + $0xdc] sm:$0xf]
        %v5810 = vld [vmem:[%s706 + $0xe0] sm:$0xf]
        %v5811 = vld [vmem:[%s706 + $0xe4] sm:$0xf]
        %v5812 = vld [vmem:[%s706 + $0xe8] sm:$0xf]
        %v5813 = vld [vmem:[%s706 + $0xec] sm:$0xf]
        %v5814 = vld [vmem:[%s706 + $0xf0] sm:$0xf]
        %v5815 = vld [vmem:[%s706 + $0xf4] sm:$0xf]
        %v5816 = vld [vmem:[%s706 + $0xf8] sm:$0xf]
        %v5817 = vld [vmem:[%s706 + $0xfc] sm:$0xf]
        %v5818 = vld [vmem:[%s811] sm:$0x1]
        %v5820 = vlaneseq
        %v5821 = vshrl.u32 %v5820, 7
        %v5822 = vsub.s32 0, %v5821
        %v5823 = vrot.slane %v5818, %v5822
        %v5889 = vunpack.c.l.b16 %v5754
        %v5890 = vunpack.c.l.b16 %v5755
        %v5891 = vunpack.c.l.b16 %v5756
        %v5892 = vunpack.c.l.b16 %v5757
        %v5893 = vunpack.c.l.b16 %v5758
        %v5894 = vunpack.c.l.b16 %v5759
        %v5895 = vunpack.c.l.b16 %v5760
        %v5896 = vunpack.c.l.b16 %v5761
        %v5897 = vunpack.c.l.b16 %v5762
        %v5898 = vunpack.c.l.b16 %v5763
        %v5899 = vunpack.c.l.b16 %v5764
        %v5900 = vunpack.c.l.b16 %v5765
        %v5901 = vunpack.c.l.b16 %v5766
        %v5902 = vunpack.c.l.b16 %v5767
        %v5903 = vunpack.c.l.b16 %v5768
        %v5904 = vunpack.c.l.b16 %v5769
        %v5905 = vunpack.c.l.b16 %v5770
        %v5906 = vunpack.c.l.b16 %v5771
        %v5907 = vunpack.c.l.b16 %v5772
        %v5908 = vunpack.c.l.b16 %v5773
        %v5909 = vunpack.c.l.b16 %v5774
        %v5910 = vunpack.c.l.b16 %v5775
        %v5911 = vunpack.c.l.b16 %v5776
        %v5912 = vunpack.c.l.b16 %v5777
        %v5913 = vunpack.c.l.b16 %v5778
        %v5914 = vunpack.c.l.b16 %v5779
        %v5915 = vunpack.c.l.b16 %v5780
        %v5916 = vunpack.c.l.b16 %v5781
        %v5917 = vunpack.c.l.b16 %v5782
        %v5918 = vunpack.c.l.b16 %v5783
        %v5919 = vunpack.c.l.b16 %v5784
        %v5920 = vunpack.c.l.b16 %v5785
        %v5921 = vunpack.c.l.b16 %v5786
        %v5922 = vunpack.c.l.b16 %v5787
        %v5923 = vunpack.c.l.b16 %v5788
        %v5924 = vunpack.c.l.b16 %v5789
        %v5925 = vunpack.c.l.b16 %v5790
        %v5926 = vunpack.c.l.b16 %v5791
        %v5927 = vunpack.c.l.b16 %v5792
        %v5928 = vunpack.c.l.b16 %v5793
        %v5929 = vunpack.c.l.b16 %v5794
        %v5930 = vunpack.c.l.b16 %v5795
        %v5931 = vunpack.c.l.b16 %v5796
        %v5932 = vunpack.c.l.b16 %v5797
        %v5933 = vunpack.c.l.b16 %v5798
        %v5934 = vunpack.c.l.b16 %v5799
        %v5935 = vunpack.c.l.b16 %v5800
        %v5936 = vunpack.c.l.b16 %v5801
        %v5937 = vunpack.c.l.b16 %v5802
        %v5938 = vunpack.c.l.b16 %v5803
        %v5939 = vunpack.c.l.b16 %v5804
        %v5940 = vunpack.c.l.b16 %v5805
        %v5941 = vunpack.c.l.b16 %v5806
        %v5942 = vunpack.c.l.b16 %v5807
        %v5943 = vunpack.c.l.b16 %v5808
        %v5944 = vunpack.c.l.b16 %v5809
        %v5945 = vunpack.c.l.b16 %v5810
        %v5946 = vunpack.c.l.b16 %v5811
        %v5947 = vunpack.c.l.b16 %v5812
        %v5948 = vunpack.c.l.b16 %v5813
        %v5949 = vunpack.c.l.b16 %v5814
        %v5950 = vunpack.c.l.b16 %v5815
        %v5951 = vunpack.c.l.b16 %v5816
        %v5952 = vunpack.c.l.b16 %v5817
        %v5953 = vpack.c.b16 %v5890, %v5889
        %v5954 = vpack.c.b16 %v5892, %v5891
        %v5955 = vpack.c.b16 %v5894, %v5893
        %v5956 = vpack.c.b16 %v5896, %v5895
        %v5957 = vpack.c.b16 %v5898, %v5897
        %v5958 = vpack.c.b16 %v5900, %v5899
        %v5959 = vpack.c.b16 %v5902, %v5901
        %v5960 = vpack.c.b16 %v5904, %v5903
        %v5961 = vpack.c.b16 %v5906, %v5905
        %v5962 = vpack.c.b16 %v5908, %v5907
        %v5963 = vpack.c.b16 %v5910, %v5909
        %v5964 = vpack.c.b16 %v5912, %v5911
        %v5965 = vpack.c.b16 %v5914, %v5913
        %v5966 = vpack.c.b16 %v5916, %v5915
        %v5967 = vpack.c.b16 %v5918, %v5917
        %v5968 = vpack.c.b16 %v5920, %v5919
        %v5969 = vpack.c.b16 %v5922, %v5921
        %v5970 = vpack.c.b16 %v5924, %v5923
        %v5971 = vpack.c.b16 %v5926, %v5925
        %v5972 = vpack.c.b16 %v5928, %v5927
        %v5973 = vpack.c.b16 %v5930, %v5929
        %v5974 = vpack.c.b16 %v5932, %v5931
        %v5975 = vpack.c.b16 %v5934, %v5933
        %v5976 = vpack.c.b16 %v5936, %v5935
        %v5977 = vpack.c.b16 %v5938, %v5937
        %v5978 = vpack.c.b16 %v5940, %v5939
        %v5979 = vpack.c.b16 %v5942, %v5941
        %v5980 = vpack.c.b16 %v5944, %v5943
        %v5981 = vpack.c.b16 %v5946, %v5945
        %v5982 = vpack.c.b16 %v5948, %v5947
        %v5983 = vpack.c.b16 %v5950, %v5949
        %v5984 = vpack.c.b16 %v5952, %v5951
        %6017 = vmatprep.subr.bf16.mxu0 0
        %6018 = vmatpush1.bf16.msra.mxu0 %v5953
        %6019 = vmatprep.subr.bf16.mxu0 0
        %6020 = vmatpush1.bf16.msra.mxu0 %v5954
        %6021 = vmatprep.subr.bf16.mxu0 0
        %6022 = vmatpush1.bf16.msra.mxu0 %v5955
        %6023 = vmatprep.subr.bf16.mxu0 0
        %6024 = vmatpush1.bf16.msra.mxu0 %v5956
        %6025 = vmatprep.subr.bf16.mxu0 0
        %6026 = vmatpush1.bf16.msra.mxu0 %v5957
        %6027 = vmatprep.subr.bf16.mxu0 0
        %6028 = vmatpush1.bf16.msra.mxu0 %v5958
        %6029 = vmatprep.subr.bf16.mxu0 0
        %6030 = vmatpush1.bf16.msra.mxu0 %v5959
        %6031 = vmatprep.subr.bf16.mxu0 0
        %6032 = vmatpush1.bf16.msra.mxu0 %v5960
        %6033 = vmatprep.subr.bf16.mxu0 0
        %6034 = vmatpush1.bf16.msra.mxu0 %v5961
        %6035 = vmatprep.subr.bf16.mxu0 0
        %6036 = vmatpush1.bf16.msra.mxu0 %v5962
        %6037 = vmatprep.subr.bf16.mxu0 0
        %6038 = vmatpush1.bf16.msra.mxu0 %v5963
        %6039 = vmatprep.subr.bf16.mxu0 0
        %6040 = vmatpush1.bf16.msra.mxu0 %v5964
        %6041 = vmatprep.subr.bf16.mxu0 0
        %6042 = vmatpush1.bf16.msra.mxu0 %v5965
        %6043 = vmatprep.subr.bf16.mxu0 0
        %6044 = vmatpush1.bf16.msra.mxu0 %v5966
        %6045 = vmatprep.subr.bf16.mxu0 0
        %6046 = vmatpush1.bf16.msra.mxu0 %v5967
        %6047 = vmatprep.subr.bf16.mxu0 0
        %6048 = vmatpush1.bf16.msra.mxu0 %v5968
        %6049 = vmatprep.mubr.bf16.mxu0 %v5747
        %6050 = vmatmul.mubr.bf16.gmra.mrb[0].mxu0 %v5746
        %v6051 = vpop.f32.mrb[0].mxu0
        %v6052 = vadd.f32 %v5823, %v6051
        %v6053 = vpop.f32.mrb[0].mxu0
        %v6054 = vpop.f32.mrb[0].mxu0
        %v6055 = vadd.f32 %v5823, %v6054
        %v6056 = vpop.f32.mrb[0].mxu0
        %6057 = vmatprep.mubr.bf16.mxu0 %v5751
        %6058 = vmatmul.mubr.bf16.gmra.mrb[0].mxu0 %v5750
        %v6059 = vpop.f32.mrb[0].mxu0
        %v6060 = vadd.f32 %v5823, %v6059
        %v6061 = vpop.f32.mrb[0].mxu0
        %v6062 = vpop.f32.mrb[0].mxu0
        %v6063 = vadd.f32 %v5823, %v6062
        %v6064 = vpop.f32.mrb[0].mxu0
        %6065 = vdwg.mxu0
        %6066 = vmatprep.subr.bf16.mxu0 0
        %6067 = vmatpush1.bf16.msra.mxu0 %v5969
        %6068 = vmatprep.subr.bf16.mxu0 0
        %6069 = vmatpush1.bf16.msra.mxu0 %v5970
        %6070 = vmatprep.subr.bf16.mxu0 0
        %6071 = vmatpush1.bf16.msra.mxu0 %v5971
        %6072 = vmatprep.subr.bf16.mxu0 0
        %6073 = vmatpush1.bf16.msra.mxu0 %v5972
        %6074 = vmatprep.subr.bf16.mxu0 0
        %6075 = vmatpush1.bf16.msra.mxu0 %v5973
        %6076 = vmatprep.subr.bf16.mxu0 0
        %6077 = vmatpush1.bf16.msra.mxu0 %v5974
        %6078 = vmatprep.subr.bf16.mxu0 0
        %6079 = vmatpush1.bf16.msra.mxu0 %v5975
        %6080 = vmatprep.subr.bf16.mxu0 0
        %6081 = vmatpush1.bf16.msra.mxu0 %v5976
        %6082 = vmatprep.subr.bf16.mxu0 0
        %6083 = vmatpush1.bf16.msra.mxu0 %v5977
        %6084 = vmatprep.subr.bf16.mxu0 0
        %6085 = vmatpush1.bf16.msra.mxu0 %v5978
        %6086 = vmatprep.subr.bf16.mxu0 0
        %6087 = vmatpush1.bf16.msra.mxu0 %v5979
        %6088 = vmatprep.subr.bf16.mxu0 0
        %6089 = vmatpush1.bf16.msra.mxu0 %v5980
        %6090 = vmatprep.subr.bf16.mxu0 0
        %6091 = vmatpush1.bf16.msra.mxu0 %v5981
        %6092 = vmatprep.subr.bf16.mxu0 0
        %6093 = vmatpush1.bf16.msra.mxu0 %v5982
        %6094 = vmatprep.subr.bf16.mxu0 0
        %6095 = vmatpush1.bf16.msra.mxu0 %v5983
        %6096 = vmatprep.subr.bf16.mxu0 0
        %6097 = vmatpush1.bf16.msra.mxu0 %v5984
        %6098 = vmatprep.mubr.bf16.mxu0 %v5749
        %6099 = vmatmul.mubr.bf16.gmra.mrb[0].mxu0 %v5748
        %v6100 = vpop.f32.mrb[0].mxu0
        %v6101 = vadd.f32 %v6052, %v6100
        %v6102 = vpop.f32.mrb[0].mxu0
        %v6103 = vpop.f32.mrb[0].mxu0
        %v6104 = vadd.f32 %v6055, %v6103
        %v6105 = vpop.f32.mrb[0].mxu0
        %6106 = vmatprep.mubr.bf16.mxu0 %v5753
        %6107 = vmatmul.mubr.bf16.gmra.mrb[0].mxu0 %v5752
        %v6108 = vpop.f32.mrb[0].mxu0
        %v6109 = vadd.f32 %v6060, %v6108
        %v6110 = vpop.f32.mrb[0].mxu0
        %v6111 = vpop.f32.mrb[0].mxu0
        %v6112 = vadd.f32 %v6063, %v6111
        %v6113 = vpop.f32.mrb[0].mxu0
        %6114 = vdwg.mxu0
        %v6115 = vadd.f32 %v5226, %v6101
        %v6116 = vadd.f32 %v5227, %v6104
        %v6117 = vadd.f32 %v5228, %v6109
        %v6118 = vadd.f32 %v5229, %v6112
        %6119 = vst [vmem:[#allocation2] sm:$0xff] %v6115
        %6120 = vst [vmem:[#allocation2 + $0x8] sm:$0xff] %v6116
        %6121 = vst [vmem:[#allocation2 + $0x10] sm:$0xff] %v6117
        %6122 = vst [vmem:[#allocation2 + $0x18] sm:$0xff] %v6118
        %p6123 = scmp.eq.s32.totalorder %s42, 1
        // Predicated region
        $region113: #{tpu_custom_call.1} parent=79 // pred_check
          %p6124 = pneg %p6123
        $region114: #{tpu_custom_call.1} parent=79 // pred_check_branch
          %6126 = sbr.rel (%p6124) target = $region116
        $region115: #{tpu_custom_call.1} parent=79 // pred_region
          %v6127 = vld [vmem:[%s13] sm:$0x1]
          %v6128 = vld [vmem:[%s14] sm:$0x1]
          %6129 = vadd.xlane.f32.xlu0 %v6115
          %v6130 = vpop.xlane.xlu0 %6129
          %6131 = vadd.xlane.f32.xlu0 %v6116
          %v6132 = vpop.xlane.xlu0 %6131
          %6133 = vadd.xlane.f32.xlu0 %v6117
          %v6134 = vpop.xlane.xlu0 %6133
          %6135 = vadd.xlane.f32.xlu0 %v6118
          %v6136 = vpop.xlane.xlu0 %6135
          %v6137 = vmul.f32 %v6130, %v840
          %v6138 = vmul.f32 %v6132, %v840
          %v6139 = vmul.f32 %v6134, %v840
          %v6140 = vmul.f32 %v6136, %v840
          %v6141 = vsub.f32 %v6115, %v6137
          %v6142 = vsub.f32 %v6116, %v6138
          %v6143 = vsub.f32 %v6117, %v6139
          %v6144 = vsub.f32 %v6118, %v6140
          %v6145 = vmul.f32 %v6141, %v6141
          %v6146 = vmul.f32 %v6142, %v6142
          %v6147 = vmul.f32 %v6143, %v6143
          %v6148 = vmul.f32 %v6144, %v6144
          %6149 = vadd.xlane.f32.xlu0 %v6145
          %v6150 = vpop.xlane.xlu0 %6149
          %6151 = vadd.xlane.f32.xlu0 %v6146
          %v6152 = vpop.xlane.xlu0 %6151
          %6153 = vadd.xlane.f32.xlu0 %v6147
          %v6154 = vpop.xlane.xlu0 %6153
          %6155 = vadd.xlane.f32.xlu0 %v6148
          %v6156 = vpop.xlane.xlu0 %6155
          %v6157 = vmul.f32 %v6150, %v840
          %v6158 = vmul.f32 %v6152, %v840
          %v6159 = vmul.f32 %v6154, %v840
          %v6160 = vmul.f32 %v6156, %v840
          %v6161 = vadd.f32 %v6157, 1e-05
          %v6162 = vadd.f32 %v6158, 1e-05
          %v6163 = vadd.f32 %v6159, 1e-05
          %v6164 = vadd.f32 %v6160, 1e-05
          %v6165 = vrsqrt.pop %v6161
          %v6166 = vrsqrt.pop %v6162
          %v6167 = vrsqrt.pop %v6163
          %v6168 = vrsqrt.pop %v6164
          %v6169 = vmul.f32 %v6141, %v6165
          %v6170 = vmul.f32 %v6142, %v6166
          %v6171 = vmul.f32 %v6143, %v6167
          %v6172 = vmul.f32 %v6144, %v6168
          %v6174 = vlaneseq
          %v6175 = vshrl.u32 %v6174, 7
          %v6176 = vsub.s32 0, %v6175
          %v6177 = vrot.slane %v6127, %v6176
          %v6179 = vmul.f32 %v6169, %v6177
          %v6180 = vmul.f32 %v6170, %v6177
          %v6181 = vmul.f32 %v6171, %v6177
          %v6182 = vmul.f32 %v6172, %v6177
          %v6184 = vlaneseq
          %v6185 = vshrl.u32 %v6184, 7
          %v6186 = vsub.s32 0, %v6185
          %v6187 = vrot.slane %v6128, %v6186
          %v6189 = vadd.f32 %v6179, %v6187
          %v6190 = vadd.f32 %v6180, %v6187
          %v6191 = vadd.f32 %v6181, %v6187
          %v6192 = vadd.f32 %v6182, %v6187
          %6193 = vst [vmem:[#allocation15] sm:$0xff] %v6189
          %6194 = vst [vmem:[#allocation15 + $0x8] sm:$0xff] %v6190
          %6195 = vst [vmem:[#allocation15 + $0x10] sm:$0xff] %v6191
          %6196 = vst [vmem:[#allocation15 + $0x18] sm:$0xff] %v6192
        $region116: #{tpu_custom_call.1} parent=79 // pred_fallthru
          _
        // Predicated region
        $region117: #{tpu_custom_call.1} parent=79 // pred_check
          %p6197 = pneg %p447
        $region118: #{tpu_custom_call.1} parent=79 // pred_check_branch
          %6199 = sbr.rel (%p6197) target = $region120
        $region119: #{tpu_custom_call.1} parent=79 // pred_region
          %s6200 = smul.u32 2, %s41
          %s6202 = ssub.s32 512, 512
          %6203 = vsyncadd [#allocation5], %s6202
          %s6204 = smul.addr %s6200, 2
          %s6205 = smul.addr %s6204, 128
          %s6206 = scalar_lea.hbm %s15, %s6205
          %s6207 = sshll.u32 [#allocation15], 4
          %s6208 = int_to_ptr.vmem [resolvable:$true] %s6207
          %6213 = dma.vmem_to_hbm [thread:$0]  %s6208, 512, %s6206, [#allocation5], 128, 128, 8
        $region120: #{tpu_custom_call.1} parent=79 // pred_fallthru
          _
        // Predicated region
        $region121: #{tpu_custom_call.1} parent=79 // pred_check
          %p6214 = pneg %p447
        $region122: #{tpu_custom_call.1} parent=79 // pred_check_branch
          %6216 = sbr.rel (%p6214) target = $region124
        $region123: #{tpu_custom_call.1} parent=79 // pred_region
          %6217 = dma.done [#allocation5], 512
        $region124: #{tpu_custom_call.1} parent=79 // pred_fallthru
          _
      $region80: #{tpu_custom_call.1} parent=5 // pred_fallthru
        _
      %p6218 = scmp.le.s32.totalorder 2, %s32
      // Predicated region
      $region125: #{tpu_custom_call.1} parent=5 // pred_check
        %p6219 = pneg %p6218
      $region126: #{tpu_custom_call.1} parent=5 // pred_check_branch
        %6221 = sbr.rel (%p6219) target = $region128
      $region127: #{tpu_custom_call.1} parent=5 // pred_region
        %s6222 = ssub.s32 %s32, 2
      $region128: #{tpu_custom_call.1} parent=5 // pred_fallthru
        _
    $region6: #{tpu_custom_call.1} parent=1 // loop_footer
      %s36 = sadd.s32 1, %s32
    $region7: #{tpu_custom_call.1} parent=1 // loop_footer_branch
      %31 = sbr.rel target = $region3
    $region8: #{tpu_custom_call.1} parent=1 // loop_exit
      _
    %6223 = vsyncpa [#allocation4], 1
    %s6224 = scalar_lea.sflag [#allocation4], 1
    %6225 = vsyncpa %s6224, 1
    %6226 = vsyncpa [#allocation7], 1
    %s6227 = scalar_lea.sflag [#allocation7], 1
    %6228 = vsyncpa %s6227, 1
    %6229 = vsyncpa [#allocation10], 1
    %s6230 = scalar_lea.sflag [#allocation10], 1
    %6231 = vsyncpa %s6230, 1
    %6232 = vsyncpa [#allocation13], 1
    %s6233 = scalar_lea.sflag [#allocation13], 1
    %6234 = vsyncpa %s6233, 1
    %6235 = vsyncpa [#allocation5], 1
    %s6236 = scalar_lea.sflag [#allocation5], 1
    %6237 = vsyncpa %s6236, 1

</llo_original>
